<compile_context>
chip_gen: v7x
topology: tpu7x:2x2x1
jax: 0.10.0
libtpu: 0.0.40
codegen_flags: <defaults>
</compile_context>

<pallas_src>
import math
import jax
import jax.numpy as jnp
from jax.experimental import pallas as pl
from jax.experimental.pallas import tpu as pltpu

# ----- small synthetic config (config_model / config_data analogue) -----
VOCAB = 100      # word vocab
MAX_POS = 16     # max position embeddings
TYPE_VOCAB = 2   # segment vocab (segment ids default to 0)
B = 2            # batch
S = 8            # sequence length
H = 32           # hidden_dim
L = 2            # num transformer layers
NH = 4           # attention heads
HD = H // NH     # head dim
F = 64           # FFN intermediate dim
EPS = 1e-12      # BERT layer-norm epsilon

# embedding-slab row layout (all regions start on 8-sublane boundaries)
VOCAB_PAD = ((VOCAB + 127) // 128) * 128          # 128
ROW_POS = VOCAB_PAD                               # pos+type rows   [128, 136)
ROW_LN_G = ROW_POS + ((S + 7) // 8) * 8           # emb-LN gamma    row 136
ROW_LN_B = ROW_LN_G + 8                           # emb-LN beta     row 144
EMB_ROWS = ROW_LN_B + 8                           # 152


def _layernorm(x, g, b):
    mu = jnp.mean(x, axis=-1, keepdims=True)
    var = jnp.mean(jnp.square(x - mu), axis=-1, keepdims=True)
    return (x - mu) * jax.lax.rsqrt(var + EPS) * g + b


def _gelu(x):
    # BERT gelu (tanh approximation, matches google-research/bert & texar)
    return 0.5 * x * (1.0 + jnp.tanh(0.7978845608028654 * (x + 0.044715 * x * x * x)))


def _split_heads(t):
    # (B*S, H) f32 -> (B*NH, S, HD): lane slice per head, new leading head axis,
    # concat on that (non-minor) axis.  No lane<->sublane transpose is emitted.
    heads = [t[:, h * HD:(h + 1) * HD].reshape(B, 1, S, HD) for h in range(NH)]
    return jnp.concatenate(heads, axis=1).reshape(B * NH, S, HD)


def _merge_heads(t):
    # (B*NH, S, HD) f32 -> (B*S, H): leading-axis head slices re-packed on lanes.
    t4 = t.reshape(B, NH, S, HD)
    heads = [t4[:, h:h + 1].reshape(B, S, HD) for h in range(NH)]
    return jnp.concatenate(heads, axis=-1).reshape(B * S, H)


# ------------------------- Pallas kernel -------------------------
def event_encoder_kernel(tok_ref, emb_ref, w_ref, w2_ref, b_ref, out_ref):
    f32, bf16 = jnp.float32, jnp.bfloat16

    # ---- embeddings (one-hot gather on the MXU) + input layer-norm, all f32 ----
    ids = tok_ref[0:B * S, :]                                          # (B*S, 1) int32
    vocab_iota = jax.lax.broadcasted_iota(jnp.int32, (B * S, VOCAB_PAD), 1)
    onehot = (vocab_iota == ids).astype(f32)                           # exact 0/1
    word = jnp.dot(onehot, emb_ref[0:VOCAB_PAD, :], preferred_element_type=f32)
    pos_type = emb_ref[ROW_POS:ROW_POS + S, :]                         # (S, H) pos+type
    x = (word.reshape(B, S, H) + pos_type[None]).reshape(B * S, H)
    x = _layernorm(x, emb_ref[ROW_LN_G:ROW_LN_G + 1, :],
                   emb_ref[ROW_LN_B:ROW_LN_B + 1, :])

    # ---- additive key mask: built once, pre-broadcast to (B*NH, S, S) ----
    lens = tok_ref[B * S:B * S + B, :].reshape(B, 1, 1)                # int32
    key_iota = jax.lax.broadcasted_iota(jnp.int32, (B, 1, S), 2)
    neg = jnp.where(key_iota < lens, 0.0, -1e9).astype(f32)            # (B, 1, S)
    neg = jnp.broadcast_to(neg, (B, NH * S, S)).reshape(B * NH, S, S)

    # TODO(synk): switch to lax.fori_loop(..., unroll=True) / a grid axis over L
    # once L is large enough for the unrolled body to spill past 64 vregs.
    for l in range(L):                                                 # static unroll, L=2
        wl = w_ref[l]                                                  # (H, 4H+F) bf16
        bl = b_ref[l]                                                  # (8, 3H)   f32
        w2 = w2_ref[l]                                                 # (F, H)    bf16

        # fused QKV projection; 1/sqrt(HD) already folded into the Q columns/bias.
        qkv = jnp.dot(x.astype(bf16), wl[:, 0:3 * H],
                      preferred_element_type=f32) + bl[0:1, :]         # (B*S, 3H) f32
        qh = _split_heads(qkv[:, 0 * H:1 * H]).astype(bf16)            # (B*NH, S, HD)
        kh = _split_heads(qkv[:, 1 * H:2 * H]).astype(bf16)
        vh = _split_heads(qkv[:, 2 * H:3 * H]).astype(bf16)

        # all (batch, head) pairs in two batched contractions + ONE softmax
        s = jnp.einsum('bqd,bkd->bqk', qh, kh, preferred_element_type=f32) + neg
        p = jnp.exp(s - jnp.max(s, axis=-1, keepdims=True))
        p = p * pl.reciprocal(jnp.sum(p, axis=-1, keepdims=True), approx=True)
        ctx = _merge_heads(jnp.einsum('bqk,bkd->bqd', p.astype(bf16), vh,
                                      preferred_element_type=f32))     # (B*S, H) f32

        attn = jnp.dot(ctx.astype(bf16), wl[:, 3 * H:4 * H],
                       preferred_element_type=f32) + bl[1:2, 0:H]
        x = _layernorm(x + attn, bl[4:5, 0:H], bl[5:6, 0:H])

        hmid = _gelu(jnp.dot(x.astype(bf16), wl[:, 4 * H:4 * H + F],
                             preferred_element_type=f32) + bl[2:3, 0:F])
        ffn = jnp.dot(hmid.astype(bf16), w2, preferred_element_type=f32) + bl[3:4, 0:H]
        x = _layernorm(x + ffn, bl[6:7, 0:H], bl[7:8, 0:H])

    # TODO(synk): at real sizes make H a multiple of 128 so this is an unmasked
    # full-lane store (lane-dense out_spec is the single biggest lever).
    out_ref[...] = x.reshape(B, S, H)


# ------------------- one-time parameter packing -------------------
def prepare_params(p):
    """Fuse Q|K|V (folding 1/sqrt(HD) into Q), pack everything into a few
    lane-dense slabs, and pre-cast the matmul weights to bf16."""
    scale = 1.0 / math.sqrt(HD)

    emb = jnp.zeros((EMB_ROWS, H), jnp.float32)
    emb = emb.at[0:VOCAB, :].set(p['word_emb'])
    emb = emb.at[ROW_POS:ROW_POS + S, :].set(p['pos_emb'][:S] + p['type_emb'][0][None, :])
    emb = emb.at[ROW_LN_G, :].set(p['ln_e_g'][0])
    emb = emb.at[ROW_LN_B, :].set(p['ln_e_b'][0])

    wqkv = jnp.concatenate([p['wq'] * scale, p['wk'], p['wv']], axis=-1)   # (L, H, 3H)
    w_slab = jnp.concatenate([wqkv, p['wo'], p['w1']],
                             axis=-1).astype(jnp.bfloat16)                 # (L, H, 4H+F)
    w2_slab = p['w2'].astype(jnp.bfloat16)                                 # (L, F, H)

    bqkv = jnp.concatenate([p['bq'] * scale, p['bk'], p['bv']], axis=-1)[:, 0, :]
    b_slab = jnp.zeros((L, 8, 3 * H), jnp.float32)
    b_slab = b_slab.at[:, 0, :].set(bqkv)
    b_slab = b_slab.at[:, 1, :H].set(p['bo'][:, 0, :])
    b_slab = b_slab.at[:, 2, :F].set(p['b1'][:, 0, :])
    b_slab = b_slab.at[:, 3, :H].set(p['b2'][:, 0, :])
    b_slab = b_slab.at[:, 4, :H].set(p['ln1_g'][:, 0, :])
    b_slab = b_slab.at[:, 5, :H].set(p['ln1_b'][:, 0, :])
    b_slab = b_slab.at[:, 6, :H].set(p['ln2_g'][:, 0, :])
    b_slab = b_slab.at[:, 7, :H].set(p['ln2_b'][:, 0, :])

    return {'emb_slab': emb, 'w_slab': w_slab, 'w2_slab': w2_slab, 'b_slab': b_slab}


def bert_encoder_pallas(event_ids, event_lengths, fused):
    # pack token ids + lengths into ONE tiny int32 VMEM input (single DMA)
    tok = jnp.concatenate([event_ids.reshape(B * S, 1).astype(jnp.int32),
                           event_lengths.reshape(B, 1).astype(jnp.int32)], axis=0)

    vmem = pl.BlockSpec(memory_space=pltpu.MemorySpace.VMEM)
    flops = (2 * B * S * VOCAB_PAD * H                                   # gather matmul
             + L * 2 * B * S * (3 * H * H + H * H + 2 * H * F)           # qkv / wo / ffn
             + L * 2 * 2 * B * NH * S * S * HD)                          # scores + ctx
    transcendentals = L * (B * NH * S * S + B * S * F)                   # exp + gelu tanh
    bytes_accessed = (tok.size * 4 + fused['emb_slab'].size * 4
                      + fused['w_slab'].size * 2 + fused['w2_slab'].size * 2
                      + fused['b_slab'].size * 4 + B * S * H * 4)

    # Single gridless invocation: whole problem fits in one vreg-scale tile, so
    # a grid would only add per-step overhead.
    # TODO(synk): when scaling up, add a parallel batch grid axis
    # (dimension_semantics=("parallel",)) so v7x's second TensorCore is used,
    # and stream per-layer weights (grid over L, pipeline_mode=pl.Buffered(2)).
    out = pl.pallas_call(
        event_encoder_kernel,
        out_shape=jax.ShapeDtypeStruct((B, S, H), jnp.float32),
        in_specs=[vmem] * 5,
        out_specs=vmem,
        cost_estimate=pl.CostEstimate(flops=flops, transcendentals=transcendentals,
                                      bytes_accessed=bytes_accessed),
        compiler_params=pltpu.CompilerParams(vmem_limit_bytes=32 * 1024 * 1024),
    )(tok, fused['emb_slab'], fused['w_slab'], fused['w2_slab'], fused['b_slab'])
    return out                                                            # (B, S, H)


# ---------------------- pure-JAX reference (f32) ----------------------
def bert_encoder_ref(event_ids, event_lengths, p):
    x = (p['word_emb'][event_ids]
         + p['pos_emb'][jnp.arange(S)][None]
         + p['type_emb'][0][None, None])
    mask = (jnp.arange(S)[None, :] < event_lengths[:, None]).astype(jnp.float32)
    x = _layernorm(x, p['ln_e_g'][0], p['ln_e_b'][0])
    for l in range(L):
        q = (x @ p['wq'][l] + p['bq'][l]).reshape(B, S, NH, HD).transpose(0, 2, 1, 3)
        k = (x @ p['wk'][l] + p['bk'][l]).reshape(B, S, NH, HD).transpose(0, 2, 1, 3)
        v = (x @ p['wv'][l] + p['bv'][l]).reshape(B, S, NH, HD).transpose(0, 2, 1, 3)
        s = jnp.einsum('bhqd,bhkd->bhqk', q, k) / math.sqrt(HD)
        s = s + (mask[:, None, None, :] - 1.0) * 1e9
        a = jax.nn.softmax(s, axis=-1)
        ctx = jnp.einsum('bhqk,bhkd->bhqd', a, v).transpose(0, 2, 1, 3).reshape(B, S, H)
        attn = ctx @ p['wo'][l] + p['bo'][l]
        x = _layernorm(x + attn, p['ln1_g'][l], p['ln1_b'][l])
        hmid = _gelu(x @ p['w1'][l] + p['b1'][l])
        ffn = hmid @ p['w2'][l] + p['b2'][l]
        x = _layernorm(x + ffn, p['ln2_g'][l], p['ln2_b'][l])
    return x


# ---------------------- deterministic init ----------------------
def init_params(key):
    keys = iter(jax.random.split(key, 16))

    def nrm(shape, scale=0.02):
        return (scale * jax.random.normal(next(keys), shape)).astype(jnp.float32)

    p = {
        'word_emb': nrm((VOCAB, H)),
        'pos_emb': nrm((MAX_POS, H)),
        'type_emb': nrm((TYPE_VOCAB, H)),
        'ln_e_g': jnp.ones((1, H), jnp.float32),
        'ln_e_b': jnp.zeros((1, H), jnp.float32),
        'wq': nrm((L, H, H)), 'bq': jnp.zeros((L, 1, H), jnp.float32),
        'wk': nrm((L, H, H)), 'bk': jnp.zeros((L, 1, H), jnp.float32),
        'wv': nrm((L, H, H)), 'bv': jnp.zeros((L, 1, H), jnp.float32),
        'wo': nrm((L, H, H)), 'bo': jnp.zeros((L, 1, H), jnp.float32),
        'ln1_g': jnp.ones((L, 1, H), jnp.float32),
        'ln1_b': jnp.zeros((L, 1, H), jnp.float32),
        'w1': nrm((L, H, F)), 'b1': jnp.zeros((L, 1, F), jnp.float32),
        'w2': nrm((L, F, H)), 'b2': jnp.zeros((L, 1, H), jnp.float32),
        'ln2_g': jnp.ones((L, 1, H), jnp.float32),
        'ln2_b': jnp.zeros((L, 1, H), jnp.float32),
    }
    return p


if __name__ == "__main__":
    key = jax.random.PRNGKey(0)
    k_param, k_ids = jax.random.split(key)
    params = init_params(k_param)
    fused = prepare_params(params)          # one-time packing / scale folding / bf16 cast

    event_ids = jax.random.randint(k_ids, (B, S), 0, VOCAB, dtype=jnp.int32)
    event_lengths = jnp.array([8, 5], dtype=jnp.int32)

    outputs = bert_encoder_pallas(event_ids, event_lengths, fused)    # (B, S, H)
    event_embedding = outputs[:, 0, :]                                # forward() return
    jax.block_until_ready(event_embedding)

    ref = bert_encoder_ref(event_ids, event_lengths, params)[:, 0, :]
    err = float(jnp.max(jnp.abs(event_embedding - ref)))
    # bf16 MXU operands (f32 accumulation / f32 LN & softmax): observed error is
    # ~1e-3; in pure-f32 mode this bound would be ~1e-4.
    assert err < 5e-3, f"max abs err vs reference: {err}"

    print("KERNEL_OK")
</pallas_src>

<mosaic_0001>
module attributes {stable_mosaic.version = 11 : i64} {
  func.func @event_encoder_kernel(%arg0: memref<18x1xi32, #tpu.memory_space<vmem>>, %arg1: memref<152x32xf32, #tpu.memory_space<vmem>>, %arg2: memref<2x32x192xbf16, #tpu.memory_space<vmem>>, %arg3: memref<2x64x32xbf16, #tpu.memory_space<vmem>>, %arg4: memref<2x8x96xf32, #tpu.memory_space<vmem>>, %arg5: memref<2x8x32xf32, #tpu.memory_space<vmem>>) attributes {dimension_semantics = [], scalar_prefetch = 0 : i64, scratch_operands = 0 : i64, tpu.core_type = #tpu.core_type<tc>} {
    %c0 = arith.constant 0 : index
    %c0_0 = arith.constant 0 : index
    %0 = vector.load %arg0[%c0, %c0_0] : memref<18x1xi32, #tpu.memory_space<vmem>>, vector<16x1xi32>
    %1 = tpu.iota {dimensions = array<i32: 1>} : vector<16x128xi32>
    %2 = vector.broadcast %0 : vector<16x1xi32> to vector<16x128xi32>
    %3 = arith.cmpi eq, %1, %2 : vector<16x128xi32>
    %4 = arith.extui %3 : vector<16x128xi1> to vector<16x128xi32>
    %5 = arith.sitofp %4 : vector<16x128xi32> to vector<16x128xf32>
    %c0_1 = arith.constant 0 : index
    %c0_2 = arith.constant 0 : index
    %6 = vector.load %arg1[%c0_1, %c0_2] : memref<152x32xf32, #tpu.memory_space<vmem>>, vector<128x32xf32>
    %cst = arith.constant dense<0.000000e+00> : vector<16x32xf32>
    %7 = tpu.matmul %5, %6, %cst {dimension_numbers = #tpu.dot_dimension_numbers<[1], [0], [0], [1], [0, 0, 1, 1], [], []>} : vector<16x128xf32>, vector<128x32xf32>, vector<16x32xf32> -> vector<16x32xf32>
    %c128 = arith.constant 128 : index
    %c0_3 = arith.constant 0 : index
    %8 = vector.load %arg1[%c128, %c0_3] : memref<152x32xf32, #tpu.memory_space<vmem>>, vector<8x32xf32>
    %9 = vector.shape_cast %7 : vector<16x32xf32> to vector<2x8x32xf32>
    %10 = vector.shape_cast %8 : vector<8x32xf32> to vector<1x8x32xf32>
    %11 = vector.broadcast %10 : vector<1x8x32xf32> to vector<2x8x32xf32>
    %12 = arith.addf %9, %11 : vector<2x8x32xf32>
    %13 = vector.shape_cast %12 : vector<2x8x32xf32> to vector<16x32xf32>
    %c136 = arith.constant 136 : index
    %c0_4 = arith.constant 0 : index
    %14 = vector.load %arg1[%c136, %c0_4] : memref<152x32xf32, #tpu.memory_space<vmem>>, vector<1x32xf32>
    %c144 = arith.constant 144 : index
    %c0_5 = arith.constant 0 : index
    %15 = vector.load %arg1[%c144, %c0_5] : memref<152x32xf32, #tpu.memory_space<vmem>>, vector<1x32xf32>
    %cst_6 = arith.constant dense<0.000000e+00> : vector<16xf32>
    %16 = vector.multi_reduction <add>, %13, %cst_6 [1] : vector<16x32xf32> to vector<16xf32>
    %17 = vector.shape_cast %16 : vector<16xf32> to vector<16x1xf32>
    %cst_7 = arith.constant 3.200000e+01 : f32
    %18 = vector.broadcast %cst_7 : f32 to vector<16x1xf32>
    %19 = arith.divf %17, %18 : vector<16x1xf32>
    %20 = vector.broadcast %19 : vector<16x1xf32> to vector<16x32xf32>
    %21 = arith.subf %13, %20 : vector<16x32xf32>
    %22 = arith.mulf %21, %21 : vector<16x32xf32>
    %cst_8 = arith.constant dense<0.000000e+00> : vector<16xf32>
    %23 = vector.multi_reduction <add>, %22, %cst_8 [1] : vector<16x32xf32> to vector<16xf32>
    %24 = vector.shape_cast %23 : vector<16xf32> to vector<16x1xf32>
    %cst_9 = arith.constant 3.200000e+01 : f32
    %25 = vector.broadcast %cst_9 : f32 to vector<16x1xf32>
    %26 = arith.divf %24, %25 : vector<16x1xf32>
    %27 = vector.broadcast %19 : vector<16x1xf32> to vector<16x32xf32>
    %28 = arith.subf %13, %27 : vector<16x32xf32>
    %cst_10 = arith.constant 9.99999996E-13 : f32
    %29 = vector.broadcast %cst_10 : f32 to vector<16x1xf32>
    %30 = arith.addf %26, %29 : vector<16x1xf32>
    %31 = math.rsqrt %30 : vector<16x1xf32>
    %32 = vector.broadcast %31 : vector<16x1xf32> to vector<16x32xf32>
    %33 = arith.mulf %28, %32 : vector<16x32xf32>
    %34 = vector.broadcast %14 : vector<1x32xf32> to vector<16x32xf32>
    %35 = arith.mulf %33, %34 : vector<16x32xf32>
    %36 = vector.broadcast %15 : vector<1x32xf32> to vector<16x32xf32>
    %37 = arith.addf %35, %36 : vector<16x32xf32>
    %c16 = arith.constant 16 : index
    %c0_11 = arith.constant 0 : index
    %38 = vector.load %arg0[%c16, %c0_11] : memref<18x1xi32, #tpu.memory_space<vmem>>, vector<2x1xi32>
    %39 = vector.shape_cast %38 : vector<2x1xi32> to vector<2x1x1xi32>
    %40 = tpu.iota {dimensions = array<i32: 2>} : vector<2x1x8xi32>
    %41 = vector.broadcast %39 : vector<2x1x1xi32> to vector<2x1x8xi32>
    %42 = arith.cmpi slt, %40, %41 : vector<2x1x8xi32>
    %cst_12 = arith.constant 0.000000e+00 : f32
    %cst_13 = arith.constant -1.000000e+09 : f32
    %43 = vector.broadcast %cst_12 : f32 to vector<2x1x8xf32>
    %44 = vector.broadcast %cst_13 : f32 to vector<2x1x8xf32>
    %45 = arith.select %42, %43, %44 : vector<2x1x8xi1>, vector<2x1x8xf32>
    %46 = vector.shape_cast %45 : vector<2x1x8xf32> to vector<2x1x8xf32>
    %47 = vector.broadcast %46 : vector<2x1x8xf32> to vector<2x32x8xf32>
    %48 = vector.shape_cast %47 : vector<2x32x8xf32> to vector<8x8x8xf32>
    %c0_14 = arith.constant 0 : index
    %c0_15 = arith.constant 0 : index
    %c0_16 = arith.constant 0 : index
    %49 = vector.load %arg2[%c0_14, %c0_15, %c0_16] : memref<2x32x192xbf16, #tpu.memory_space<vmem>>, vector<1x32x192xbf16>
    %50 = vector.shape_cast %49 : vector<1x32x192xbf16> to vector<32x192xbf16>
    %c0_17 = arith.constant 0 : index
    %c0_18 = arith.constant 0 : index
    %c0_19 = arith.constant 0 : index
    %51 = vector.load %arg4[%c0_17, %c0_18, %c0_19] : memref<2x8x96xf32, #tpu.memory_space<vmem>>, vector<1x8x96xf32>
    %52 = vector.shape_cast %51 : vector<1x8x96xf32> to vector<8x96xf32>
    %c0_20 = arith.constant 0 : index
    %c0_21 = arith.constant 0 : index
    %c0_22 = arith.constant 0 : index
    %53 = vector.load %arg3[%c0_20, %c0_21, %c0_22] : memref<2x64x32xbf16, #tpu.memory_space<vmem>>, vector<1x64x32xbf16>
    %54 = vector.shape_cast %53 : vector<1x64x32xbf16> to vector<64x32xbf16>
    %55 = arith.truncf %37 : vector<16x32xf32> to vector<16x32xbf16>
    %56 = vector.extract_strided_slice %50 {offsets = [0, 0], sizes = [32, 96], strides = [1, 1]} : vector<32x192xbf16> to vector<32x96xbf16>
    %cst_23 = arith.constant dense<0.000000e+00> : vector<16x96xf32>
    %57 = tpu.matmul %55, %56, %cst_23 {dimension_numbers = #tpu.dot_dimension_numbers<[1], [0], [0], [1], [0, 0, 1, 1], [], []>} : vector<16x32xbf16>, vector<32x96xbf16>, vector<16x96xf32> -> vector<16x96xf32>
    %58 = vector.extract_strided_slice %52 {offsets = [0, 0], sizes = [1, 96], strides = [1, 1]} : vector<8x96xf32> to vector<1x96xf32>
    %59 = vector.broadcast %58 : vector<1x96xf32> to vector<16x96xf32>
    %60 = arith.addf %57, %59 : vector<16x96xf32>
    %61 = vector.extract_strided_slice %60 {offsets = [0, 0], sizes = [16, 32], strides = [1, 1]} : vector<16x96xf32> to vector<16x32xf32>
    %62 = vector.extract_strided_slice %61 {offsets = [0, 0], sizes = [16, 8], strides = [1, 1]} : vector<16x32xf32> to vector<16x8xf32>
    %63 = vector.shape_cast %62 : vector<16x8xf32> to vector<2x1x8x8xf32>
    %64 = vector.extract_strided_slice %61 {offsets = [0, 8], sizes = [16, 8], strides = [1, 1]} : vector<16x32xf32> to vector<16x8xf32>
    %65 = vector.shape_cast %64 : vector<16x8xf32> to vector<2x1x8x8xf32>
    %66 = vector.extract_strided_slice %61 {offsets = [0, 16], sizes = [16, 8], strides = [1, 1]} : vector<16x32xf32> to vector<16x8xf32>
    %67 = vector.shape_cast %66 : vector<16x8xf32> to vector<2x1x8x8xf32>
    %68 = vector.extract_strided_slice %61 {offsets = [0, 24], sizes = [16, 8], strides = [1, 1]} : vector<16x32xf32> to vector<16x8xf32>
    %69 = vector.shape_cast %68 : vector<16x8xf32> to vector<2x1x8x8xf32>
    %70 = tpu.concatenate %63, %65, %67, %69 in 1 : vector<2x1x8x8xf32>, vector<2x1x8x8xf32>, vector<2x1x8x8xf32>, vector<2x1x8x8xf32> -> vector<2x4x8x8xf32>
    %71 = vector.shape_cast %70 : vector<2x4x8x8xf32> to vector<8x8x8xf32>
    %72 = arith.truncf %71 : vector<8x8x8xf32> to vector<8x8x8xbf16>
    %73 = vector.extract_strided_slice %60 {offsets = [0, 32], sizes = [16, 32], strides = [1, 1]} : vector<16x96xf32> to vector<16x32xf32>
    %74 = vector.extract_strided_slice %73 {offsets = [0, 0], sizes = [16, 8], strides = [1, 1]} : vector<16x32xf32> to vector<16x8xf32>
    %75 = vector.shape_cast %74 : vector<16x8xf32> to vector<2x1x8x8xf32>
    %76 = vector.extract_strided_slice %73 {offsets = [0, 8], sizes = [16, 8], strides = [1, 1]} : vector<16x32xf32> to vector<16x8xf32>
    %77 = vector.shape_cast %76 : vector<16x8xf32> to vector<2x1x8x8xf32>
    %78 = vector.extract_strided_slice %73 {offsets = [0, 16], sizes = [16, 8], strides = [1, 1]} : vector<16x32xf32> to vector<16x8xf32>
    %79 = vector.shape_cast %78 : vector<16x8xf32> to vector<2x1x8x8xf32>
    %80 = vector.extract_strided_slice %73 {offsets = [0, 24], sizes = [16, 8], strides = [1, 1]} : vector<16x32xf32> to vector<16x8xf32>
    %81 = vector.shape_cast %80 : vector<16x8xf32> to vector<2x1x8x8xf32>
    %82 = tpu.concatenate %75, %77, %79, %81 in 1 : vector<2x1x8x8xf32>, vector<2x1x8x8xf32>, vector<2x1x8x8xf32>, vector<2x1x8x8xf32> -> vector<2x4x8x8xf32>
    %83 = vector.shape_cast %82 : vector<2x4x8x8xf32> to vector<8x8x8xf32>
    %84 = arith.truncf %83 : vector<8x8x8xf32> to vector<8x8x8xbf16>
    %85 = vector.extract_strided_slice %60 {offsets = [0, 64], sizes = [16, 32], strides = [1, 1]} : vector<16x96xf32> to vector<16x32xf32>
    %86 = vector.extract_strided_slice %85 {offsets = [0, 0], sizes = [16, 8], strides = [1, 1]} : vector<16x32xf32> to vector<16x8xf32>
    %87 = vector.shape_cast %86 : vector<16x8xf32> to vector<2x1x8x8xf32>
    %88 = vector.extract_strided_slice %85 {offsets = [0, 8], sizes = [16, 8], strides = [1, 1]} : vector<16x32xf32> to vector<16x8xf32>
    %89 = vector.shape_cast %88 : vector<16x8xf32> to vector<2x1x8x8xf32>
    %90 = vector.extract_strided_slice %85 {offsets = [0, 16], sizes = [16, 8], strides = [1, 1]} : vector<16x32xf32> to vector<16x8xf32>
    %91 = vector.shape_cast %90 : vector<16x8xf32> to vector<2x1x8x8xf32>
    %92 = vector.extract_strided_slice %85 {offsets = [0, 24], sizes = [16, 8], strides = [1, 1]} : vector<16x32xf32> to vector<16x8xf32>
    %93 = vector.shape_cast %92 : vector<16x8xf32> to vector<2x1x8x8xf32>
    %94 = tpu.concatenate %87, %89, %91, %93 in 1 : vector<2x1x8x8xf32>, vector<2x1x8x8xf32>, vector<2x1x8x8xf32>, vector<2x1x8x8xf32> -> vector<2x4x8x8xf32>
    %95 = vector.shape_cast %94 : vector<2x4x8x8xf32> to vector<8x8x8xf32>
    %96 = arith.truncf %95 : vector<8x8x8xf32> to vector<8x8x8xbf16>
    "tpu.trace_start"() <{level = 10 : i32, message = "bqd,bkd->bqk"}> : () -> ()
    %cst_24 = arith.constant dense<0.000000e+00> : vector<8x8x8xf32>
    %97 = tpu.matmul %72, %84, %cst_24 {dimension_numbers = #tpu.dot_dimension_numbers<[2], [2], [1], [1], [0, 0, 0, 1, 1, 1], [0], [0]>} : vector<8x8x8xbf16>, vector<8x8x8xbf16>, vector<8x8x8xf32> -> vector<8x8x8xf32>
    "tpu.trace_stop"() : () -> ()
    %98 = arith.addf %97, %48 : vector<8x8x8xf32>
    %cst_25 = arith.constant dense<0xFF800000> : vector<8x8xf32>
    %99 = vector.multi_reduction <maximumf>, %98, %cst_25 [2] : vector<8x8x8xf32> to vector<8x8xf32>
    %100 = vector.shape_cast %99 : vector<8x8xf32> to vector<8x8x1xf32>
    %101 = vector.broadcast %100 : vector<8x8x1xf32> to vector<8x8x8xf32>
    %102 = arith.subf %98, %101 : vector<8x8x8xf32>
    %103 = math.exp %102 : vector<8x8x8xf32>
    %cst_26 = arith.constant dense<0.000000e+00> : vector<8x8xf32>
    %104 = vector.multi_reduction <add>, %103, %cst_26 [2] : vector<8x8x8xf32> to vector<8x8xf32>
    %105 = vector.shape_cast %104 : vector<8x8xf32> to vector<8x8x1xf32>
    %106 = tpu.reciprocal %105 {approx = true} : vector<8x8x1xf32> -> vector<8x8x1xf32>
    %107 = vector.broadcast %106 : vector<8x8x1xf32> to vector<8x8x8xf32>
    %108 = arith.mulf %103, %107 : vector<8x8x8xf32>
    %109 = arith.truncf %108 : vector<8x8x8xf32> to vector<8x8x8xbf16>
    "tpu.trace_start"() <{level = 10 : i32, message = "bqk,bkd->bqd"}> : () -> ()
    %cst_27 = arith.constant dense<0.000000e+00> : vector<8x8x8xf32>
    %110 = tpu.matmul %109, %96, %cst_27 {dimension_numbers = #tpu.dot_dimension_numbers<[2], [1], [1], [2], [0, 0, 0, 1, 1, 2], [0], [0]>} : vector<8x8x8xbf16>, vector<8x8x8xbf16>, vector<8x8x8xf32> -> vector<8x8x8xf32>
    "tpu.trace_stop"() : () -> ()
    %111 = vector.shape_cast %110 : vector<8x8x8xf32> to vector<2x4x8x8xf32>
    %112 = vector.extract_strided_slice %111 {offsets = [0, 0, 0, 0], sizes = [2, 1, 8, 8], strides = [1, 1, 1, 1]} : vector<2x4x8x8xf32> to vector<2x1x8x8xf32>
    %113 = vector.shape_cast %112 : vector<2x1x8x8xf32> to vector<2x8x8xf32>
    %114 = vector.extract_strided_slice %111 {offsets = [0, 1, 0, 0], sizes = [2, 1, 8, 8], strides = [1, 1, 1, 1]} : vector<2x4x8x8xf32> to vector<2x1x8x8xf32>
    %115 = vector.shape_cast %114 : vector<2x1x8x8xf32> to vector<2x8x8xf32>
    %116 = vector.extract_strided_slice %111 {offsets = [0, 2, 0, 0], sizes = [2, 1, 8, 8], strides = [1, 1, 1, 1]} : vector<2x4x8x8xf32> to vector<2x1x8x8xf32>
    %117 = vector.shape_cast %116 : vector<2x1x8x8xf32> to vector<2x8x8xf32>
    %118 = vector.extract_strided_slice %111 {offsets = [0, 3, 0, 0], sizes = [2, 1, 8, 8], strides = [1, 1, 1, 1]} : vector<2x4x8x8xf32> to vector<2x1x8x8xf32>
    %119 = vector.shape_cast %118 : vector<2x1x8x8xf32> to vector<2x8x8xf32>
    %120 = tpu.concatenate %113, %115, %117, %119 in 2 : vector<2x8x8xf32>, vector<2x8x8xf32>, vector<2x8x8xf32>, vector<2x8x8xf32> -> vector<2x8x32xf32>
    %121 = vector.shape_cast %120 : vector<2x8x32xf32> to vector<16x32xf32>
    %122 = arith.truncf %121 : vector<16x32xf32> to vector<16x32xbf16>
    %123 = vector.extract_strided_slice %50 {offsets = [0, 96], sizes = [32, 32], strides = [1, 1]} : vector<32x192xbf16> to vector<32x32xbf16>
    %cst_28 = arith.constant dense<0.000000e+00> : vector<16x32xf32>
    %124 = tpu.matmul %122, %123, %cst_28 {dimension_numbers = #tpu.dot_dimension_numbers<[1], [0], [0], [1], [0, 0, 1, 1], [], []>} : vector<16x32xbf16>, vector<32x32xbf16>, vector<16x32xf32> -> vector<16x32xf32>
    %125 = vector.extract_strided_slice %52 {offsets = [1, 0], sizes = [1, 32], strides = [1, 1]} : vector<8x96xf32> to vector<1x32xf32>
    %126 = vector.broadcast %125 : vector<1x32xf32> to vector<16x32xf32>
    %127 = arith.addf %124, %126 : vector<16x32xf32>
    %128 = arith.addf %37, %127 : vector<16x32xf32>
    %129 = vector.extract_strided_slice %52 {offsets = [4, 0], sizes = [1, 32], strides = [1, 1]} : vector<8x96xf32> to vector<1x32xf32>
    %130 = vector.extract_strided_slice %52 {offsets = [5, 0], sizes = [1, 32], strides = [1, 1]} : vector<8x96xf32> to vector<1x32xf32>
    %cst_29 = arith.constant dense<0.000000e+00> : vector<16xf32>
    %131 = vector.multi_reduction <add>, %128, %cst_29 [1] : vector<16x32xf32> to vector<16xf32>
    %132 = vector.shape_cast %131 : vector<16xf32> to vector<16x1xf32>
    %cst_30 = arith.constant 3.200000e+01 : f32
    %133 = vector.broadcast %cst_30 : f32 to vector<16x1xf32>
    %134 = arith.divf %132, %133 : vector<16x1xf32>
    %135 = vector.broadcast %134 : vector<16x1xf32> to vector<16x32xf32>
    %136 = arith.subf %128, %135 : vector<16x32xf32>
    %137 = arith.mulf %136, %136 : vector<16x32xf32>
    %cst_31 = arith.constant dense<0.000000e+00> : vector<16xf32>
    %138 = vector.multi_reduction <add>, %137, %cst_31 [1] : vector<16x32xf32> to vector<16xf32>
    %139 = vector.shape_cast %138 : vector<16xf32> to vector<16x1xf32>
    %cst_32 = arith.constant 3.200000e+01 : f32
    %140 = vector.broadcast %cst_32 : f32 to vector<16x1xf32>
    %141 = arith.divf %139, %140 : vector<16x1xf32>
    %142 = vector.broadcast %134 : vector<16x1xf32> to vector<16x32xf32>
    %143 = arith.subf %128, %142 : vector<16x32xf32>
    %cst_33 = arith.constant 9.99999996E-13 : f32
    %144 = vector.broadcast %cst_33 : f32 to vector<16x1xf32>
    %145 = arith.addf %141, %144 : vector<16x1xf32>
    %146 = math.rsqrt %145 : vector<16x1xf32>
    %147 = vector.broadcast %146 : vector<16x1xf32> to vector<16x32xf32>
    %148 = arith.mulf %143, %147 : vector<16x32xf32>
    %149 = vector.broadcast %129 : vector<1x32xf32> to vector<16x32xf32>
    %150 = arith.mulf %148, %149 : vector<16x32xf32>
    %151 = vector.broadcast %130 : vector<1x32xf32> to vector<16x32xf32>
    %152 = arith.addf %150, %151 : vector<16x32xf32>
    %153 = arith.truncf %152 : vector<16x32xf32> to vector<16x32xbf16>
    %154 = vector.extract_strided_slice %50 {offsets = [0, 128], sizes = [32, 64], strides = [1, 1]} : vector<32x192xbf16> to vector<32x64xbf16>
    %cst_34 = arith.constant dense<0.000000e+00> : vector<16x64xf32>
    %155 = tpu.matmul %153, %154, %cst_34 {dimension_numbers = #tpu.dot_dimension_numbers<[1], [0], [0], [1], [0, 0, 1, 1], [], []>} : vector<16x32xbf16>, vector<32x64xbf16>, vector<16x64xf32> -> vector<16x64xf32>
    %156 = vector.extract_strided_slice %52 {offsets = [2, 0], sizes = [1, 64], strides = [1, 1]} : vector<8x96xf32> to vector<1x64xf32>
    %157 = vector.broadcast %156 : vector<1x64xf32> to vector<16x64xf32>
    %158 = arith.addf %155, %157 : vector<16x64xf32>
    %cst_35 = arith.constant 5.000000e-01 : f32
    %159 = vector.broadcast %cst_35 : f32 to vector<16x64xf32>
    %160 = arith.mulf %159, %158 : vector<16x64xf32>
    %cst_36 = arith.constant 4.471500e-02 : f32
    %161 = vector.broadcast %cst_36 : f32 to vector<16x64xf32>
    %162 = arith.mulf %161, %158 : vector<16x64xf32>
    %163 = arith.mulf %162, %158 : vector<16x64xf32>
    %164 = arith.mulf %163, %158 : vector<16x64xf32>
    %165 = arith.addf %158, %164 : vector<16x64xf32>
    %cst_37 = arith.constant 0.797884583 : f32
    %166 = vector.broadcast %cst_37 : f32 to vector<16x64xf32>
    %167 = arith.mulf %166, %165 : vector<16x64xf32>
    %168 = math.tanh %167 : vector<16x64xf32>
    %cst_38 = arith.constant 1.000000e+00 : f32
    %169 = vector.broadcast %cst_38 : f32 to vector<16x64xf32>
    %170 = arith.addf %169, %168 : vector<16x64xf32>
    %171 = arith.mulf %160, %170 : vector<16x64xf32>
    %172 = arith.truncf %171 : vector<16x64xf32> to vector<16x64xbf16>
    %cst_39 = arith.constant dense<0.000000e+00> : vector<16x32xf32>
    %173 = tpu.matmul %172, %54, %cst_39 {dimension_numbers = #tpu.dot_dimension_numbers<[1], [0], [0], [1], [0, 0, 1, 1], [], []>} : vector<16x64xbf16>, vector<64x32xbf16>, vector<16x32xf32> -> vector<16x32xf32>
    %174 = vector.extract_strided_slice %52 {offsets = [3, 0], sizes = [1, 32], strides = [1, 1]} : vector<8x96xf32> to vector<1x32xf32>
    %175 = vector.broadcast %174 : vector<1x32xf32> to vector<16x32xf32>
    %176 = arith.addf %173, %175 : vector<16x32xf32>
    %177 = arith.addf %152, %176 : vector<16x32xf32>
    %178 = vector.extract_strided_slice %52 {offsets = [6, 0], sizes = [1, 32], strides = [1, 1]} : vector<8x96xf32> to vector<1x32xf32>
    %179 = vector.extract_strided_slice %52 {offsets = [7, 0], sizes = [1, 32], strides = [1, 1]} : vector<8x96xf32> to vector<1x32xf32>
    %cst_40 = arith.constant dense<0.000000e+00> : vector<16xf32>
    %180 = vector.multi_reduction <add>, %177, %cst_40 [1] : vector<16x32xf32> to vector<16xf32>
    %181 = vector.shape_cast %180 : vector<16xf32> to vector<16x1xf32>
    %cst_41 = arith.constant 3.200000e+01 : f32
    %182 = vector.broadcast %cst_41 : f32 to vector<16x1xf32>
    %183 = arith.divf %181, %182 : vector<16x1xf32>
    %184 = vector.broadcast %183 : vector<16x1xf32> to vector<16x32xf32>
    %185 = arith.subf %177, %184 : vector<16x32xf32>
    %186 = arith.mulf %185, %185 : vector<16x32xf32>
    %cst_42 = arith.constant dense<0.000000e+00> : vector<16xf32>
    %187 = vector.multi_reduction <add>, %186, %cst_42 [1] : vector<16x32xf32> to vector<16xf32>
    %188 = vector.shape_cast %187 : vector<16xf32> to vector<16x1xf32>
    %cst_43 = arith.constant 3.200000e+01 : f32
    %189 = vector.broadcast %cst_43 : f32 to vector<16x1xf32>
    %190 = arith.divf %188, %189 : vector<16x1xf32>
    %191 = vector.broadcast %183 : vector<16x1xf32> to vector<16x32xf32>
    %192 = arith.subf %177, %191 : vector<16x32xf32>
    %cst_44 = arith.constant 9.99999996E-13 : f32
    %193 = vector.broadcast %cst_44 : f32 to vector<16x1xf32>
    %194 = arith.addf %190, %193 : vector<16x1xf32>
    %195 = math.rsqrt %194 : vector<16x1xf32>
    %196 = vector.broadcast %195 : vector<16x1xf32> to vector<16x32xf32>
    %197 = arith.mulf %192, %196 : vector<16x32xf32>
    %198 = vector.broadcast %178 : vector<1x32xf32> to vector<16x32xf32>
    %199 = arith.mulf %197, %198 : vector<16x32xf32>
    %200 = vector.broadcast %179 : vector<1x32xf32> to vector<16x32xf32>
    %201 = arith.addf %199, %200 : vector<16x32xf32>
    %c1 = arith.constant 1 : index
    %c0_45 = arith.constant 0 : index
    %c0_46 = arith.constant 0 : index
    %202 = vector.load %arg2[%c1, %c0_45, %c0_46] : memref<2x32x192xbf16, #tpu.memory_space<vmem>>, vector<1x32x192xbf16>
    %203 = vector.shape_cast %202 : vector<1x32x192xbf16> to vector<32x192xbf16>
    %c1_47 = arith.constant 1 : index
    %c0_48 = arith.constant 0 : index
    %c0_49 = arith.constant 0 : index
    %204 = vector.load %arg4[%c1_47, %c0_48, %c0_49] : memref<2x8x96xf32, #tpu.memory_space<vmem>>, vector<1x8x96xf32>
    %205 = vector.shape_cast %204 : vector<1x8x96xf32> to vector<8x96xf32>
    %c1_50 = arith.constant 1 : index
    %c0_51 = arith.constant 0 : index
    %c0_52 = arith.constant 0 : index
    %206 = vector.load %arg3[%c1_50, %c0_51, %c0_52] : memref<2x64x32xbf16, #tpu.memory_space<vmem>>, vector<1x64x32xbf16>
    %207 = vector.shape_cast %206 : vector<1x64x32xbf16> to vector<64x32xbf16>
    %208 = arith.truncf %201 : vector<16x32xf32> to vector<16x32xbf16>
    %209 = vector.extract_strided_slice %203 {offsets = [0, 0], sizes = [32, 96], strides = [1, 1]} : vector<32x192xbf16> to vector<32x96xbf16>
    %cst_53 = arith.constant dense<0.000000e+00> : vector<16x96xf32>
    %210 = tpu.matmul %208, %209, %cst_53 {dimension_numbers = #tpu.dot_dimension_numbers<[1], [0], [0], [1], [0, 0, 1, 1], [], []>} : vector<16x32xbf16>, vector<32x96xbf16>, vector<16x96xf32> -> vector<16x96xf32>
    %211 = vector.extract_strided_slice %205 {offsets = [0, 0], sizes = [1, 96], strides = [1, 1]} : vector<8x96xf32> to vector<1x96xf32>
    %212 = vector.broadcast %211 : vector<1x96xf32> to vector<16x96xf32>
    %213 = arith.addf %210, %212 : vector<16x96xf32>
    %214 = vector.extract_strided_slice %213 {offsets = [0, 0], sizes = [16, 32], strides = [1, 1]} : vector<16x96xf32> to vector<16x32xf32>
    %215 = vector.extract_strided_slice %214 {offsets = [0, 0], sizes = [16, 8], strides = [1, 1]} : vector<16x32xf32> to vector<16x8xf32>
    %216 = vector.shape_cast %215 : vector<16x8xf32> to vector<2x1x8x8xf32>
    %217 = vector.extract_strided_slice %214 {offsets = [0, 8], sizes = [16, 8], strides = [1, 1]} : vector<16x32xf32> to vector<16x8xf32>
    %218 = vector.shape_cast %217 : vector<16x8xf32> to vector<2x1x8x8xf32>
    %219 = vector.extract_strided_slice %214 {offsets = [0, 16], sizes = [16, 8], strides = [1, 1]} : vector<16x32xf32> to vector<16x8xf32>
    %220 = vector.shape_cast %219 : vector<16x8xf32> to vector<2x1x8x8xf32>
    %221 = vector.extract_strided_slice %214 {offsets = [0, 24], sizes = [16, 8], strides = [1, 1]} : vector<16x32xf32> to vector<16x8xf32>
    %222 = vector.shape_cast %221 : vector<16x8xf32> to vector<2x1x8x8xf32>
    %223 = tpu.concatenate %216, %218, %220, %222 in 1 : vector<2x1x8x8xf32>, vector<2x1x8x8xf32>, vector<2x1x8x8xf32>, vector<2x1x8x8xf32> -> vector<2x4x8x8xf32>
    %224 = vector.shape_cast %223 : vector<2x4x8x8xf32> to vector<8x8x8xf32>
    %225 = arith.truncf %224 : vector<8x8x8xf32> to vector<8x8x8xbf16>
    %226 = vector.extract_strided_slice %213 {offsets = [0, 32], sizes = [16, 32], strides = [1, 1]} : vector<16x96xf32> to vector<16x32xf32>
    %227 = vector.extract_strided_slice %226 {offsets = [0, 0], sizes = [16, 8], strides = [1, 1]} : vector<16x32xf32> to vector<16x8xf32>
    %228 = vector.shape_cast %227 : vector<16x8xf32> to vector<2x1x8x8xf32>
    %229 = vector.extract_strided_slice %226 {offsets = [0, 8], sizes = [16, 8], strides = [1, 1]} : vector<16x32xf32> to vector<16x8xf32>
    %230 = vector.shape_cast %229 : vector<16x8xf32> to vector<2x1x8x8xf32>
    %231 = vector.extract_strided_slice %226 {offsets = [0, 16], sizes = [16, 8], strides = [1, 1]} : vector<16x32xf32> to vector<16x8xf32>
    %232 = vector.shape_cast %231 : vector<16x8xf32> to vector<2x1x8x8xf32>
    %233 = vector.extract_strided_slice %226 {offsets = [0, 24], sizes = [16, 8], strides = [1, 1]} : vector<16x32xf32> to vector<16x8xf32>
    %234 = vector.shape_cast %233 : vector<16x8xf32> to vector<2x1x8x8xf32>
    %235 = tpu.concatenate %228, %230, %232, %234 in 1 : vector<2x1x8x8xf32>, vector<2x1x8x8xf32>, vector<2x1x8x8xf32>, vector<2x1x8x8xf32> -> vector<2x4x8x8xf32>
    %236 = vector.shape_cast %235 : vector<2x4x8x8xf32> to vector<8x8x8xf32>
    %237 = arith.truncf %236 : vector<8x8x8xf32> to vector<8x8x8xbf16>
    %238 = vector.extract_strided_slice %213 {offsets = [0, 64], sizes = [16, 32], strides = [1, 1]} : vector<16x96xf32> to vector<16x32xf32>
    %239 = vector.extract_strided_slice %238 {offsets = [0, 0], sizes = [16, 8], strides = [1, 1]} : vector<16x32xf32> to vector<16x8xf32>
    %240 = vector.shape_cast %239 : vector<16x8xf32> to vector<2x1x8x8xf32>
    %241 = vector.extract_strided_slice %238 {offsets = [0, 8], sizes = [16, 8], strides = [1, 1]} : vector<16x32xf32> to vector<16x8xf32>
    %242 = vector.shape_cast %241 : vector<16x8xf32> to vector<2x1x8x8xf32>
    %243 = vector.extract_strided_slice %238 {offsets = [0, 16], sizes = [16, 8], strides = [1, 1]} : vector<16x32xf32> to vector<16x8xf32>
    %244 = vector.shape_cast %243 : vector<16x8xf32> to vector<2x1x8x8xf32>
    %245 = vector.extract_strided_slice %238 {offsets = [0, 24], sizes = [16, 8], strides = [1, 1]} : vector<16x32xf32> to vector<16x8xf32>
    %246 = vector.shape_cast %245 : vector<16x8xf32> to vector<2x1x8x8xf32>
    %247 = tpu.concatenate %240, %242, %244, %246 in 1 : vector<2x1x8x8xf32>, vector<2x1x8x8xf32>, vector<2x1x8x8xf32>, vector<2x1x8x8xf32> -> vector<2x4x8x8xf32>
    %248 = vector.shape_cast %247 : vector<2x4x8x8xf32> to vector<8x8x8xf32>
    %249 = arith.truncf %248 : vector<8x8x8xf32> to vector<8x8x8xbf16>
    "tpu.trace_start"() <{level = 10 : i32, message = "bqd,bkd->bqk"}> : () -> ()
    %cst_54 = arith.constant dense<0.000000e+00> : vector<8x8x8xf32>
    %250 = tpu.matmul %225, %237, %cst_54 {dimension_numbers = #tpu.dot_dimension_numbers<[2], [2], [1], [1], [0, 0, 0, 1, 1, 1], [0], [0]>} : vector<8x8x8xbf16>, vector<8x8x8xbf16>, vector<8x8x8xf32> -> vector<8x8x8xf32>
    "tpu.trace_stop"() : () -> ()
    %251 = arith.addf %250, %48 : vector<8x8x8xf32>
    %cst_55 = arith.constant dense<0xFF800000> : vector<8x8xf32>
    %252 = vector.multi_reduction <maximumf>, %251, %cst_55 [2] : vector<8x8x8xf32> to vector<8x8xf32>
    %253 = vector.shape_cast %252 : vector<8x8xf32> to vector<8x8x1xf32>
    %254 = vector.broadcast %253 : vector<8x8x1xf32> to vector<8x8x8xf32>
    %255 = arith.subf %251, %254 : vector<8x8x8xf32>
    %256 = math.exp %255 : vector<8x8x8xf32>
    %cst_56 = arith.constant dense<0.000000e+00> : vector<8x8xf32>
    %257 = vector.multi_reduction <add>, %256, %cst_56 [2] : vector<8x8x8xf32> to vector<8x8xf32>
    %258 = vector.shape_cast %257 : vector<8x8xf32> to vector<8x8x1xf32>
    %259 = tpu.reciprocal %258 {approx = true} : vector<8x8x1xf32> -> vector<8x8x1xf32>
    %260 = vector.broadcast %259 : vector<8x8x1xf32> to vector<8x8x8xf32>
    %261 = arith.mulf %256, %260 : vector<8x8x8xf32>
    %262 = arith.truncf %261 : vector<8x8x8xf32> to vector<8x8x8xbf16>
    "tpu.trace_start"() <{level = 10 : i32, message = "bqk,bkd->bqd"}> : () -> ()
    %cst_57 = arith.constant dense<0.000000e+00> : vector<8x8x8xf32>
    %263 = tpu.matmul %262, %249, %cst_57 {dimension_numbers = #tpu.dot_dimension_numbers<[2], [1], [1], [2], [0, 0, 0, 1, 1, 2], [0], [0]>} : vector<8x8x8xbf16>, vector<8x8x8xbf16>, vector<8x8x8xf32> -> vector<8x8x8xf32>
    "tpu.trace_stop"() : () -> ()
    %264 = vector.shape_cast %263 : vector<8x8x8xf32> to vector<2x4x8x8xf32>
    %265 = vector.extract_strided_slice %264 {offsets = [0, 0, 0, 0], sizes = [2, 1, 8, 8], strides = [1, 1, 1, 1]} : vector<2x4x8x8xf32> to vector<2x1x8x8xf32>
    %266 = vector.shape_cast %265 : vector<2x1x8x8xf32> to vector<2x8x8xf32>
    %267 = vector.extract_strided_slice %264 {offsets = [0, 1, 0, 0], sizes = [2, 1, 8, 8], strides = [1, 1, 1, 1]} : vector<2x4x8x8xf32> to vector<2x1x8x8xf32>
    %268 = vector.shape_cast %267 : vector<2x1x8x8xf32> to vector<2x8x8xf32>
    %269 = vector.extract_strided_slice %264 {offsets = [0, 2, 0, 0], sizes = [2, 1, 8, 8], strides = [1, 1, 1, 1]} : vector<2x4x8x8xf32> to vector<2x1x8x8xf32>
    %270 = vector.shape_cast %269 : vector<2x1x8x8xf32> to vector<2x8x8xf32>
    %271 = vector.extract_strided_slice %264 {offsets = [0, 3, 0, 0], sizes = [2, 1, 8, 8], strides = [1, 1, 1, 1]} : vector<2x4x8x8xf32> to vector<2x1x8x8xf32>
    %272 = vector.shape_cast %271 : vector<2x1x8x8xf32> to vector<2x8x8xf32>
    %273 = tpu.concatenate %266, %268, %270, %272 in 2 : vector<2x8x8xf32>, vector<2x8x8xf32>, vector<2x8x8xf32>, vector<2x8x8xf32> -> vector<2x8x32xf32>
    %274 = vector.shape_cast %273 : vector<2x8x32xf32> to vector<16x32xf32>
    %275 = arith.truncf %274 : vector<16x32xf32> to vector<16x32xbf16>
    %276 = vector.extract_strided_slice %203 {offsets = [0, 96], sizes = [32, 32], strides = [1, 1]} : vector<32x192xbf16> to vector<32x32xbf16>
    %cst_58 = arith.constant dense<0.000000e+00> : vector<16x32xf32>
    %277 = tpu.matmul %275, %276, %cst_58 {dimension_numbers = #tpu.dot_dimension_numbers<[1], [0], [0], [1], [0, 0, 1, 1], [], []>} : vector<16x32xbf16>, vector<32x32xbf16>, vector<16x32xf32> -> vector<16x32xf32>
    %278 = vector.extract_strided_slice %205 {offsets = [1, 0], sizes = [1, 32], strides = [1, 1]} : vector<8x96xf32> to vector<1x32xf32>
    %279 = vector.broadcast %278 : vector<1x32xf32> to vector<16x32xf32>
    %280 = arith.addf %277, %279 : vector<16x32xf32>
    %281 = arith.addf %201, %280 : vector<16x32xf32>
    %282 = vector.extract_strided_slice %205 {offsets = [4, 0], sizes = [1, 32], strides = [1, 1]} : vector<8x96xf32> to vector<1x32xf32>
    %283 = vector.extract_strided_slice %205 {offsets = [5, 0], sizes = [1, 32], strides = [1, 1]} : vector<8x96xf32> to vector<1x32xf32>
    %cst_59 = arith.constant dense<0.000000e+00> : vector<16xf32>
    %284 = vector.multi_reduction <add>, %281, %cst_59 [1] : vector<16x32xf32> to vector<16xf32>
    %285 = vector.shape_cast %284 : vector<16xf32> to vector<16x1xf32>
    %cst_60 = arith.constant 3.200000e+01 : f32
    %286 = vector.broadcast %cst_60 : f32 to vector<16x1xf32>
    %287 = arith.divf %285, %286 : vector<16x1xf32>
    %288 = vector.broadcast %287 : vector<16x1xf32> to vector<16x32xf32>
    %289 = arith.subf %281, %288 : vector<16x32xf32>
    %290 = arith.mulf %289, %289 : vector<16x32xf32>
    %cst_61 = arith.constant dense<0.000000e+00> : vector<16xf32>
    %291 = vector.multi_reduction <add>, %290, %cst_61 [1] : vector<16x32xf32> to vector<16xf32>
    %292 = vector.shape_cast %291 : vector<16xf32> to vector<16x1xf32>
    %cst_62 = arith.constant 3.200000e+01 : f32
    %293 = vector.broadcast %cst_62 : f32 to vector<16x1xf32>
    %294 = arith.divf %292, %293 : vector<16x1xf32>
    %295 = vector.broadcast %287 : vector<16x1xf32> to vector<16x32xf32>
    %296 = arith.subf %281, %295 : vector<16x32xf32>
    %cst_63 = arith.constant 9.99999996E-13 : f32
    %297 = vector.broadcast %cst_63 : f32 to vector<16x1xf32>
    %298 = arith.addf %294, %297 : vector<16x1xf32>
    %299 = math.rsqrt %298 : vector<16x1xf32>
    %300 = vector.broadcast %299 : vector<16x1xf32> to vector<16x32xf32>
    %301 = arith.mulf %296, %300 : vector<16x32xf32>
    %302 = vector.broadcast %282 : vector<1x32xf32> to vector<16x32xf32>
    %303 = arith.mulf %301, %302 : vector<16x32xf32>
    %304 = vector.broadcast %283 : vector<1x32xf32> to vector<16x32xf32>
    %305 = arith.addf %303, %304 : vector<16x32xf32>
    %306 = arith.truncf %305 : vector<16x32xf32> to vector<16x32xbf16>
    %307 = vector.extract_strided_slice %203 {offsets = [0, 128], sizes = [32, 64], strides = [1, 1]} : vector<32x192xbf16> to vector<32x64xbf16>
    %cst_64 = arith.constant dense<0.000000e+00> : vector<16x64xf32>
    %308 = tpu.matmul %306, %307, %cst_64 {dimension_numbers = #tpu.dot_dimension_numbers<[1], [0], [0], [1], [0, 0, 1, 1], [], []>} : vector<16x32xbf16>, vector<32x64xbf16>, vector<16x64xf32> -> vector<16x64xf32>
    %309 = vector.extract_strided_slice %205 {offsets = [2, 0], sizes = [1, 64], strides = [1, 1]} : vector<8x96xf32> to vector<1x64xf32>
    %310 = vector.broadcast %309 : vector<1x64xf32> to vector<16x64xf32>
    %311 = arith.addf %308, %310 : vector<16x64xf32>
    %cst_65 = arith.constant 5.000000e-01 : f32
    %312 = vector.broadcast %cst_65 : f32 to vector<16x64xf32>
    %313 = arith.mulf %312, %311 : vector<16x64xf32>
    %cst_66 = arith.constant 4.471500e-02 : f32
    %314 = vector.broadcast %cst_66 : f32 to vector<16x64xf32>
    %315 = arith.mulf %314, %311 : vector<16x64xf32>
    %316 = arith.mulf %315, %311 : vector<16x64xf32>
    %317 = arith.mulf %316, %311 : vector<16x64xf32>
    %318 = arith.addf %311, %317 : vector<16x64xf32>
    %cst_67 = arith.constant 0.797884583 : f32
    %319 = vector.broadcast %cst_67 : f32 to vector<16x64xf32>
    %320 = arith.mulf %319, %318 : vector<16x64xf32>
    %321 = math.tanh %320 : vector<16x64xf32>
    %cst_68 = arith.constant 1.000000e+00 : f32
    %322 = vector.broadcast %cst_68 : f32 to vector<16x64xf32>
    %323 = arith.addf %322, %321 : vector<16x64xf32>
    %324 = arith.mulf %313, %323 : vector<16x64xf32>
    %325 = arith.truncf %324 : vector<16x64xf32> to vector<16x64xbf16>
    %cst_69 = arith.constant dense<0.000000e+00> : vector<16x32xf32>
    %326 = tpu.matmul %325, %207, %cst_69 {dimension_numbers = #tpu.dot_dimension_numbers<[1], [0], [0], [1], [0, 0, 1, 1], [], []>} : vector<16x64xbf16>, vector<64x32xbf16>, vector<16x32xf32> -> vector<16x32xf32>
    %327 = vector.extract_strided_slice %205 {offsets = [3, 0], sizes = [1, 32], strides = [1, 1]} : vector<8x96xf32> to vector<1x32xf32>
    %328 = vector.broadcast %327 : vector<1x32xf32> to vector<16x32xf32>
    %329 = arith.addf %326, %328 : vector<16x32xf32>
    %330 = arith.addf %305, %329 : vector<16x32xf32>
    %331 = vector.extract_strided_slice %205 {offsets = [6, 0], sizes = [1, 32], strides = [1, 1]} : vector<8x96xf32> to vector<1x32xf32>
    %332 = vector.extract_strided_slice %205 {offsets = [7, 0], sizes = [1, 32], strides = [1, 1]} : vector<8x96xf32> to vector<1x32xf32>
    %cst_70 = arith.constant dense<0.000000e+00> : vector<16xf32>
    %333 = vector.multi_reduction <add>, %330, %cst_70 [1] : vector<16x32xf32> to vector<16xf32>
    %334 = vector.shape_cast %333 : vector<16xf32> to vector<16x1xf32>
    %cst_71 = arith.constant 3.200000e+01 : f32
    %335 = vector.broadcast %cst_71 : f32 to vector<16x1xf32>
    %336 = arith.divf %334, %335 : vector<16x1xf32>
    %337 = vector.broadcast %336 : vector<16x1xf32> to vector<16x32xf32>
    %338 = arith.subf %330, %337 : vector<16x32xf32>
    %339 = arith.mulf %338, %338 : vector<16x32xf32>
    %cst_72 = arith.constant dense<0.000000e+00> : vector<16xf32>
    %340 = vector.multi_reduction <add>, %339, %cst_72 [1] : vector<16x32xf32> to vector<16xf32>
    %341 = vector.shape_cast %340 : vector<16xf32> to vector<16x1xf32>
    %cst_73 = arith.constant 3.200000e+01 : f32
    %342 = vector.broadcast %cst_73 : f32 to vector<16x1xf32>
    %343 = arith.divf %341, %342 : vector<16x1xf32>
    %344 = vector.broadcast %336 : vector<16x1xf32> to vector<16x32xf32>
    %345 = arith.subf %330, %344 : vector<16x32xf32>
    %cst_74 = arith.constant 9.99999996E-13 : f32
    %346 = vector.broadcast %cst_74 : f32 to vector<16x1xf32>
    %347 = arith.addf %343, %346 : vector<16x1xf32>
    %348 = math.rsqrt %347 : vector<16x1xf32>
    %349 = vector.broadcast %348 : vector<16x1xf32> to vector<16x32xf32>
    %350 = arith.mulf %345, %349 : vector<16x32xf32>
    %351 = vector.broadcast %331 : vector<1x32xf32> to vector<16x32xf32>
    %352 = arith.mulf %350, %351 : vector<16x32xf32>
    %353 = vector.broadcast %332 : vector<1x32xf32> to vector<16x32xf32>
    %354 = arith.addf %352, %353 : vector<16x32xf32>
    %355 = vector.shape_cast %354 : vector<16x32xf32> to vector<2x8x32xf32>
    %c0_75 = arith.constant 0 : index
    %c0_76 = arith.constant 0 : index
    %c0_77 = arith.constant 0 : index
    %356 = vector.load %arg5[%c0_75, %c0_76, %c0_77] : memref<2x8x32xf32, #tpu.memory_space<vmem>>, vector<2x8x32xf32>
    tpu.vector_store %arg5[%c0_75, %c0_76, %c0_77], %355 {strides = array<i32>} : memref<2x8x32xf32, #tpu.memory_space<vmem>>, vector<2x8x32xf32>,
    return
  }
}

</mosaic_0001>

<llo_original>
// kernel: tpu_custom_call.1
$region0: #{tpu_custom_call.1}
  #allocation0 [shape = 'u32[]', space=smem, size = 0x4, offset = 0x4, fixed_abs, tag = 'smem constant byte address 0x4 - core index']
  #allocation1 [shape = 'u32[144,128]{1,0:T(1,128)}', space=vmem, size = 0x12000, scoped, tag = 'internal scratch']
  %s0 = inlined_call_operand.vmem [shape: s32[18,1], index: 0, kind: input, shape index: {}]
  %s1 = inlined_call_operand.vmem [shape: f32[152,32], index: 1, kind: input, shape index: {}]
  %s2 = inlined_call_operand.vmem [shape: bf16[2,32,192], index: 2, kind: input, shape index: {}]
  %s3 = inlined_call_operand.vmem [shape: bf16[2,64,32], index: 3, kind: input, shape index: {}]
  %s4 = inlined_call_operand.vmem [shape: f32[2,8,96], index: 4, kind: input, shape index: {}]
  %s5 = inlined_call_operand.hbm [shape: f32[2,8,32], index: 5, kind: output, shape index: {}]
  %s6 = sld [smem:[#allocation0]]
  $region30: #{tpu_custom_call.1} parent=0
    _
  %s8 = ssub.s32 1, %s6
  %s9 = scalar_select 0, %s8, %s6
  $region1: #{tpu_custom_call.1} parent=0
    #allocation2 [shape = 'u8[8192]{0}', space=vmem, size = 0x2000, scoped, tag = 'output window, operand 0, single buffered']
    #allocation3 [shape = 's32[1]{0}', space=sflag, size = 0x4, scoped, tag = 'scoped memory for tpu_custom_call.1']
    %10 = vsyncpa [#allocation3], 0
    // Predicated region
    $region2: #{tpu_custom_call.1} parent=1 // pred_check
      _
    $region3: #{tpu_custom_call.1} parent=1 // pred_check_branch
      %12 = sbr.rel (0) target = $region5
    $region4: #{tpu_custom_call.1} parent=1 // pred_region
      _
    $region5: #{tpu_custom_call.1} parent=1 // pred_fallthru
      _
    // Predicated region
    $region6: #{tpu_custom_call.1} parent=1 // pred_check
      _
    $region7: #{tpu_custom_call.1} parent=1 // pred_check_branch
      %14 = sbr.rel (0) target = $region9
    $region8: #{tpu_custom_call.1} parent=1 // pred_region
      _
    $region9: #{tpu_custom_call.1} parent=1 // pred_fallthru
      _
    // Predicated region
    $region10: #{tpu_custom_call.1} parent=1 // pred_check
      _
    $region11: #{tpu_custom_call.1} parent=1 // pred_check_branch
      %16 = sbr.rel (0) target = $region13
    $region12: #{tpu_custom_call.1} parent=1 // pred_region
      _
    $region13: #{tpu_custom_call.1} parent=1 // pred_fallthru
      _
    // Predicated region
    $region14: #{tpu_custom_call.1} parent=1 // pred_check
      _
    $region15: #{tpu_custom_call.1} parent=1 // pred_check_branch
      %18 = sbr.rel (0) target = $region17
    $region16: #{tpu_custom_call.1} parent=1 // pred_region
      _
    $region17: #{tpu_custom_call.1} parent=1 // pred_fallthru
      _
    // Predicated region
    $region18: #{tpu_custom_call.1} parent=1 // pred_check
      _
    $region19: #{tpu_custom_call.1} parent=1 // pred_check_branch
      %20 = sbr.rel (0) target = $region21
    $region20: #{tpu_custom_call.1} parent=1 // pred_region
      _
    $region21: #{tpu_custom_call.1} parent=1 // pred_fallthru
      _
    %v22 = vld [vmem:[%s0] sm:$0xff]
    %v23 = vld [vmem:[%s0 + $0x8] sm:$0xff]
    %v24 = vlaneseq
    %v25 = vand.u32 %v24, 127
    %26 = vset.pattern.permute.xlu0 0
    %27 = vperm.xlu0 %26, %v22
    %v28 = vpop.permute.xlu0 %27
    %29 = vset.pattern.permute.xlu0 0
    %30 = vperm.xlu0 %29, %v23
    %v31 = vpop.permute.xlu0 %30
    %vm32 = vcmp.eq.s32.totalorder %v25, %v28
    %vm33 = vcmp.eq.s32.totalorder %v25, %v31
    %v34 = vsel %vm32, 1, 0
    %v35 = vsel %vm33, 1, 0
    %v36 = vcvt.s32.f32 %v34
    %v37 = vcvt.s32.f32 %v35
    %v38 = vld [vmem:[%s1] sm:$0xff]
    %v39 = vld [vmem:[%s1 + $0x8] sm:$0xff]
    %v40 = vld [vmem:[%s1 + $0x10] sm:$0xff]
    %v41 = vld [vmem:[%s1 + $0x18] sm:$0xff]
    %v42 = vld [vmem:[%s1 + $0x20] sm:$0xff]
    %v43 = vld [vmem:[%s1 + $0x28] sm:$0xff]
    %v44 = vld [vmem:[%s1 + $0x30] sm:$0xff]
    %v45 = vld [vmem:[%s1 + $0x38] sm:$0xff]
    %v46 = vld [vmem:[%s1 + $0x40] sm:$0xff]
    %v47 = vld [vmem:[%s1 + $0x48] sm:$0xff]
    %v48 = vld [vmem:[%s1 + $0x50] sm:$0xff]
    %v49 = vld [vmem:[%s1 + $0x58] sm:$0xff]
    %v50 = vld [vmem:[%s1 + $0x60] sm:$0xff]
    %v51 = vld [vmem:[%s1 + $0x68] sm:$0xff]
    %v52 = vld [vmem:[%s1 + $0x70] sm:$0xff]
    %v53 = vld [vmem:[%s1 + $0x78] sm:$0xff]
    %54 = vmatprep.subr.mxu0 0.0
    %55 = vmatpush1.msra.mxu0 %v38
    %56 = vmatprep.subr.mxu0 0.0
    %57 = vmatpush1.msra.mxu0 %v39
    %58 = vmatprep.subr.mxu0 0.0
    %59 = vmatpush1.msra.mxu0 %v40
    %60 = vmatprep.subr.mxu0 0.0
    %61 = vmatpush1.msra.mxu0 %v41
    %62 = vmatprep.subr.mxu0 0.0
    %63 = vmatpush1.msra.mxu0 %v42
    %64 = vmatprep.subr.mxu0 0.0
    %65 = vmatpush1.msra.mxu0 %v43
    %66 = vmatprep.subr.mxu0 0.0
    %67 = vmatpush1.msra.mxu0 %v44
    %68 = vmatprep.subr.mxu0 0.0
    %69 = vmatpush1.msra.mxu0 %v45
    %70 = vmatprep.subr.mxu0 0.0
    %71 = vmatpush1.msra.mxu0 %v46
    %72 = vmatprep.subr.mxu0 0.0
    %73 = vmatpush1.msra.mxu0 %v47
    %74 = vmatprep.subr.mxu0 0.0
    %75 = vmatpush1.msra.mxu0 %v48
    %76 = vmatprep.subr.mxu0 0.0
    %77 = vmatpush1.msra.mxu0 %v49
    %78 = vmatprep.subr.mxu0 0.0
    %79 = vmatpush1.msra.mxu0 %v50
    %80 = vmatprep.subr.mxu0 0.0
    %81 = vmatpush1.msra.mxu0 %v51
    %82 = vmatprep.subr.mxu0 0.0
    %83 = vmatpush1.msra.mxu0 %v52
    %84 = vmatprep.subr.mxu0 0.0
    %85 = vmatpush1.msra.mxu0 %v53
    %86 = vmatprep.subr.mxu0 0.0
    %87 = vmatpush1.msra.mxu0 0.0
    %88 = vmatprep.subr.mxu0 0.0
    %89 = vmatpush1.msra.mxu0 0.0
    %90 = vmatprep.subr.mxu0 0.0
    %91 = vmatpush1.msra.mxu0 0.0
    %92 = vmatprep.subr.mxu0 0.0
    %93 = vmatpush1.msra.mxu0 0.0
    %94 = vmatprep.subr.mxu0 0.0
    %95 = vmatpush1.msra.mxu0 0.0
    %96 = vmatprep.subr.mxu0 0.0
    %97 = vmatpush1.msra.mxu0 0.0
    %98 = vmatprep.subr.mxu0 0.0
    %99 = vmatpush1.msra.mxu0 0.0
    %100 = vmatprep.subr.mxu0 0.0
    %101 = vmatpush1.msra.mxu0 0.0
    %102 = vmatprep.subr.mxu0 0.0
    %103 = vmatpush1.msra.mxu0 0.0
    %104 = vmatprep.subr.mxu0 0.0
    %105 = vmatpush1.msra.mxu0 0.0
    %106 = vmatprep.subr.mxu0 0.0
    %107 = vmatpush1.msra.mxu0 0.0
    %108 = vmatprep.subr.mxu0 0.0
    %109 = vmatpush1.msra.mxu0 0.0
    %110 = vmatprep.subr.mxu0 0.0
    %111 = vmatpush1.msra.mxu0 0.0
    %112 = vmatprep.subr.mxu0 0.0
    %113 = vmatpush1.msra.mxu0 0.0
    %114 = vmatprep.subr.mxu0 0.0
    %115 = vmatpush1.msra.mxu0 0.0
    %116 = vmatprep.subr.mxu0 0.0
    %117 = vmatpush1.msra.mxu0 0.0
    %118 = vmatprep.mubr.f32.mxu0 0.0
    %119 = vmatmul.mubr.f32.gmra.mrb[0].mxu0 %v36
    %v120 = vpop.f32.mrb[0].mxu0
    %v121 = vadd.f32 0.0, %v120
    %v122 = vpop.f32.mrb[0].mxu0
    %123 = vmatprep.mubr.f32.mxu0 0.0
    %124 = vmatmul.mubr.f32.gmra.mrb[0].mxu0 %v37
    %v125 = vpop.f32.mrb[0].mxu0
    %v126 = vadd.f32 0.0, %v125
    %v127 = vpop.f32.mrb[0].mxu0
    %128 = vdwg.mxu0
    %v129 = vld [vmem:[%s1 + $0x80] sm:$0xff]
    %v130 = vadd.f32 %v121, %v129
    %v131 = vadd.f32 %v126, %v129
    %v132 = vld [vmem:[%s1 + $0x88] sm:$0x1]
    %v133 = vld [vmem:[%s1 + $0x90] sm:$0x1]
    %vm134 = vcmask 261120
    %v135 = vsel %vm134, %v130, 0.0
    %136 = vadd.xlane.f32.xlu0 %v135
    %v137 = vpop.xlane.xlu0 %136
    %v138 = vsel %vm134, %v131, 0.0
    %139 = vadd.xlane.f32.xlu0 %v138
    %v140 = vpop.xlane.xlu0 %139
    %v141 = vrcp.pop 32.0
    %v142 = vmul.f32 %v137, %v141
    %v143 = vmul.f32 %v140, %v141
    %v144 = vsub.f32 %v130, %v142
    %v145 = vsub.f32 %v131, %v143
    %v146 = vmul.f32 %v144, %v144
    %v147 = vmul.f32 %v145, %v145
    %v148 = vsel %vm134, %v146, 0.0
    %149 = vadd.xlane.f32.xlu0 %v148
    %v150 = vpop.xlane.xlu0 %149
    %v151 = vsel %vm134, %v147, 0.0
    %152 = vadd.xlane.f32.xlu0 %v151
    %v153 = vpop.xlane.xlu0 %152
    %v154 = vmul.f32 %v150, %v141
    %v155 = vmul.f32 %v153, %v141
    %v156 = vadd.f32 %v154, 1e-12
    %v157 = vadd.f32 %v155, 1e-12
    %v158 = vrsqrt.pop %v156
    %v159 = vrsqrt.pop %v157
    %v160 = vmul.f32 %v144, %v158
    %v161 = vmul.f32 %v145, %v159
    %v162 = vlaneseq
    %v163 = vshrl.u32 %v162, 7
    %v164 = vsub.s32 0, %v163
    %v165 = vrot.slane %v132, %v164
    %v166 = vmul.f32 %v160, %v165
    %v167 = vmul.f32 %v161, %v165
    %v168 = vlaneseq
    %v169 = vshrl.u32 %v168, 7
    %v170 = vsub.s32 0, %v169
    %v171 = vrot.slane %v133, %v170
    %v172 = vadd.f32 %v166, %v171
    %v173 = vadd.f32 %v167, %v171
    %v174 = vld [vmem:[%s0 + $0x10] sm:$0x3]
    %v176 = vunpack.c.l.s4 1966171168
    %v177 = vunpack.c.0.s8 %v176
    %v178 = vlaneseq
    %v179 = vshrl.u32 %v178, 7
    %v180 = vsub.s32 %v177, %v179
    %v181 = vrot.slane %v174, %v180
    %v182 = vcombine.high %v181, %v181
    %v184 = vunpack.c.l.s4 1966171168
    %v185 = vunpack.c.0.s8 %v184
    %v186 = vlaneseq
    %v187 = vshrl.u32 %v186, 7
    %v188 = vsub.s32 %v185, %v187
    %v189 = vrot.slane %v181, %v188
    %v191 = vunpack.c.l.s4 1966171168
    %v192 = vunpack.c.0.s8 %v191
    %v193 = vlaneseq
    %v194 = vshrl.u32 %v193, 7
    %v195 = vsub.s32 %v192, %v194
    %v196 = vrot.slane %v182, %v195
    %197 = vset.pattern.permute.xlu0 0
    %198 = vperm.xlu0 %197, %v189
    %v199 = vpop.permute.xlu0 %198
    %v200 = vlaneseq
    %v201 = vshrl.u32 %v200, 7
    %v202 = vsub.s32 0, %v201
    %v203 = vrot.slane %v199, %v202
    %204 = vset.pattern.permute.xlu0 0
    %205 = vperm.xlu0 %204, %v196
    %v206 = vpop.permute.xlu0 %205
    %v207 = vlaneseq
    %v208 = vshrl.u32 %v207, 7
    %v209 = vsub.s32 0, %v208
    %v210 = vrot.slane %v206, %v209
    %vm211 = vcmp.lt.s32.totalorder %v25, %v203
    %vm212 = vcmp.lt.s32.totalorder %v25, %v210
    %v213 = vsel %vm211, 0.0, -1e+09
    %v214 = vsel %vm212, 0.0, -1e+09
    %v215 = vld [vmem:[%s2] sm:$0xff]
    %v216 = vld [vmem:[%s2 + $0x8] sm:$0xff]
    %v217 = vld [vmem:[%s2 + $0x10] sm:$0xff]
    %v218 = vld [vmem:[%s2 + $0x18] sm:$0xff]
    %v219 = vld [vmem:[%s4] sm:$0xff]
    %v220 = vld [vmem:[%s3] sm:$0xf]
    %v221 = vld [vmem:[%s3 + $0x4] sm:$0xf]
    %v222 = vld [vmem:[%s3 + $0x8] sm:$0xf]
    %v223 = vld [vmem:[%s3 + $0xc] sm:$0xf]
    %v224 = vld [vmem:[%s3 + $0x10] sm:$0xf]
    %v225 = vld [vmem:[%s3 + $0x14] sm:$0xf]
    %v226 = vld [vmem:[%s3 + $0x18] sm:$0xf]
    %v227 = vld [vmem:[%s3 + $0x1c] sm:$0xf]
    %v228 = vpack.c.bf16 %v173, %v172
    %v229 = vlaneseq
    %v230 = vshrl.u32 %v229, 7
    %v231 = vsub.s32 0, %v230
    %v232 = vrot.slane %v219, %v231
    %v237 = vunpack.c.l.b16 %v215
    %v238 = vunpack.c.l.b16 %v216
    %v239 = vunpack.c.l.b16 %v217
    %v240 = vunpack.c.l.b16 %v218
    %v241 = vpack.c.b16 %v238, %v237
    %v242 = vpack.c.b16 %v240, %v239
    %v246 = vsel %vm134, %v228, 0
    %248 = vmatprep.subr.bf16.mxu0 0
    %249 = vmatpush1.bf16.msra.mxu0 %v241
    %250 = vmatprep.subr.bf16.mxu0 0
    %251 = vmatpush1.bf16.msra.mxu0 %v242
    %252 = vmatprep.subr.bf16.mxu0 0
    %253 = vmatpush1.bf16.msra.mxu0 0
    %254 = vmatprep.subr.bf16.mxu0 0
    %255 = vmatpush1.bf16.msra.mxu0 0
    %256 = vmatprep.subr.bf16.mxu0 0
    %257 = vmatpush1.bf16.msra.mxu0 0
    %258 = vmatprep.subr.bf16.mxu0 0
    %259 = vmatpush1.bf16.msra.mxu0 0
    %260 = vmatprep.subr.bf16.mxu0 0
    %261 = vmatpush1.bf16.msra.mxu0 0
    %262 = vmatprep.subr.bf16.mxu0 0
    %263 = vmatpush1.bf16.msra.mxu0 0
    %264 = vmatprep.subr.bf16.mxu0 0
    %265 = vmatpush1.bf16.msra.mxu0 0
    %266 = vmatprep.subr.bf16.mxu0 0
    %267 = vmatpush1.bf16.msra.mxu0 0
    %268 = vmatprep.subr.bf16.mxu0 0
    %269 = vmatpush1.bf16.msra.mxu0 0
    %270 = vmatprep.subr.bf16.mxu0 0
    %271 = vmatpush1.bf16.msra.mxu0 0
    %272 = vmatprep.subr.bf16.mxu0 0
    %273 = vmatpush1.bf16.msra.mxu0 0
    %274 = vmatprep.subr.bf16.mxu0 0
    %275 = vmatpush1.bf16.msra.mxu0 0
    %276 = vmatprep.subr.bf16.mxu0 0
    %277 = vmatpush1.bf16.msra.mxu0 0
    %278 = vmatprep.subr.bf16.mxu0 0
    %279 = vmatpush1.bf16.msra.mxu0 0
    %280 = vmatprep.mubr.bf16.mxu0 0
    %281 = vmatmul.mubr.bf16.gmra.mrb[0].mxu0 %v246
    %v282 = vpop.f32.mrb[0].mxu0
    %v283 = vadd.f32 %v232, %v282
    %v284 = vpop.f32.mrb[0].mxu0
    %v285 = vpop.f32.mrb[0].mxu0
    %v286 = vadd.f32 %v232, %v285
    %v287 = vpop.f32.mrb[0].mxu0
    %288 = vdwg.mxu0
    %291 = vrot.lane.b32.xlu0 %v283, 120
    %v292 = vpop.permute.xlu0 %291
    %293 = vrot.lane.b32.xlu0 %v286, 120
    %v294 = vpop.permute.xlu0 %293
    %297 = vrot.lane.b32.xlu0 %v283, 112
    %v298 = vpop.permute.xlu0 %297
    %299 = vrot.lane.b32.xlu0 %v286, 112
    %v300 = vpop.permute.xlu0 %299
    %303 = vrot.lane.b32.xlu0 %v283, 104
    %v304 = vpop.permute.xlu0 %303
    %305 = vrot.lane.b32.xlu0 %v286, 104
    %v306 = vpop.permute.xlu0 %305
    %v309 = vpack.c.bf16 %v283, %v283
    %v310 = vpack.c.bf16 %v292, %v292
    %v311 = vpack.c.bf16 %v298, %v298
    %v312 = vpack.c.bf16 %v304, %v304
    %v313 = vpack.c.bf16 %v286, %v286
    %v314 = vpack.c.bf16 %v294, %v294
    %v315 = vpack.c.bf16 %v300, %v300
    %v316 = vpack.c.bf16 %v306, %v306
    %318 = vrot.lane.b32.xlu0 %v309, 96
    %v319 = vpop.permute.xlu0 %318
    %vm320 = vcmask 64512
    %v322 = vsel %vm320, %v309, 0
    %v325 = vsel %vm320, %v319, 0
    %327 = vmatprep.subr.bf16.mxu0 0
    %328 = vmatpush1.bf16.xpose.msra.mxu0 %v325
    %329 = vmatprep.subr.bf16.mxu0 0
    %330 = vmatpush1.bf16.xpose.msra.mxu0 0
    %331 = vmatprep.subr.bf16.mxu0 0
    %332 = vmatpush1.bf16.xpose.msra.mxu0 0
    %333 = vmatprep.subr.bf16.mxu0 0
    %334 = vmatpush1.bf16.xpose.msra.mxu0 0
    %335 = vmatprep.subr.bf16.mxu0 0
    %336 = vmatpush1.bf16.xpose.msra.mxu0 0
    %337 = vmatprep.subr.bf16.mxu0 0
    %338 = vmatpush1.bf16.xpose.msra.mxu0 0
    %339 = vmatprep.subr.bf16.mxu0 0
    %340 = vmatpush1.bf16.xpose.msra.mxu0 0
    %341 = vmatprep.subr.bf16.mxu0 0
    %342 = vmatpush1.bf16.xpose.msra.mxu0 0
    %343 = vmatprep.subr.bf16.mxu0 0
    %344 = vmatpush1.bf16.xpose.msra.mxu0 0
    %345 = vmatprep.subr.bf16.mxu0 0
    %346 = vmatpush1.bf16.xpose.msra.mxu0 0
    %347 = vmatprep.subr.bf16.mxu0 0
    %348 = vmatpush1.bf16.xpose.msra.mxu0 0
    %349 = vmatprep.subr.bf16.mxu0 0
    %350 = vmatpush1.bf16.xpose.msra.mxu0 0
    %351 = vmatprep.subr.bf16.mxu0 0
    %352 = vmatpush1.bf16.xpose.msra.mxu0 0
    %353 = vmatprep.subr.bf16.mxu0 0
    %354 = vmatpush1.bf16.xpose.msra.mxu0 0
    %355 = vmatprep.subr.bf16.mxu0 0
    %356 = vmatpush1.bf16.xpose.msra.mxu0 0
    %357 = vmatprep.subr.bf16.mxu0 0
    %358 = vmatpush1.bf16.xpose.msra.mxu0 0
    %359 = vmatprep.mubr.bf16.mxu0 0
    %360 = vmatmul.mubr.bf16.gmra.mrb[0].mxu0 %v322
    %v361 = vpop.f32.mrb[0].mxu0
    %v362 = vadd.f32 %v213, %v361
    %v363 = vpop.f32.mrb[0].mxu0
    %v364 = vpop.f32.mrb[0].mxu0
    %v365 = vpop.f32.mrb[0].mxu0
    %366 = vdwg.mxu0
    %368 = vrot.lane.b32.xlu0 %v310, 96
    %v369 = vpop.permute.xlu0 %368
    %v371 = vsel %vm320, %v310, 0
    %v374 = vsel %vm320, %v369, 0
    %376 = vmatprep.subr.bf16.mxu0 0
    %377 = vmatpush1.bf16.xpose.msra.mxu0 %v374
    %378 = vmatprep.subr.bf16.mxu0 0
    %379 = vmatpush1.bf16.xpose.msra.mxu0 0
    %380 = vmatprep.subr.bf16.mxu0 0
    %381 = vmatpush1.bf16.xpose.msra.mxu0 0
    %382 = vmatprep.subr.bf16.mxu0 0
    %383 = vmatpush1.bf16.xpose.msra.mxu0 0
    %384 = vmatprep.subr.bf16.mxu0 0
    %385 = vmatpush1.bf16.xpose.msra.mxu0 0
    %386 = vmatprep.subr.bf16.mxu0 0
    %387 = vmatpush1.bf16.xpose.msra.mxu0 0
    %388 = vmatprep.subr.bf16.mxu0 0
    %389 = vmatpush1.bf16.xpose.msra.mxu0 0
    %390 = vmatprep.subr.bf16.mxu0 0
    %391 = vmatpush1.bf16.xpose.msra.mxu0 0
    %392 = vmatprep.subr.bf16.mxu0 0
    %393 = vmatpush1.bf16.xpose.msra.mxu0 0
    %394 = vmatprep.subr.bf16.mxu0 0
    %395 = vmatpush1.bf16.xpose.msra.mxu0 0
    %396 = vmatprep.subr.bf16.mxu0 0
    %397 = vmatpush1.bf16.xpose.msra.mxu0 0
    %398 = vmatprep.subr.bf16.mxu0 0
    %399 = vmatpush1.bf16.xpose.msra.mxu0 0
    %400 = vmatprep.subr.bf16.mxu0 0
    %401 = vmatpush1.bf16.xpose.msra.mxu0 0
    %402 = vmatprep.subr.bf16.mxu0 0
    %403 = vmatpush1.bf16.xpose.msra.mxu0 0
    %404 = vmatprep.subr.bf16.mxu0 0
    %405 = vmatpush1.bf16.xpose.msra.mxu0 0
    %406 = vmatprep.subr.bf16.mxu0 0
    %407 = vmatpush1.bf16.xpose.msra.mxu0 0
    %408 = vmatprep.mubr.bf16.mxu0 0
    %409 = vmatmul.mubr.bf16.gmra.mrb[0].mxu0 %v371
    %v410 = vpop.f32.mrb[0].mxu0
    %v411 = vadd.f32 %v213, %v410
    %v412 = vpop.f32.mrb[0].mxu0
    %v413 = vpop.f32.mrb[0].mxu0
    %v414 = vpop.f32.mrb[0].mxu0
    %415 = vdwg.mxu0
    %417 = vrot.lane.b32.xlu0 %v311, 96
    %v418 = vpop.permute.xlu0 %417
    %v420 = vsel %vm320, %v311, 0
    %v423 = vsel %vm320, %v418, 0
    %425 = vmatprep.subr.bf16.mxu0 0
    %426 = vmatpush1.bf16.xpose.msra.mxu0 %v423
    %427 = vmatprep.subr.bf16.mxu0 0
    %428 = vmatpush1.bf16.xpose.msra.mxu0 0
    %429 = vmatprep.subr.bf16.mxu0 0
    %430 = vmatpush1.bf16.xpose.msra.mxu0 0
    %431 = vmatprep.subr.bf16.mxu0 0
    %432 = vmatpush1.bf16.xpose.msra.mxu0 0
    %433 = vmatprep.subr.bf16.mxu0 0
    %434 = vmatpush1.bf16.xpose.msra.mxu0 0
    %435 = vmatprep.subr.bf16.mxu0 0
    %436 = vmatpush1.bf16.xpose.msra.mxu0 0
    %437 = vmatprep.subr.bf16.mxu0 0
    %438 = vmatpush1.bf16.xpose.msra.mxu0 0
    %439 = vmatprep.subr.bf16.mxu0 0
    %440 = vmatpush1.bf16.xpose.msra.mxu0 0
    %441 = vmatprep.subr.bf16.mxu0 0
    %442 = vmatpush1.bf16.xpose.msra.mxu0 0
    %443 = vmatprep.subr.bf16.mxu0 0
    %444 = vmatpush1.bf16.xpose.msra.mxu0 0
    %445 = vmatprep.subr.bf16.mxu0 0
    %446 = vmatpush1.bf16.xpose.msra.mxu0 0
    %447 = vmatprep.subr.bf16.mxu0 0
    %448 = vmatpush1.bf16.xpose.msra.mxu0 0
    %449 = vmatprep.subr.bf16.mxu0 0
    %450 = vmatpush1.bf16.xpose.msra.mxu0 0
    %451 = vmatprep.subr.bf16.mxu0 0
    %452 = vmatpush1.bf16.xpose.msra.mxu0 0
    %453 = vmatprep.subr.bf16.mxu0 0
    %454 = vmatpush1.bf16.xpose.msra.mxu0 0
    %455 = vmatprep.subr.bf16.mxu0 0
    %456 = vmatpush1.bf16.xpose.msra.mxu0 0
    %457 = vmatprep.mubr.bf16.mxu0 0
    %458 = vmatmul.mubr.bf16.gmra.mrb[0].mxu0 %v420
    %v459 = vpop.f32.mrb[0].mxu0
    %v460 = vadd.f32 %v213, %v459
    %v461 = vpop.f32.mrb[0].mxu0
    %v462 = vpop.f32.mrb[0].mxu0
    %v463 = vpop.f32.mrb[0].mxu0
    %464 = vdwg.mxu0
    %466 = vrot.lane.b32.xlu0 %v312, 96
    %v467 = vpop.permute.xlu0 %466
    %v469 = vsel %vm320, %v312, 0
    %v472 = vsel %vm320, %v467, 0
    %474 = vmatprep.subr.bf16.mxu0 0
    %475 = vmatpush1.bf16.xpose.msra.mxu0 %v472
    %476 = vmatprep.subr.bf16.mxu0 0
    %477 = vmatpush1.bf16.xpose.msra.mxu0 0
    %478 = vmatprep.subr.bf16.mxu0 0
    %479 = vmatpush1.bf16.xpose.msra.mxu0 0
    %480 = vmatprep.subr.bf16.mxu0 0
    %481 = vmatpush1.bf16.xpose.msra.mxu0 0
    %482 = vmatprep.subr.bf16.mxu0 0
    %483 = vmatpush1.bf16.xpose.msra.mxu0 0
    %484 = vmatprep.subr.bf16.mxu0 0
    %485 = vmatpush1.bf16.xpose.msra.mxu0 0
    %486 = vmatprep.subr.bf16.mxu0 0
    %487 = vmatpush1.bf16.xpose.msra.mxu0 0
    %488 = vmatprep.subr.bf16.mxu0 0
    %489 = vmatpush1.bf16.xpose.msra.mxu0 0
    %490 = vmatprep.subr.bf16.mxu0 0
    %491 = vmatpush1.bf16.xpose.msra.mxu0 0
    %492 = vmatprep.subr.bf16.mxu0 0
    %493 = vmatpush1.bf16.xpose.msra.mxu0 0
    %494 = vmatprep.subr.bf16.mxu0 0
    %495 = vmatpush1.bf16.xpose.msra.mxu0 0
    %496 = vmatprep.subr.bf16.mxu0 0
    %497 = vmatpush1.bf16.xpose.msra.mxu0 0
    %498 = vmatprep.subr.bf16.mxu0 0
    %499 = vmatpush1.bf16.xpose.msra.mxu0 0
    %500 = vmatprep.subr.bf16.mxu0 0
    %501 = vmatpush1.bf16.xpose.msra.mxu0 0
    %502 = vmatprep.subr.bf16.mxu0 0
    %503 = vmatpush1.bf16.xpose.msra.mxu0 0
    %504 = vmatprep.subr.bf16.mxu0 0
    %505 = vmatpush1.bf16.xpose.msra.mxu0 0
    %506 = vmatprep.mubr.bf16.mxu0 0
    %507 = vmatmul.mubr.bf16.gmra.mrb[0].mxu0 %v469
    %v508 = vpop.f32.mrb[0].mxu0
    %v509 = vadd.f32 %v213, %v508
    %v510 = vpop.f32.mrb[0].mxu0
    %v511 = vpop.f32.mrb[0].mxu0
    %v512 = vpop.f32.mrb[0].mxu0
    %513 = vdwg.mxu0
    %515 = vrot.lane.b32.xlu0 %v313, 96
    %v516 = vpop.permute.xlu0 %515
    %v518 = vsel %vm320, %v313, 0
    %v521 = vsel %vm320, %v516, 0
    %523 = vmatprep.subr.bf16.mxu0 0
    %524 = vmatpush1.bf16.xpose.msra.mxu0 %v521
    %525 = vmatprep.subr.bf16.mxu0 0
    %526 = vmatpush1.bf16.xpose.msra.mxu0 0
    %527 = vmatprep.subr.bf16.mxu0 0
    %528 = vmatpush1.bf16.xpose.msra.mxu0 0
    %529 = vmatprep.subr.bf16.mxu0 0
    %530 = vmatpush1.bf16.xpose.msra.mxu0 0
    %531 = vmatprep.subr.bf16.mxu0 0
    %532 = vmatpush1.bf16.xpose.msra.mxu0 0
    %533 = vmatprep.subr.bf16.mxu0 0
    %534 = vmatpush1.bf16.xpose.msra.mxu0 0
    %535 = vmatprep.subr.bf16.mxu0 0
    %536 = vmatpush1.bf16.xpose.msra.mxu0 0
    %537 = vmatprep.subr.bf16.mxu0 0
    %538 = vmatpush1.bf16.xpose.msra.mxu0 0
    %539 = vmatprep.subr.bf16.mxu0 0
    %540 = vmatpush1.bf16.xpose.msra.mxu0 0
    %541 = vmatprep.subr.bf16.mxu0 0
    %542 = vmatpush1.bf16.xpose.msra.mxu0 0
    %543 = vmatprep.subr.bf16.mxu0 0
    %544 = vmatpush1.bf16.xpose.msra.mxu0 0
    %545 = vmatprep.subr.bf16.mxu0 0
    %546 = vmatpush1.bf16.xpose.msra.mxu0 0
    %547 = vmatprep.subr.bf16.mxu0 0
    %548 = vmatpush1.bf16.xpose.msra.mxu0 0
    %549 = vmatprep.subr.bf16.mxu0 0
    %550 = vmatpush1.bf16.xpose.msra.mxu0 0
    %551 = vmatprep.subr.bf16.mxu0 0
    %552 = vmatpush1.bf16.xpose.msra.mxu0 0
    %553 = vmatprep.subr.bf16.mxu0 0
    %554 = vmatpush1.bf16.xpose.msra.mxu0 0
    %555 = vmatprep.mubr.bf16.mxu0 0
    %556 = vmatmul.mubr.bf16.gmra.mrb[0].mxu0 %v518
    %v557 = vpop.f32.mrb[0].mxu0
    %v558 = vadd.f32 %v214, %v557
    %v559 = vpop.f32.mrb[0].mxu0
    %v560 = vpop.f32.mrb[0].mxu0
    %v561 = vpop.f32.mrb[0].mxu0
    %562 = vdwg.mxu0
    %564 = vrot.lane.b32.xlu0 %v314, 96
    %v565 = vpop.permute.xlu0 %564
    %v567 = vsel %vm320, %v314, 0
    %v570 = vsel %vm320, %v565, 0
    %572 = vmatprep.subr.bf16.mxu0 0
    %573 = vmatpush1.bf16.xpose.msra.mxu0 %v570
    %574 = vmatprep.subr.bf16.mxu0 0
    %575 = vmatpush1.bf16.xpose.msra.mxu0 0
    %576 = vmatprep.subr.bf16.mxu0 0
    %577 = vmatpush1.bf16.xpose.msra.mxu0 0
    %578 = vmatprep.subr.bf16.mxu0 0
    %579 = vmatpush1.bf16.xpose.msra.mxu0 0
    %580 = vmatprep.subr.bf16.mxu0 0
    %581 = vmatpush1.bf16.xpose.msra.mxu0 0
    %582 = vmatprep.subr.bf16.mxu0 0
    %583 = vmatpush1.bf16.xpose.msra.mxu0 0
    %584 = vmatprep.subr.bf16.mxu0 0
    %585 = vmatpush1.bf16.xpose.msra.mxu0 0
    %586 = vmatprep.subr.bf16.mxu0 0
    %587 = vmatpush1.bf16.xpose.msra.mxu0 0
    %588 = vmatprep.subr.bf16.mxu0 0
    %589 = vmatpush1.bf16.xpose.msra.mxu0 0
    %590 = vmatprep.subr.bf16.mxu0 0
    %591 = vmatpush1.bf16.xpose.msra.mxu0 0
    %592 = vmatprep.subr.bf16.mxu0 0
    %593 = vmatpush1.bf16.xpose.msra.mxu0 0
    %594 = vmatprep.subr.bf16.mxu0 0
    %595 = vmatpush1.bf16.xpose.msra.mxu0 0
    %596 = vmatprep.subr.bf16.mxu0 0
    %597 = vmatpush1.bf16.xpose.msra.mxu0 0
    %598 = vmatprep.subr.bf16.mxu0 0
    %599 = vmatpush1.bf16.xpose.msra.mxu0 0
    %600 = vmatprep.subr.bf16.mxu0 0
    %601 = vmatpush1.bf16.xpose.msra.mxu0 0
    %602 = vmatprep.subr.bf16.mxu0 0
    %603 = vmatpush1.bf16.xpose.msra.mxu0 0
    %604 = vmatprep.mubr.bf16.mxu0 0
    %605 = vmatmul.mubr.bf16.gmra.mrb[0].mxu0 %v567
    %v606 = vpop.f32.mrb[0].mxu0
    %v607 = vadd.f32 %v214, %v606
    %v608 = vpop.f32.mrb[0].mxu0
    %v609 = vpop.f32.mrb[0].mxu0
    %v610 = vpop.f32.mrb[0].mxu0
    %611 = vdwg.mxu0
    %613 = vrot.lane.b32.xlu0 %v315, 96
    %v614 = vpop.permute.xlu0 %613
    %v616 = vsel %vm320, %v315, 0
    %v619 = vsel %vm320, %v614, 0
    %621 = vmatprep.subr.bf16.mxu0 0
    %622 = vmatpush1.bf16.xpose.msra.mxu0 %v619
    %623 = vmatprep.subr.bf16.mxu0 0
    %624 = vmatpush1.bf16.xpose.msra.mxu0 0
    %625 = vmatprep.subr.bf16.mxu0 0
    %626 = vmatpush1.bf16.xpose.msra.mxu0 0
    %627 = vmatprep.subr.bf16.mxu0 0
    %628 = vmatpush1.bf16.xpose.msra.mxu0 0
    %629 = vmatprep.subr.bf16.mxu0 0
    %630 = vmatpush1.bf16.xpose.msra.mxu0 0
    %631 = vmatprep.subr.bf16.mxu0 0
    %632 = vmatpush1.bf16.xpose.msra.mxu0 0
    %633 = vmatprep.subr.bf16.mxu0 0
    %634 = vmatpush1.bf16.xpose.msra.mxu0 0
    %635 = vmatprep.subr.bf16.mxu0 0
    %636 = vmatpush1.bf16.xpose.msra.mxu0 0
    %637 = vmatprep.subr.bf16.mxu0 0
    %638 = vmatpush1.bf16.xpose.msra.mxu0 0
    %639 = vmatprep.subr.bf16.mxu0 0
    %640 = vmatpush1.bf16.xpose.msra.mxu0 0
    %641 = vmatprep.subr.bf16.mxu0 0
    %642 = vmatpush1.bf16.xpose.msra.mxu0 0
    %643 = vmatprep.subr.bf16.mxu0 0
    %644 = vmatpush1.bf16.xpose.msra.mxu0 0
    %645 = vmatprep.subr.bf16.mxu0 0
    %646 = vmatpush1.bf16.xpose.msra.mxu0 0
    %647 = vmatprep.subr.bf16.mxu0 0
    %648 = vmatpush1.bf16.xpose.msra.mxu0 0
    %649 = vmatprep.subr.bf16.mxu0 0
    %650 = vmatpush1.bf16.xpose.msra.mxu0 0
    %651 = vmatprep.subr.bf16.mxu0 0
    %652 = vmatpush1.bf16.xpose.msra.mxu0 0
    %653 = vmatprep.mubr.bf16.mxu0 0
    %654 = vmatmul.mubr.bf16.gmra.mrb[0].mxu0 %v616
    %v655 = vpop.f32.mrb[0].mxu0
    %v656 = vadd.f32 %v214, %v655
    %v657 = vpop.f32.mrb[0].mxu0
    %v658 = vpop.f32.mrb[0].mxu0
    %v659 = vpop.f32.mrb[0].mxu0
    %660 = vdwg.mxu0
    %662 = vrot.lane.b32.xlu0 %v316, 96
    %v663 = vpop.permute.xlu0 %662
    %v665 = vsel %vm320, %v316, 0
    %v668 = vsel %vm320, %v663, 0
    %670 = vmatprep.subr.bf16.mxu0 0
    %671 = vmatpush1.bf16.xpose.msra.mxu0 %v668
    %672 = vmatprep.subr.bf16.mxu0 0
    %673 = vmatpush1.bf16.xpose.msra.mxu0 0
    %674 = vmatprep.subr.bf16.mxu0 0
    %675 = vmatpush1.bf16.xpose.msra.mxu0 0
    %676 = vmatprep.subr.bf16.mxu0 0
    %677 = vmatpush1.bf16.xpose.msra.mxu0 0
    %678 = vmatprep.subr.bf16.mxu0 0
    %679 = vmatpush1.bf16.xpose.msra.mxu0 0
    %680 = vmatprep.subr.bf16.mxu0 0
    %681 = vmatpush1.bf16.xpose.msra.mxu0 0
    %682 = vmatprep.subr.bf16.mxu0 0
    %683 = vmatpush1.bf16.xpose.msra.mxu0 0
    %684 = vmatprep.subr.bf16.mxu0 0
    %685 = vmatpush1.bf16.xpose.msra.mxu0 0
    %686 = vmatprep.subr.bf16.mxu0 0
    %687 = vmatpush1.bf16.xpose.msra.mxu0 0
    %688 = vmatprep.subr.bf16.mxu0 0
    %689 = vmatpush1.bf16.xpose.msra.mxu0 0
    %690 = vmatprep.subr.bf16.mxu0 0
    %691 = vmatpush1.bf16.xpose.msra.mxu0 0
    %692 = vmatprep.subr.bf16.mxu0 0
    %693 = vmatpush1.bf16.xpose.msra.mxu0 0
    %694 = vmatprep.subr.bf16.mxu0 0
    %695 = vmatpush1.bf16.xpose.msra.mxu0 0
    %696 = vmatprep.subr.bf16.mxu0 0
    %697 = vmatpush1.bf16.xpose.msra.mxu0 0
    %698 = vmatprep.subr.bf16.mxu0 0
    %699 = vmatpush1.bf16.xpose.msra.mxu0 0
    %700 = vmatprep.subr.bf16.mxu0 0
    %701 = vmatpush1.bf16.xpose.msra.mxu0 0
    %702 = vmatprep.mubr.bf16.mxu0 0
    %703 = vmatmul.mubr.bf16.gmra.mrb[0].mxu0 %v665
    %v704 = vpop.f32.mrb[0].mxu0
    %v705 = vadd.f32 %v214, %v704
    %v706 = vpop.f32.mrb[0].mxu0
    %v707 = vpop.f32.mrb[0].mxu0
    %v708 = vpop.f32.mrb[0].mxu0
    %709 = vdwg.mxu0
    %v710 = vsel %vm320, %v362, -inf
    %711 = vmax.xlane.f32.xlu0 %v710
    %v712 = vpop.xlane.xlu0 %711
    %v713 = vsel %vm320, %v411, -inf
    %714 = vmax.xlane.f32.xlu0 %v713
    %v715 = vpop.xlane.xlu0 %714
    %v716 = vsel %vm320, %v460, -inf
    %717 = vmax.xlane.f32.xlu0 %v716
    %v718 = vpop.xlane.xlu0 %717
    %v719 = vsel %vm320, %v509, -inf
    %720 = vmax.xlane.f32.xlu0 %v719
    %v721 = vpop.xlane.xlu0 %720
    %v722 = vsel %vm320, %v558, -inf
    %723 = vmax.xlane.f32.xlu0 %v722
    %v724 = vpop.xlane.xlu0 %723
    %v725 = vsel %vm320, %v607, -inf
    %726 = vmax.xlane.f32.xlu0 %v725
    %v727 = vpop.xlane.xlu0 %726
    %v728 = vsel %vm320, %v656, -inf
    %729 = vmax.xlane.f32.xlu0 %v728
    %v730 = vpop.xlane.xlu0 %729
    %v731 = vsel %vm320, %v705, -inf
    %732 = vmax.xlane.f32.xlu0 %v731
    %v733 = vpop.xlane.xlu0 %732
    %v734 = vsub.f32 %v362, %v712
    %v735 = vsub.f32 %v411, %v715
    %v736 = vsub.f32 %v460, %v718
    %v737 = vsub.f32 %v509, %v721
    %v738 = vsub.f32 %v558, %v724
    %v739 = vsub.f32 %v607, %v727
    %v740 = vsub.f32 %v656, %v730
    %v741 = vsub.f32 %v705, %v733
    %v742 = vmul.f32 %v734, 1.442695
    %v743 = vpow.pop %v742
    %v744 = vmul.f32 %v735, 1.442695
    %v745 = vpow.pop %v744
    %v746 = vmul.f32 %v736, 1.442695
    %v747 = vpow.pop %v746
    %v748 = vmul.f32 %v737, 1.442695
    %v749 = vpow.pop %v748
    %v750 = vmul.f32 %v738, 1.442695
    %v751 = vpow.pop %v750
    %v752 = vmul.f32 %v739, 1.442695
    %v753 = vpow.pop %v752
    %v754 = vmul.f32 %v740, 1.442695
    %v755 = vpow.pop %v754
    %v756 = vmul.f32 %v741, 1.442695
    %v757 = vpow.pop %v756
    %v758 = vsel %vm320, %v743, 0.0
    %759 = vadd.xlane.f32.xlu0 %v758
    %v760 = vpop.xlane.xlu0 %759
    %v761 = vsel %vm320, %v745, 0.0
    %762 = vadd.xlane.f32.xlu0 %v761
    %v763 = vpop.xlane.xlu0 %762
    %v764 = vsel %vm320, %v747, 0.0
    %765 = vadd.xlane.f32.xlu0 %v764
    %v766 = vpop.xlane.xlu0 %765
    %v767 = vsel %vm320, %v749, 0.0
    %768 = vadd.xlane.f32.xlu0 %v767
    %v769 = vpop.xlane.xlu0 %768
    %v770 = vsel %vm320, %v751, 0.0
    %771 = vadd.xlane.f32.xlu0 %v770
    %v772 = vpop.xlane.xlu0 %771
    %v773 = vsel %vm320, %v753, 0.0
    %774 = vadd.xlane.f32.xlu0 %v773
    %v775 = vpop.xlane.xlu0 %774
    %v776 = vsel %vm320, %v755, 0.0
    %777 = vadd.xlane.f32.xlu0 %v776
    %v778 = vpop.xlane.xlu0 %777
    %v779 = vsel %vm320, %v757, 0.0
    %780 = vadd.xlane.f32.xlu0 %v779
    %v781 = vpop.xlane.xlu0 %780
    %v782 = vrcp.pop %v760
    %v783 = vrcp.pop %v763
    %v784 = vrcp.pop %v766
    %v785 = vrcp.pop %v769
    %v786 = vrcp.pop %v772
    %v787 = vrcp.pop %v775
    %v788 = vrcp.pop %v778
    %v789 = vrcp.pop %v781
    %v790 = vmul.f32 %v743, %v782
    %v791 = vmul.f32 %v745, %v783
    %v792 = vmul.f32 %v747, %v784
    %v793 = vmul.f32 %v749, %v785
    %v794 = vmul.f32 %v751, %v786
    %v795 = vmul.f32 %v753, %v787
    %v796 = vmul.f32 %v755, %v788
    %v797 = vmul.f32 %v757, %v789
    %v798 = vpack.c.bf16 %v790, %v790
    %v799 = vpack.c.bf16 %v791, %v791
    %v800 = vpack.c.bf16 %v792, %v792
    %v801 = vpack.c.bf16 %v793, %v793
    %v802 = vpack.c.bf16 %v794, %v794
    %v803 = vpack.c.bf16 %v795, %v795
    %v804 = vpack.c.bf16 %v796, %v796
    %v805 = vpack.c.bf16 %v797, %v797
    %806 = vrot.lane.b32.xlu0 %v309, 64
    %v807 = vpop.permute.xlu0 %806
    %v809 = vsel %vm320, %v798, 0
    %vm811 = vcmask 1043456
    %v813 = vsel %vm811, %v807, 0
    %815 = vmatprep.subr.bf16.mxu0 0
    %816 = vmatpush1.bf16.msra.mxu0 %v813
    %817 = vmatprep.subr.bf16.mxu0 0
    %818 = vmatpush1.bf16.msra.mxu0 0
    %819 = vmatprep.subr.bf16.mxu0 0
    %820 = vmatpush1.bf16.msra.mxu0 0
    %821 = vmatprep.subr.bf16.mxu0 0
    %822 = vmatpush1.bf16.msra.mxu0 0
    %823 = vmatprep.subr.bf16.mxu0 0
    %824 = vmatpush1.bf16.msra.mxu0 0
    %825 = vmatprep.subr.bf16.mxu0 0
    %826 = vmatpush1.bf16.msra.mxu0 0
    %827 = vmatprep.subr.bf16.mxu0 0
    %828 = vmatpush1.bf16.msra.mxu0 0
    %829 = vmatprep.subr.bf16.mxu0 0
    %830 = vmatpush1.bf16.msra.mxu0 0
    %831 = vmatprep.subr.bf16.mxu0 0
    %832 = vmatpush1.bf16.msra.mxu0 0
    %833 = vmatprep.subr.bf16.mxu0 0
    %834 = vmatpush1.bf16.msra.mxu0 0
    %835 = vmatprep.subr.bf16.mxu0 0
    %836 = vmatpush1.bf16.msra.mxu0 0
    %837 = vmatprep.subr.bf16.mxu0 0
    %838 = vmatpush1.bf16.msra.mxu0 0
    %839 = vmatprep.subr.bf16.mxu0 0
    %840 = vmatpush1.bf16.msra.mxu0 0
    %841 = vmatprep.subr.bf16.mxu0 0
    %842 = vmatpush1.bf16.msra.mxu0 0
    %843 = vmatprep.subr.bf16.mxu0 0
    %844 = vmatpush1.bf16.msra.mxu0 0
    %845 = vmatprep.subr.bf16.mxu0 0
    %846 = vmatpush1.bf16.msra.mxu0 0
    %847 = vmatprep.mubr.bf16.mxu0 0
    %848 = vmatmul.mubr.bf16.gmra.mrb[0].mxu0 %v809
    %v849 = vpop.f32.mrb[0].mxu0
    %v850 = vadd.f32 0.0, %v849
    %v851 = vpop.f32.mrb[0].mxu0
    %v852 = vpop.f32.mrb[0].mxu0
    %v853 = vpop.f32.mrb[0].mxu0
    %854 = vdwg.mxu0
    %855 = vrot.lane.b32.xlu0 %v310, 64
    %v856 = vpop.permute.xlu0 %855
    %v858 = vsel %vm320, %v799, 0
    %v861 = vsel %vm811, %v856, 0
    %863 = vmatprep.subr.bf16.mxu0 0
    %864 = vmatpush1.bf16.msra.mxu0 %v861
    %865 = vmatprep.subr.bf16.mxu0 0
    %866 = vmatpush1.bf16.msra.mxu0 0
    %867 = vmatprep.subr.bf16.mxu0 0
    %868 = vmatpush1.bf16.msra.mxu0 0
    %869 = vmatprep.subr.bf16.mxu0 0
    %870 = vmatpush1.bf16.msra.mxu0 0
    %871 = vmatprep.subr.bf16.mxu0 0
    %872 = vmatpush1.bf16.msra.mxu0 0
    %873 = vmatprep.subr.bf16.mxu0 0
    %874 = vmatpush1.bf16.msra.mxu0 0
    %875 = vmatprep.subr.bf16.mxu0 0
    %876 = vmatpush1.bf16.msra.mxu0 0
    %877 = vmatprep.subr.bf16.mxu0 0
    %878 = vmatpush1.bf16.msra.mxu0 0
    %879 = vmatprep.subr.bf16.mxu0 0
    %880 = vmatpush1.bf16.msra.mxu0 0
    %881 = vmatprep.subr.bf16.mxu0 0
    %882 = vmatpush1.bf16.msra.mxu0 0
    %883 = vmatprep.subr.bf16.mxu0 0
    %884 = vmatpush1.bf16.msra.mxu0 0
    %885 = vmatprep.subr.bf16.mxu0 0
    %886 = vmatpush1.bf16.msra.mxu0 0
    %887 = vmatprep.subr.bf16.mxu0 0
    %888 = vmatpush1.bf16.msra.mxu0 0
    %889 = vmatprep.subr.bf16.mxu0 0
    %890 = vmatpush1.bf16.msra.mxu0 0
    %891 = vmatprep.subr.bf16.mxu0 0
    %892 = vmatpush1.bf16.msra.mxu0 0
    %893 = vmatprep.subr.bf16.mxu0 0
    %894 = vmatpush1.bf16.msra.mxu0 0
    %895 = vmatprep.mubr.bf16.mxu0 0
    %896 = vmatmul.mubr.bf16.gmra.mrb[0].mxu0 %v858
    %v897 = vpop.f32.mrb[0].mxu0
    %v898 = vadd.f32 0.0, %v897
    %v899 = vpop.f32.mrb[0].mxu0
    %v900 = vpop.f32.mrb[0].mxu0
    %v901 = vpop.f32.mrb[0].mxu0
    %902 = vdwg.mxu0
    %903 = vrot.lane.b32.xlu0 %v311, 64
    %v904 = vpop.permute.xlu0 %903
    %v906 = vsel %vm320, %v800, 0
    %v909 = vsel %vm811, %v904, 0
    %911 = vmatprep.subr.bf16.mxu0 0
    %912 = vmatpush1.bf16.msra.mxu0 %v909
    %913 = vmatprep.subr.bf16.mxu0 0
    %914 = vmatpush1.bf16.msra.mxu0 0
    %915 = vmatprep.subr.bf16.mxu0 0
    %916 = vmatpush1.bf16.msra.mxu0 0
    %917 = vmatprep.subr.bf16.mxu0 0
    %918 = vmatpush1.bf16.msra.mxu0 0
    %919 = vmatprep.subr.bf16.mxu0 0
    %920 = vmatpush1.bf16.msra.mxu0 0
    %921 = vmatprep.subr.bf16.mxu0 0
    %922 = vmatpush1.bf16.msra.mxu0 0
    %923 = vmatprep.subr.bf16.mxu0 0
    %924 = vmatpush1.bf16.msra.mxu0 0
    %925 = vmatprep.subr.bf16.mxu0 0
    %926 = vmatpush1.bf16.msra.mxu0 0
    %927 = vmatprep.subr.bf16.mxu0 0
    %928 = vmatpush1.bf16.msra.mxu0 0
    %929 = vmatprep.subr.bf16.mxu0 0
    %930 = vmatpush1.bf16.msra.mxu0 0
    %931 = vmatprep.subr.bf16.mxu0 0
    %932 = vmatpush1.bf16.msra.mxu0 0
    %933 = vmatprep.subr.bf16.mxu0 0
    %934 = vmatpush1.bf16.msra.mxu0 0
    %935 = vmatprep.subr.bf16.mxu0 0
    %936 = vmatpush1.bf16.msra.mxu0 0
    %937 = vmatprep.subr.bf16.mxu0 0
    %938 = vmatpush1.bf16.msra.mxu0 0
    %939 = vmatprep.subr.bf16.mxu0 0
    %940 = vmatpush1.bf16.msra.mxu0 0
    %941 = vmatprep.subr.bf16.mxu0 0
    %942 = vmatpush1.bf16.msra.mxu0 0
    %943 = vmatprep.mubr.bf16.mxu0 0
    %944 = vmatmul.mubr.bf16.gmra.mrb[0].mxu0 %v906
    %v945 = vpop.f32.mrb[0].mxu0
    %v946 = vadd.f32 0.0, %v945
    %v947 = vpop.f32.mrb[0].mxu0
    %v948 = vpop.f32.mrb[0].mxu0
    %v949 = vpop.f32.mrb[0].mxu0
    %950 = vdwg.mxu0
    %951 = vrot.lane.b32.xlu0 %v312, 64
    %v952 = vpop.permute.xlu0 %951
    %v954 = vsel %vm320, %v801, 0
    %v957 = vsel %vm811, %v952, 0
    %959 = vmatprep.subr.bf16.mxu0 0
    %960 = vmatpush1.bf16.msra.mxu0 %v957
    %961 = vmatprep.subr.bf16.mxu0 0
    %962 = vmatpush1.bf16.msra.mxu0 0
    %963 = vmatprep.subr.bf16.mxu0 0
    %964 = vmatpush1.bf16.msra.mxu0 0
    %965 = vmatprep.subr.bf16.mxu0 0
    %966 = vmatpush1.bf16.msra.mxu0 0
    %967 = vmatprep.subr.bf16.mxu0 0
    %968 = vmatpush1.bf16.msra.mxu0 0
    %969 = vmatprep.subr.bf16.mxu0 0
    %970 = vmatpush1.bf16.msra.mxu0 0
    %971 = vmatprep.subr.bf16.mxu0 0
    %972 = vmatpush1.bf16.msra.mxu0 0
    %973 = vmatprep.subr.bf16.mxu0 0
    %974 = vmatpush1.bf16.msra.mxu0 0
    %975 = vmatprep.subr.bf16.mxu0 0
    %976 = vmatpush1.bf16.msra.mxu0 0
    %977 = vmatprep.subr.bf16.mxu0 0
    %978 = vmatpush1.bf16.msra.mxu0 0
    %979 = vmatprep.subr.bf16.mxu0 0
    %980 = vmatpush1.bf16.msra.mxu0 0
    %981 = vmatprep.subr.bf16.mxu0 0
    %982 = vmatpush1.bf16.msra.mxu0 0
    %983 = vmatprep.subr.bf16.mxu0 0
    %984 = vmatpush1.bf16.msra.mxu0 0
    %985 = vmatprep.subr.bf16.mxu0 0
    %986 = vmatpush1.bf16.msra.mxu0 0
    %987 = vmatprep.subr.bf16.mxu0 0
    %988 = vmatpush1.bf16.msra.mxu0 0
    %989 = vmatprep.subr.bf16.mxu0 0
    %990 = vmatpush1.bf16.msra.mxu0 0
    %991 = vmatprep.mubr.bf16.mxu0 0
    %992 = vmatmul.mubr.bf16.gmra.mrb[0].mxu0 %v954
    %v993 = vpop.f32.mrb[0].mxu0
    %v994 = vadd.f32 0.0, %v993
    %v995 = vpop.f32.mrb[0].mxu0
    %v996 = vpop.f32.mrb[0].mxu0
    %v997 = vpop.f32.mrb[0].mxu0
    %998 = vdwg.mxu0
    %999 = vrot.lane.b32.xlu0 %v313, 64
    %v1000 = vpop.permute.xlu0 %999
    %v1002 = vsel %vm320, %v802, 0
    %v1005 = vsel %vm811, %v1000, 0
    %1007 = vmatprep.subr.bf16.mxu0 0
    %1008 = vmatpush1.bf16.msra.mxu0 %v1005
    %1009 = vmatprep.subr.bf16.mxu0 0
    %1010 = vmatpush1.bf16.msra.mxu0 0
    %1011 = vmatprep.subr.bf16.mxu0 0
    %1012 = vmatpush1.bf16.msra.mxu0 0
    %1013 = vmatprep.subr.bf16.mxu0 0
    %1014 = vmatpush1.bf16.msra.mxu0 0
    %1015 = vmatprep.subr.bf16.mxu0 0
    %1016 = vmatpush1.bf16.msra.mxu0 0
    %1017 = vmatprep.subr.bf16.mxu0 0
    %1018 = vmatpush1.bf16.msra.mxu0 0
    %1019 = vmatprep.subr.bf16.mxu0 0
    %1020 = vmatpush1.bf16.msra.mxu0 0
    %1021 = vmatprep.subr.bf16.mxu0 0
    %1022 = vmatpush1.bf16.msra.mxu0 0
    %1023 = vmatprep.subr.bf16.mxu0 0
    %1024 = vmatpush1.bf16.msra.mxu0 0
    %1025 = vmatprep.subr.bf16.mxu0 0
    %1026 = vmatpush1.bf16.msra.mxu0 0
    %1027 = vmatprep.subr.bf16.mxu0 0
    %1028 = vmatpush1.bf16.msra.mxu0 0
    %1029 = vmatprep.subr.bf16.mxu0 0
    %1030 = vmatpush1.bf16.msra.mxu0 0
    %1031 = vmatprep.subr.bf16.mxu0 0
    %1032 = vmatpush1.bf16.msra.mxu0 0
    %1033 = vmatprep.subr.bf16.mxu0 0
    %1034 = vmatpush1.bf16.msra.mxu0 0
    %1035 = vmatprep.subr.bf16.mxu0 0
    %1036 = vmatpush1.bf16.msra.mxu0 0
    %1037 = vmatprep.subr.bf16.mxu0 0
    %1038 = vmatpush1.bf16.msra.mxu0 0
    %1039 = vmatprep.mubr.bf16.mxu0 0
    %1040 = vmatmul.mubr.bf16.gmra.mrb[0].mxu0 %v1002
    %v1041 = vpop.f32.mrb[0].mxu0
    %v1042 = vadd.f32 0.0, %v1041
    %v1043 = vpop.f32.mrb[0].mxu0
    %v1044 = vpop.f32.mrb[0].mxu0
    %v1045 = vpop.f32.mrb[0].mxu0
    %1046 = vdwg.mxu0
    %1047 = vrot.lane.b32.xlu0 %v314, 64
    %v1048 = vpop.permute.xlu0 %1047
    %v1050 = vsel %vm320, %v803, 0
    %v1053 = vsel %vm811, %v1048, 0
    %1055 = vmatprep.subr.bf16.mxu0 0
    %1056 = vmatpush1.bf16.msra.mxu0 %v1053
    %1057 = vmatprep.subr.bf16.mxu0 0
    %1058 = vmatpush1.bf16.msra.mxu0 0
    %1059 = vmatprep.subr.bf16.mxu0 0
    %1060 = vmatpush1.bf16.msra.mxu0 0
    %1061 = vmatprep.subr.bf16.mxu0 0
    %1062 = vmatpush1.bf16.msra.mxu0 0
    %1063 = vmatprep.subr.bf16.mxu0 0
    %1064 = vmatpush1.bf16.msra.mxu0 0
    %1065 = vmatprep.subr.bf16.mxu0 0
    %1066 = vmatpush1.bf16.msra.mxu0 0
    %1067 = vmatprep.subr.bf16.mxu0 0
    %1068 = vmatpush1.bf16.msra.mxu0 0
    %1069 = vmatprep.subr.bf16.mxu0 0
    %1070 = vmatpush1.bf16.msra.mxu0 0
    %1071 = vmatprep.subr.bf16.mxu0 0
    %1072 = vmatpush1.bf16.msra.mxu0 0
    %1073 = vmatprep.subr.bf16.mxu0 0
    %1074 = vmatpush1.bf16.msra.mxu0 0
    %1075 = vmatprep.subr.bf16.mxu0 0
    %1076 = vmatpush1.bf16.msra.mxu0 0
    %1077 = vmatprep.subr.bf16.mxu0 0
    %1078 = vmatpush1.bf16.msra.mxu0 0
    %1079 = vmatprep.subr.bf16.mxu0 0
    %1080 = vmatpush1.bf16.msra.mxu0 0
    %1081 = vmatprep.subr.bf16.mxu0 0
    %1082 = vmatpush1.bf16.msra.mxu0 0
    %1083 = vmatprep.subr.bf16.mxu0 0
    %1084 = vmatpush1.bf16.msra.mxu0 0
    %1085 = vmatprep.subr.bf16.mxu0 0
    %1086 = vmatpush1.bf16.msra.mxu0 0
    %1087 = vmatprep.mubr.bf16.mxu0 0
    %1088 = vmatmul.mubr.bf16.gmra.mrb[0].mxu0 %v1050
    %v1089 = vpop.f32.mrb[0].mxu0
    %v1090 = vadd.f32 0.0, %v1089
    %v1091 = vpop.f32.mrb[0].mxu0
    %v1092 = vpop.f32.mrb[0].mxu0
    %v1093 = vpop.f32.mrb[0].mxu0
    %1094 = vdwg.mxu0
    %1095 = vrot.lane.b32.xlu0 %v315, 64
    %v1096 = vpop.permute.xlu0 %1095
    %v1098 = vsel %vm320, %v804, 0
    %v1101 = vsel %vm811, %v1096, 0
    %1103 = vmatprep.subr.bf16.mxu0 0
    %1104 = vmatpush1.bf16.msra.mxu0 %v1101
    %1105 = vmatprep.subr.bf16.mxu0 0
    %1106 = vmatpush1.bf16.msra.mxu0 0
    %1107 = vmatprep.subr.bf16.mxu0 0
    %1108 = vmatpush1.bf16.msra.mxu0 0
    %1109 = vmatprep.subr.bf16.mxu0 0
    %1110 = vmatpush1.bf16.msra.mxu0 0
    %1111 = vmatprep.subr.bf16.mxu0 0
    %1112 = vmatpush1.bf16.msra.mxu0 0
    %1113 = vmatprep.subr.bf16.mxu0 0
    %1114 = vmatpush1.bf16.msra.mxu0 0
    %1115 = vmatprep.subr.bf16.mxu0 0
    %1116 = vmatpush1.bf16.msra.mxu0 0
    %1117 = vmatprep.subr.bf16.mxu0 0
    %1118 = vmatpush1.bf16.msra.mxu0 0
    %1119 = vmatprep.subr.bf16.mxu0 0
    %1120 = vmatpush1.bf16.msra.mxu0 0
    %1121 = vmatprep.subr.bf16.mxu0 0
    %1122 = vmatpush1.bf16.msra.mxu0 0
    %1123 = vmatprep.subr.bf16.mxu0 0
    %1124 = vmatpush1.bf16.msra.mxu0 0
    %1125 = vmatprep.subr.bf16.mxu0 0
    %1126 = vmatpush1.bf16.msra.mxu0 0
    %1127 = vmatprep.subr.bf16.mxu0 0
    %1128 = vmatpush1.bf16.msra.mxu0 0
    %1129 = vmatprep.subr.bf16.mxu0 0
    %1130 = vmatpush1.bf16.msra.mxu0 0
    %1131 = vmatprep.subr.bf16.mxu0 0
    %1132 = vmatpush1.bf16.msra.mxu0 0
    %1133 = vmatprep.subr.bf16.mxu0 0
    %1134 = vmatpush1.bf16.msra.mxu0 0
    %1135 = vmatprep.mubr.bf16.mxu0 0
    %1136 = vmatmul.mubr.bf16.gmra.mrb[0].mxu0 %v1098
    %v1137 = vpop.f32.mrb[0].mxu0
    %v1138 = vadd.f32 0.0, %v1137
    %v1139 = vpop.f32.mrb[0].mxu0
    %v1140 = vpop.f32.mrb[0].mxu0
    %v1141 = vpop.f32.mrb[0].mxu0
    %1142 = vdwg.mxu0
    %1143 = vrot.lane.b32.xlu0 %v316, 64
    %v1144 = vpop.permute.xlu0 %1143
    %v1146 = vsel %vm320, %v805, 0
    %v1149 = vsel %vm811, %v1144, 0
    %1151 = vmatprep.subr.bf16.mxu0 0
    %1152 = vmatpush1.bf16.msra.mxu0 %v1149
    %1153 = vmatprep.subr.bf16.mxu0 0
    %1154 = vmatpush1.bf16.msra.mxu0 0
    %1155 = vmatprep.subr.bf16.mxu0 0
    %1156 = vmatpush1.bf16.msra.mxu0 0
    %1157 = vmatprep.subr.bf16.mxu0 0
    %1158 = vmatpush1.bf16.msra.mxu0 0
    %1159 = vmatprep.subr.bf16.mxu0 0
    %1160 = vmatpush1.bf16.msra.mxu0 0
    %1161 = vmatprep.subr.bf16.mxu0 0
    %1162 = vmatpush1.bf16.msra.mxu0 0
    %1163 = vmatprep.subr.bf16.mxu0 0
    %1164 = vmatpush1.bf16.msra.mxu0 0
    %1165 = vmatprep.subr.bf16.mxu0 0
    %1166 = vmatpush1.bf16.msra.mxu0 0
    %1167 = vmatprep.subr.bf16.mxu0 0
    %1168 = vmatpush1.bf16.msra.mxu0 0
    %1169 = vmatprep.subr.bf16.mxu0 0
    %1170 = vmatpush1.bf16.msra.mxu0 0
    %1171 = vmatprep.subr.bf16.mxu0 0
    %1172 = vmatpush1.bf16.msra.mxu0 0
    %1173 = vmatprep.subr.bf16.mxu0 0
    %1174 = vmatpush1.bf16.msra.mxu0 0
    %1175 = vmatprep.subr.bf16.mxu0 0
    %1176 = vmatpush1.bf16.msra.mxu0 0
    %1177 = vmatprep.subr.bf16.mxu0 0
    %1178 = vmatpush1.bf16.msra.mxu0 0
    %1179 = vmatprep.subr.bf16.mxu0 0
    %1180 = vmatpush1.bf16.msra.mxu0 0
    %1181 = vmatprep.subr.bf16.mxu0 0
    %1182 = vmatpush1.bf16.msra.mxu0 0
    %1183 = vmatprep.mubr.bf16.mxu0 0
    %1184 = vmatmul.mubr.bf16.gmra.mrb[0].mxu0 %v1146
    %v1185 = vpop.f32.mrb[0].mxu0
    %v1186 = vadd.f32 0.0, %v1185
    %v1187 = vpop.f32.mrb[0].mxu0
    %v1188 = vpop.f32.mrb[0].mxu0
    %v1189 = vpop.f32.mrb[0].mxu0
    %1190 = vdwg.mxu0
    %1193 = vrot.lane.b32.xlu0 %v898, 8
    %v1194 = vpop.permute.xlu0 %1193
    %1195 = vrot.lane.b32.xlu0 %v1090, 8
    %v1196 = vpop.permute.xlu0 %1195
    %1201 = vrot.lane.b32.xlu0 %v946, 16
    %v1202 = vpop.permute.xlu0 %1201
    %1203 = vrot.lane.b32.xlu0 %v1138, 16
    %v1204 = vpop.permute.xlu0 %1203
    %1209 = vrot.lane.b32.xlu0 %v994, 24
    %v1210 = vpop.permute.xlu0 %1209
    %1211 = vrot.lane.b32.xlu0 %v1186, 24
    %v1212 = vpop.permute.xlu0 %1211
    %v1215 = vsel %vm320, %v850, %v1194
    %v1216 = vsel %vm320, %v1042, %v1196
    %vm1217 = vcmask 130048
    %v1218 = vsel %vm1217, %v1215, %v1202
    %v1219 = vsel %vm1217, %v1216, %v1204
    %vm1220 = vcmask 195584
    %v1221 = vsel %vm1220, %v1218, %v1210
    %v1222 = vsel %vm1220, %v1219, %v1212
    %v1223 = vpack.c.bf16 %v1222, %v1221
    %v1224 = vlaneseq
    %v1225 = vshrl.u32 %v1224, 7
    %v1226 = vsub.s32 1, %v1225
    %v1227 = vrot.slane %v219, %v1226
    %1228 = vrot.lane.b32.xlu0 %v241, 32
    %v1229 = vpop.permute.xlu0 %1228
    %1230 = vrot.lane.b32.xlu0 %v242, 32
    %v1231 = vpop.permute.xlu0 %1230
    %v1235 = vsel %vm134, %v1223, 0
    %1237 = vmatprep.subr.bf16.mxu0 0
    %1238 = vmatpush1.bf16.msra.mxu0 %v1229
    %1239 = vmatprep.subr.bf16.mxu0 0
    %1240 = vmatpush1.bf16.msra.mxu0 %v1231
    %1241 = vmatprep.subr.bf16.mxu0 0
    %1242 = vmatpush1.bf16.msra.mxu0 0
    %1243 = vmatprep.subr.bf16.mxu0 0
    %1244 = vmatpush1.bf16.msra.mxu0 0
    %1245 = vmatprep.subr.bf16.mxu0 0
    %1246 = vmatpush1.bf16.msra.mxu0 0
    %1247 = vmatprep.subr.bf16.mxu0 0
    %1248 = vmatpush1.bf16.msra.mxu0 0
    %1249 = vmatprep.subr.bf16.mxu0 0
    %1250 = vmatpush1.bf16.msra.mxu0 0
    %1251 = vmatprep.subr.bf16.mxu0 0
    %1252 = vmatpush1.bf16.msra.mxu0 0
    %1253 = vmatprep.subr.bf16.mxu0 0
    %1254 = vmatpush1.bf16.msra.mxu0 0
    %1255 = vmatprep.subr.bf16.mxu0 0
    %1256 = vmatpush1.bf16.msra.mxu0 0
    %1257 = vmatprep.subr.bf16.mxu0 0
    %1258 = vmatpush1.bf16.msra.mxu0 0
    %1259 = vmatprep.subr.bf16.mxu0 0
    %1260 = vmatpush1.bf16.msra.mxu0 0
    %1261 = vmatprep.subr.bf16.mxu0 0
    %1262 = vmatpush1.bf16.msra.mxu0 0
    %1263 = vmatprep.subr.bf16.mxu0 0
    %1264 = vmatpush1.bf16.msra.mxu0 0
    %1265 = vmatprep.subr.bf16.mxu0 0
    %1266 = vmatpush1.bf16.msra.mxu0 0
    %1267 = vmatprep.subr.bf16.mxu0 0
    %1268 = vmatpush1.bf16.msra.mxu0 0
    %1269 = vmatprep.mubr.bf16.mxu0 0
    %1270 = vmatmul.mubr.bf16.gmra.mrb[0].mxu0 %v1235
    %v1271 = vpop.f32.mrb[0].mxu0
    %v1272 = vadd.f32 %v1227, %v1271
    %v1273 = vpop.f32.mrb[0].mxu0
    %v1274 = vpop.f32.mrb[0].mxu0
    %v1275 = vadd.f32 %v1227, %v1274
    %v1276 = vpop.f32.mrb[0].mxu0
    %1277 = vdwg.mxu0
    %v1278 = vadd.f32 %v172, %v1272
    %v1279 = vadd.f32 %v173, %v1275
    %v1280 = vsel %vm134, %v1278, 0.0
    %1281 = vadd.xlane.f32.xlu0 %v1280
    %v1282 = vpop.xlane.xlu0 %1281
    %v1283 = vsel %vm134, %v1279, 0.0
    %1284 = vadd.xlane.f32.xlu0 %v1283
    %v1285 = vpop.xlane.xlu0 %1284
    %v1286 = vmul.f32 %v1282, %v141
    %v1287 = vmul.f32 %v1285, %v141
    %v1288 = vsub.f32 %v1278, %v1286
    %v1289 = vsub.f32 %v1279, %v1287
    %v1290 = vmul.f32 %v1288, %v1288
    %v1291 = vmul.f32 %v1289, %v1289
    %v1292 = vsel %vm134, %v1290, 0.0
    %1293 = vadd.xlane.f32.xlu0 %v1292
    %v1294 = vpop.xlane.xlu0 %1293
    %v1295 = vsel %vm134, %v1291, 0.0
    %1296 = vadd.xlane.f32.xlu0 %v1295
    %v1297 = vpop.xlane.xlu0 %1296
    %v1298 = vmul.f32 %v1294, %v141
    %v1299 = vmul.f32 %v1297, %v141
    %v1300 = vadd.f32 %v1298, 1e-12
    %v1301 = vadd.f32 %v1299, 1e-12
    %v1302 = vrsqrt.pop %v1300
    %v1303 = vrsqrt.pop %v1301
    %v1304 = vmul.f32 %v1288, %v1302
    %v1305 = vmul.f32 %v1289, %v1303
    %v1306 = vlaneseq
    %v1307 = vshrl.u32 %v1306, 7
    %v1308 = vsub.s32 4, %v1307
    %v1309 = vrot.slane %v219, %v1308
    %v1310 = vmul.f32 %v1304, %v1309
    %v1311 = vmul.f32 %v1305, %v1309
    %v1312 = vlaneseq
    %v1313 = vshrl.u32 %v1312, 7
    %v1314 = vsub.s32 5, %v1313
    %v1315 = vrot.slane %v219, %v1314
    %v1316 = vadd.f32 %v1310, %v1315
    %v1317 = vadd.f32 %v1311, %v1315
    %v1318 = vpack.c.bf16 %v1317, %v1316
    %v1319 = vlaneseq
    %v1320 = vshrl.u32 %v1319, 7
    %v1321 = vsub.s32 2, %v1320
    %v1322 = vrot.slane %v219, %v1321
    %v1323 = vunpack.c.h.b16 %v215
    %v1324 = vunpack.c.h.b16 %v216
    %v1325 = vunpack.c.h.b16 %v217
    %v1326 = vunpack.c.h.b16 %v218
    %v1327 = vpack.c.b16 %v1324, %v1323
    %v1328 = vpack.c.b16 %v1326, %v1325
    %v1332 = vsel %vm134, %v1318, 0
    %1334 = vmatprep.subr.bf16.mxu0 0
    %1335 = vmatpush1.bf16.msra.mxu0 %v1327
    %1336 = vmatprep.subr.bf16.mxu0 0
    %1337 = vmatpush1.bf16.msra.mxu0 %v1328
    %1338 = vmatprep.subr.bf16.mxu0 0
    %1339 = vmatpush1.bf16.msra.mxu0 0
    %1340 = vmatprep.subr.bf16.mxu0 0
    %1341 = vmatpush1.bf16.msra.mxu0 0
    %1342 = vmatprep.subr.bf16.mxu0 0
    %1343 = vmatpush1.bf16.msra.mxu0 0
    %1344 = vmatprep.subr.bf16.mxu0 0
    %1345 = vmatpush1.bf16.msra.mxu0 0
    %1346 = vmatprep.subr.bf16.mxu0 0
    %1347 = vmatpush1.bf16.msra.mxu0 0
    %1348 = vmatprep.subr.bf16.mxu0 0
    %1349 = vmatpush1.bf16.msra.mxu0 0
    %1350 = vmatprep.subr.bf16.mxu0 0
    %1351 = vmatpush1.bf16.msra.mxu0 0
    %1352 = vmatprep.subr.bf16.mxu0 0
    %1353 = vmatpush1.bf16.msra.mxu0 0
    %1354 = vmatprep.subr.bf16.mxu0 0
    %1355 = vmatpush1.bf16.msra.mxu0 0
    %1356 = vmatprep.subr.bf16.mxu0 0
    %1357 = vmatpush1.bf16.msra.mxu0 0
    %1358 = vmatprep.subr.bf16.mxu0 0
    %1359 = vmatpush1.bf16.msra.mxu0 0
    %1360 = vmatprep.subr.bf16.mxu0 0
    %1361 = vmatpush1.bf16.msra.mxu0 0
    %1362 = vmatprep.subr.bf16.mxu0 0
    %1363 = vmatpush1.bf16.msra.mxu0 0
    %1364 = vmatprep.subr.bf16.mxu0 0
    %1365 = vmatpush1.bf16.msra.mxu0 0
    %1366 = vmatprep.mubr.bf16.mxu0 0
    %1367 = vmatmul.mubr.bf16.gmra.mrb[0].mxu0 %v1332
    %v1368 = vpop.f32.mrb[0].mxu0
    %v1369 = vadd.f32 %v1322, %v1368
    %v1370 = vpop.f32.mrb[0].mxu0
    %v1371 = vpop.f32.mrb[0].mxu0
    %v1372 = vadd.f32 %v1322, %v1371
    %v1373 = vpop.f32.mrb[0].mxu0
    %1374 = vdwg.mxu0
    %v1375 = vmul.f32 %v1369, 0.5
    %v1376 = vmul.f32 %v1372, 0.5
    %v1377 = vmul.f32 %v1369, 0.044715
    %v1378 = vmul.f32 %v1372, 0.044715
    %v1379 = vmul.f32 %v1377, %v1369
    %v1380 = vmul.f32 %v1378, %v1372
    %v1381 = vmul.f32 %v1379, %v1369
    %v1382 = vmul.f32 %v1380, %v1372
    %v1383 = vadd.f32 %v1369, %v1381
    %v1384 = vadd.f32 %v1372, %v1382
    %v1385 = vmul.f32 %v1383, 0.7978846
    %v1386 = vmul.f32 %v1384, 0.7978846
    %v1387 = vtanh.pop %v1385
    %v1388 = vtanh.pop %v1386
    %v1389 = vadd.f32 %v1387, 1.0
    %v1390 = vadd.f32 %v1388, 1.0
    %v1391 = vmul.f32 %v1375, %v1389
    %v1392 = vmul.f32 %v1376, %v1390
    %v1393 = vpack.c.bf16 %v1392, %v1391
    %v1394 = vlaneseq
    %v1395 = vshrl.u32 %v1394, 7
    %v1396 = vsub.s32 3, %v1395
    %v1397 = vrot.slane %v219, %v1396
    %v1406 = vunpack.c.l.b16 %v220
    %v1407 = vunpack.c.l.b16 %v221
    %v1408 = vunpack.c.l.b16 %v222
    %v1409 = vunpack.c.l.b16 %v223
    %v1410 = vunpack.c.l.b16 %v224
    %v1411 = vunpack.c.l.b16 %v225
    %v1412 = vunpack.c.l.b16 %v226
    %v1413 = vunpack.c.l.b16 %v227
    %v1414 = vpack.c.b16 %v1407, %v1406
    %v1415 = vpack.c.b16 %v1409, %v1408
    %v1416 = vpack.c.b16 %v1411, %v1410
    %v1417 = vpack.c.b16 %v1413, %v1412
    %vm1422 = vcmask 523264
    %v1424 = vsel %vm1422, %v1393, 0
    %1426 = vmatprep.subr.bf16.mxu0 0
    %1427 = vmatpush1.bf16.msra.mxu0 %v1414
    %1428 = vmatprep.subr.bf16.mxu0 0
    %1429 = vmatpush1.bf16.msra.mxu0 %v1415
    %1430 = vmatprep.subr.bf16.mxu0 0
    %1431 = vmatpush1.bf16.msra.mxu0 %v1416
    %1432 = vmatprep.subr.bf16.mxu0 0
    %1433 = vmatpush1.bf16.msra.mxu0 %v1417
    %1434 = vmatprep.subr.bf16.mxu0 0
    %1435 = vmatpush1.bf16.msra.mxu0 0
    %1436 = vmatprep.subr.bf16.mxu0 0
    %1437 = vmatpush1.bf16.msra.mxu0 0
    %1438 = vmatprep.subr.bf16.mxu0 0
    %1439 = vmatpush1.bf16.msra.mxu0 0
    %1440 = vmatprep.subr.bf16.mxu0 0
    %1441 = vmatpush1.bf16.msra.mxu0 0
    %1442 = vmatprep.subr.bf16.mxu0 0
    %1443 = vmatpush1.bf16.msra.mxu0 0
    %1444 = vmatprep.subr.bf16.mxu0 0
    %1445 = vmatpush1.bf16.msra.mxu0 0
    %1446 = vmatprep.subr.bf16.mxu0 0
    %1447 = vmatpush1.bf16.msra.mxu0 0
    %1448 = vmatprep.subr.bf16.mxu0 0
    %1449 = vmatpush1.bf16.msra.mxu0 0
    %1450 = vmatprep.subr.bf16.mxu0 0
    %1451 = vmatpush1.bf16.msra.mxu0 0
    %1452 = vmatprep.subr.bf16.mxu0 0
    %1453 = vmatpush1.bf16.msra.mxu0 0
    %1454 = vmatprep.subr.bf16.mxu0 0
    %1455 = vmatpush1.bf16.msra.mxu0 0
    %1456 = vmatprep.subr.bf16.mxu0 0
    %1457 = vmatpush1.bf16.msra.mxu0 0
    %1458 = vmatprep.mubr.bf16.mxu0 0
    %1459 = vmatmul.mubr.bf16.gmra.mrb[0].mxu0 %v1424
    %v1460 = vpop.f32.mrb[0].mxu0
    %v1461 = vadd.f32 %v1397, %v1460
    %v1462 = vpop.f32.mrb[0].mxu0
    %v1463 = vpop.f32.mrb[0].mxu0
    %v1464 = vadd.f32 %v1397, %v1463
    %v1465 = vpop.f32.mrb[0].mxu0
    %1466 = vdwg.mxu0
    %v1467 = vadd.f32 %v1316, %v1461
    %v1468 = vadd.f32 %v1317, %v1464
    %v1469 = vsel %vm134, %v1467, 0.0
    %1470 = vadd.xlane.f32.xlu0 %v1469
    %v1471 = vpop.xlane.xlu0 %1470
    %v1472 = vsel %vm134, %v1468, 0.0
    %1473 = vadd.xlane.f32.xlu0 %v1472
    %v1474 = vpop.xlane.xlu0 %1473
    %v1475 = vmul.f32 %v1471, %v141
    %v1476 = vmul.f32 %v1474, %v141
    %v1477 = vsub.f32 %v1467, %v1475
    %v1478 = vsub.f32 %v1468, %v1476
    %v1479 = vmul.f32 %v1477, %v1477
    %v1480 = vmul.f32 %v1478, %v1478
    %v1481 = vsel %vm134, %v1479, 0.0
    %1482 = vadd.xlane.f32.xlu0 %v1481
    %v1483 = vpop.xlane.xlu0 %1482
    %v1484 = vsel %vm134, %v1480, 0.0
    %1485 = vadd.xlane.f32.xlu0 %v1484
    %v1486 = vpop.xlane.xlu0 %1485
    %v1487 = vmul.f32 %v1483, %v141
    %v1488 = vmul.f32 %v1486, %v141
    %v1489 = vadd.f32 %v1487, 1e-12
    %v1490 = vadd.f32 %v1488, 1e-12
    %v1491 = vrsqrt.pop %v1489
    %v1492 = vrsqrt.pop %v1490
    %v1493 = vmul.f32 %v1477, %v1491
    %v1494 = vmul.f32 %v1478, %v1492
    %v1495 = vlaneseq
    %v1496 = vshrl.u32 %v1495, 7
    %v1497 = vsub.s32 6, %v1496
    %v1498 = vrot.slane %v219, %v1497
    %v1499 = vmul.f32 %v1493, %v1498
    %v1500 = vmul.f32 %v1494, %v1498
    %v1501 = vlaneseq
    %v1502 = vshrl.u32 %v1501, 7
    %v1503 = vsub.s32 7, %v1502
    %v1504 = vrot.slane %v219, %v1503
    %v1505 = vadd.f32 %v1499, %v1504
    %v1506 = vadd.f32 %v1500, %v1504
    %s1507 = scalar_lea.vmem %s2, 32
    %v1508 = vld [vmem:[%s1507] sm:$0xff]
    %v1509 = vld [vmem:[%s1507 + $0x8] sm:$0xff]
    %v1510 = vld [vmem:[%s1507 + $0x10] sm:$0xff]
    %v1511 = vld [vmem:[%s1507 + $0x18] sm:$0xff]
    %s1512 = scalar_lea.vmem %s4, 8
    %v1513 = vld [vmem:[%s1512] sm:$0xff]
    %s1514 = scalar_lea.vmem %s3, 32
    %v1515 = vld [vmem:[%s1514] sm:$0xf]
    %v1516 = vld [vmem:[%s1514 + $0x4] sm:$0xf]
    %v1517 = vld [vmem:[%s1514 + $0x8] sm:$0xf]
    %v1518 = vld [vmem:[%s1514 + $0xc] sm:$0xf]
    %v1519 = vld [vmem:[%s1514 + $0x10] sm:$0xf]
    %v1520 = vld [vmem:[%s1514 + $0x14] sm:$0xf]
    %v1521 = vld [vmem:[%s1514 + $0x18] sm:$0xf]
    %v1522 = vld [vmem:[%s1514 + $0x1c] sm:$0xf]
    %v1523 = vpack.c.bf16 %v1506, %v1505
    %v1524 = vlaneseq
    %v1525 = vshrl.u32 %v1524, 7
    %v1526 = vsub.s32 0, %v1525
    %v1527 = vrot.slane %v1513, %v1526
    %v1532 = vunpack.c.l.b16 %v1508
    %v1533 = vunpack.c.l.b16 %v1509
    %v1534 = vunpack.c.l.b16 %v1510
    %v1535 = vunpack.c.l.b16 %v1511
    %v1536 = vpack.c.b16 %v1533, %v1532
    %v1537 = vpack.c.b16 %v1535, %v1534
    %v1541 = vsel %vm134, %v1523, 0
    %1543 = vmatprep.subr.bf16.mxu0 0
    %1544 = vmatpush1.bf16.msra.mxu0 %v1536
    %1545 = vmatprep.subr.bf16.mxu0 0
    %1546 = vmatpush1.bf16.msra.mxu0 %v1537
    %1547 = vmatprep.subr.bf16.mxu0 0
    %1548 = vmatpush1.bf16.msra.mxu0 0
    %1549 = vmatprep.subr.bf16.mxu0 0
    %1550 = vmatpush1.bf16.msra.mxu0 0
    %1551 = vmatprep.subr.bf16.mxu0 0
    %1552 = vmatpush1.bf16.msra.mxu0 0
    %1553 = vmatprep.subr.bf16.mxu0 0
    %1554 = vmatpush1.bf16.msra.mxu0 0
    %1555 = vmatprep.subr.bf16.mxu0 0
    %1556 = vmatpush1.bf16.msra.mxu0 0
    %1557 = vmatprep.subr.bf16.mxu0 0
    %1558 = vmatpush1.bf16.msra.mxu0 0
    %1559 = vmatprep.subr.bf16.mxu0 0
    %1560 = vmatpush1.bf16.msra.mxu0 0
    %1561 = vmatprep.subr.bf16.mxu0 0
    %1562 = vmatpush1.bf16.msra.mxu0 0
    %1563 = vmatprep.subr.bf16.mxu0 0
    %1564 = vmatpush1.bf16.msra.mxu0 0
    %1565 = vmatprep.subr.bf16.mxu0 0
    %1566 = vmatpush1.bf16.msra.mxu0 0
    %1567 = vmatprep.subr.bf16.mxu0 0
    %1568 = vmatpush1.bf16.msra.mxu0 0
    %1569 = vmatprep.subr.bf16.mxu0 0
    %1570 = vmatpush1.bf16.msra.mxu0 0
    %1571 = vmatprep.subr.bf16.mxu0 0
    %1572 = vmatpush1.bf16.msra.mxu0 0
    %1573 = vmatprep.subr.bf16.mxu0 0
    %1574 = vmatpush1.bf16.msra.mxu0 0
    %1575 = vmatprep.mubr.bf16.mxu0 0
    %1576 = vmatmul.mubr.bf16.gmra.mrb[0].mxu0 %v1541
    %v1577 = vpop.f32.mrb[0].mxu0
    %v1578 = vadd.f32 %v1527, %v1577
    %v1579 = vpop.f32.mrb[0].mxu0
    %v1580 = vpop.f32.mrb[0].mxu0
    %v1581 = vadd.f32 %v1527, %v1580
    %v1582 = vpop.f32.mrb[0].mxu0
    %1583 = vdwg.mxu0
    %1586 = vrot.lane.b32.xlu0 %v1578, 120
    %v1587 = vpop.permute.xlu0 %1586
    %1588 = vrot.lane.b32.xlu0 %v1581, 120
    %v1589 = vpop.permute.xlu0 %1588
    %1592 = vrot.lane.b32.xlu0 %v1578, 112
    %v1593 = vpop.permute.xlu0 %1592
    %1594 = vrot.lane.b32.xlu0 %v1581, 112
    %v1595 = vpop.permute.xlu0 %1594
    %1598 = vrot.lane.b32.xlu0 %v1578, 104
    %v1599 = vpop.permute.xlu0 %1598
    %1600 = vrot.lane.b32.xlu0 %v1581, 104
    %v1601 = vpop.permute.xlu0 %1600
    %v1604 = vpack.c.bf16 %v1578, %v1578
    %v1605 = vpack.c.bf16 %v1587, %v1587
    %v1606 = vpack.c.bf16 %v1593, %v1593
    %v1607 = vpack.c.bf16 %v1599, %v1599
    %v1608 = vpack.c.bf16 %v1581, %v1581
    %v1609 = vpack.c.bf16 %v1589, %v1589
    %v1610 = vpack.c.bf16 %v1595, %v1595
    %v1611 = vpack.c.bf16 %v1601, %v1601
    %1613 = vrot.lane.b32.xlu0 %v1604, 96
    %v1614 = vpop.permute.xlu0 %1613
    %v1616 = vsel %vm320, %v1604, 0
    %v1619 = vsel %vm320, %v1614, 0
    %1621 = vmatprep.subr.bf16.mxu0 0
    %1622 = vmatpush1.bf16.xpose.msra.mxu0 %v1619
    %1623 = vmatprep.subr.bf16.mxu0 0
    %1624 = vmatpush1.bf16.xpose.msra.mxu0 0
    %1625 = vmatprep.subr.bf16.mxu0 0
    %1626 = vmatpush1.bf16.xpose.msra.mxu0 0
    %1627 = vmatprep.subr.bf16.mxu0 0
    %1628 = vmatpush1.bf16.xpose.msra.mxu0 0
    %1629 = vmatprep.subr.bf16.mxu0 0
    %1630 = vmatpush1.bf16.xpose.msra.mxu0 0
    %1631 = vmatprep.subr.bf16.mxu0 0
    %1632 = vmatpush1.bf16.xpose.msra.mxu0 0
    %1633 = vmatprep.subr.bf16.mxu0 0
    %1634 = vmatpush1.bf16.xpose.msra.mxu0 0
    %1635 = vmatprep.subr.bf16.mxu0 0
    %1636 = vmatpush1.bf16.xpose.msra.mxu0 0
    %1637 = vmatprep.subr.bf16.mxu0 0
    %1638 = vmatpush1.bf16.xpose.msra.mxu0 0
    %1639 = vmatprep.subr.bf16.mxu0 0
    %1640 = vmatpush1.bf16.xpose.msra.mxu0 0
    %1641 = vmatprep.subr.bf16.mxu0 0
    %1642 = vmatpush1.bf16.xpose.msra.mxu0 0
    %1643 = vmatprep.subr.bf16.mxu0 0
    %1644 = vmatpush1.bf16.xpose.msra.mxu0 0
    %1645 = vmatprep.subr.bf16.mxu0 0
    %1646 = vmatpush1.bf16.xpose.msra.mxu0 0
    %1647 = vmatprep.subr.bf16.mxu0 0
    %1648 = vmatpush1.bf16.xpose.msra.mxu0 0
    %1649 = vmatprep.subr.bf16.mxu0 0
    %1650 = vmatpush1.bf16.xpose.msra.mxu0 0
    %1651 = vmatprep.subr.bf16.mxu0 0
    %1652 = vmatpush1.bf16.xpose.msra.mxu0 0
    %1653 = vmatprep.mubr.bf16.mxu0 0
    %1654 = vmatmul.mubr.bf16.gmra.mrb[0].mxu0 %v1616
    %v1655 = vpop.f32.mrb[0].mxu0
    %v1656 = vadd.f32 %v213, %v1655
    %v1657 = vpop.f32.mrb[0].mxu0
    %v1658 = vpop.f32.mrb[0].mxu0
    %v1659 = vpop.f32.mrb[0].mxu0
    %1660 = vdwg.mxu0
    %1662 = vrot.lane.b32.xlu0 %v1605, 96
    %v1663 = vpop.permute.xlu0 %1662
    %v1665 = vsel %vm320, %v1605, 0
    %v1668 = vsel %vm320, %v1663, 0
    %1670 = vmatprep.subr.bf16.mxu0 0
    %1671 = vmatpush1.bf16.xpose.msra.mxu0 %v1668
    %1672 = vmatprep.subr.bf16.mxu0 0
    %1673 = vmatpush1.bf16.xpose.msra.mxu0 0
    %1674 = vmatprep.subr.bf16.mxu0 0
    %1675 = vmatpush1.bf16.xpose.msra.mxu0 0
    %1676 = vmatprep.subr.bf16.mxu0 0
    %1677 = vmatpush1.bf16.xpose.msra.mxu0 0
    %1678 = vmatprep.subr.bf16.mxu0 0
    %1679 = vmatpush1.bf16.xpose.msra.mxu0 0
    %1680 = vmatprep.subr.bf16.mxu0 0
    %1681 = vmatpush1.bf16.xpose.msra.mxu0 0
    %1682 = vmatprep.subr.bf16.mxu0 0
    %1683 = vmatpush1.bf16.xpose.msra.mxu0 0
    %1684 = vmatprep.subr.bf16.mxu0 0
    %1685 = vmatpush1.bf16.xpose.msra.mxu0 0
    %1686 = vmatprep.subr.bf16.mxu0 0
    %1687 = vmatpush1.bf16.xpose.msra.mxu0 0
    %1688 = vmatprep.subr.bf16.mxu0 0
    %1689 = vmatpush1.bf16.xpose.msra.mxu0 0
    %1690 = vmatprep.subr.bf16.mxu0 0
    %1691 = vmatpush1.bf16.xpose.msra.mxu0 0
    %1692 = vmatprep.subr.bf16.mxu0 0
    %1693 = vmatpush1.bf16.xpose.msra.mxu0 0
    %1694 = vmatprep.subr.bf16.mxu0 0
    %1695 = vmatpush1.bf16.xpose.msra.mxu0 0
    %1696 = vmatprep.subr.bf16.mxu0 0
    %1697 = vmatpush1.bf16.xpose.msra.mxu0 0
    %1698 = vmatprep.subr.bf16.mxu0 0
    %1699 = vmatpush1.bf16.xpose.msra.mxu0 0
    %1700 = vmatprep.subr.bf16.mxu0 0
    %1701 = vmatpush1.bf16.xpose.msra.mxu0 0
    %1702 = vmatprep.mubr.bf16.mxu0 0
    %1703 = vmatmul.mubr.bf16.gmra.mrb[0].mxu0 %v1665
    %v1704 = vpop.f32.mrb[0].mxu0
    %v1705 = vadd.f32 %v213, %v1704
    %v1706 = vpop.f32.mrb[0].mxu0
    %v1707 = vpop.f32.mrb[0].mxu0
    %v1708 = vpop.f32.mrb[0].mxu0
    %1709 = vdwg.mxu0
    %1711 = vrot.lane.b32.xlu0 %v1606, 96
    %v1712 = vpop.permute.xlu0 %1711
    %v1714 = vsel %vm320, %v1606, 0
    %v1717 = vsel %vm320, %v1712, 0
    %1719 = vmatprep.subr.bf16.mxu0 0
    %1720 = vmatpush1.bf16.xpose.msra.mxu0 %v1717
    %1721 = vmatprep.subr.bf16.mxu0 0
    %1722 = vmatpush1.bf16.xpose.msra.mxu0 0
    %1723 = vmatprep.subr.bf16.mxu0 0
    %1724 = vmatpush1.bf16.xpose.msra.mxu0 0
    %1725 = vmatprep.subr.bf16.mxu0 0
    %1726 = vmatpush1.bf16.xpose.msra.mxu0 0
    %1727 = vmatprep.subr.bf16.mxu0 0
    %1728 = vmatpush1.bf16.xpose.msra.mxu0 0
    %1729 = vmatprep.subr.bf16.mxu0 0
    %1730 = vmatpush1.bf16.xpose.msra.mxu0 0
    %1731 = vmatprep.subr.bf16.mxu0 0
    %1732 = vmatpush1.bf16.xpose.msra.mxu0 0
    %1733 = vmatprep.subr.bf16.mxu0 0
    %1734 = vmatpush1.bf16.xpose.msra.mxu0 0
    %1735 = vmatprep.subr.bf16.mxu0 0
    %1736 = vmatpush1.bf16.xpose.msra.mxu0 0
    %1737 = vmatprep.subr.bf16.mxu0 0
    %1738 = vmatpush1.bf16.xpose.msra.mxu0 0
    %1739 = vmatprep.subr.bf16.mxu0 0
    %1740 = vmatpush1.bf16.xpose.msra.mxu0 0
    %1741 = vmatprep.subr.bf16.mxu0 0
    %1742 = vmatpush1.bf16.xpose.msra.mxu0 0
    %1743 = vmatprep.subr.bf16.mxu0 0
    %1744 = vmatpush1.bf16.xpose.msra.mxu0 0
    %1745 = vmatprep.subr.bf16.mxu0 0
    %1746 = vmatpush1.bf16.xpose.msra.mxu0 0
    %1747 = vmatprep.subr.bf16.mxu0 0
    %1748 = vmatpush1.bf16.xpose.msra.mxu0 0
    %1749 = vmatprep.subr.bf16.mxu0 0
    %1750 = vmatpush1.bf16.xpose.msra.mxu0 0
    %1751 = vmatprep.mubr.bf16.mxu0 0
    %1752 = vmatmul.mubr.bf16.gmra.mrb[0].mxu0 %v1714
    %v1753 = vpop.f32.mrb[0].mxu0
    %v1754 = vadd.f32 %v213, %v1753
    %v1755 = vpop.f32.mrb[0].mxu0
    %v1756 = vpop.f32.mrb[0].mxu0
    %v1757 = vpop.f32.mrb[0].mxu0
    %1758 = vdwg.mxu0
    %1760 = vrot.lane.b32.xlu0 %v1607, 96
    %v1761 = vpop.permute.xlu0 %1760
    %v1763 = vsel %vm320, %v1607, 0
    %v1766 = vsel %vm320, %v1761, 0
    %1768 = vmatprep.subr.bf16.mxu0 0
    %1769 = vmatpush1.bf16.xpose.msra.mxu0 %v1766
    %1770 = vmatprep.subr.bf16.mxu0 0
    %1771 = vmatpush1.bf16.xpose.msra.mxu0 0
    %1772 = vmatprep.subr.bf16.mxu0 0
    %1773 = vmatpush1.bf16.xpose.msra.mxu0 0
    %1774 = vmatprep.subr.bf16.mxu0 0
    %1775 = vmatpush1.bf16.xpose.msra.mxu0 0
    %1776 = vmatprep.subr.bf16.mxu0 0
    %1777 = vmatpush1.bf16.xpose.msra.mxu0 0
    %1778 = vmatprep.subr.bf16.mxu0 0
    %1779 = vmatpush1.bf16.xpose.msra.mxu0 0
    %1780 = vmatprep.subr.bf16.mxu0 0
    %1781 = vmatpush1.bf16.xpose.msra.mxu0 0
    %1782 = vmatprep.subr.bf16.mxu0 0
    %1783 = vmatpush1.bf16.xpose.msra.mxu0 0
    %1784 = vmatprep.subr.bf16.mxu0 0
    %1785 = vmatpush1.bf16.xpose.msra.mxu0 0
    %1786 = vmatprep.subr.bf16.mxu0 0
    %1787 = vmatpush1.bf16.xpose.msra.mxu0 0
    %1788 = vmatprep.subr.bf16.mxu0 0
    %1789 = vmatpush1.bf16.xpose.msra.mxu0 0
    %1790 = vmatprep.subr.bf16.mxu0 0
    %1791 = vmatpush1.bf16.xpose.msra.mxu0 0
    %1792 = vmatprep.subr.bf16.mxu0 0
    %1793 = vmatpush1.bf16.xpose.msra.mxu0 0
    %1794 = vmatprep.subr.bf16.mxu0 0
    %1795 = vmatpush1.bf16.xpose.msra.mxu0 0
    %1796 = vmatprep.subr.bf16.mxu0 0
    %1797 = vmatpush1.bf16.xpose.msra.mxu0 0
    %1798 = vmatprep.subr.bf16.mxu0 0
    %1799 = vmatpush1.bf16.xpose.msra.mxu0 0
    %1800 = vmatprep.mubr.bf16.mxu0 0
    %1801 = vmatmul.mubr.bf16.gmra.mrb[0].mxu0 %v1763
    %v1802 = vpop.f32.mrb[0].mxu0
    %v1803 = vadd.f32 %v213, %v1802
    %v1804 = vpop.f32.mrb[0].mxu0
    %v1805 = vpop.f32.mrb[0].mxu0
    %v1806 = vpop.f32.mrb[0].mxu0
    %1807 = vdwg.mxu0
    %1809 = vrot.lane.b32.xlu0 %v1608, 96
    %v1810 = vpop.permute.xlu0 %1809
    %v1812 = vsel %vm320, %v1608, 0
    %v1815 = vsel %vm320, %v1810, 0
    %1817 = vmatprep.subr.bf16.mxu0 0
    %1818 = vmatpush1.bf16.xpose.msra.mxu0 %v1815
    %1819 = vmatprep.subr.bf16.mxu0 0
    %1820 = vmatpush1.bf16.xpose.msra.mxu0 0
    %1821 = vmatprep.subr.bf16.mxu0 0
    %1822 = vmatpush1.bf16.xpose.msra.mxu0 0
    %1823 = vmatprep.subr.bf16.mxu0 0
    %1824 = vmatpush1.bf16.xpose.msra.mxu0 0
    %1825 = vmatprep.subr.bf16.mxu0 0
    %1826 = vmatpush1.bf16.xpose.msra.mxu0 0
    %1827 = vmatprep.subr.bf16.mxu0 0
    %1828 = vmatpush1.bf16.xpose.msra.mxu0 0
    %1829 = vmatprep.subr.bf16.mxu0 0
    %1830 = vmatpush1.bf16.xpose.msra.mxu0 0
    %1831 = vmatprep.subr.bf16.mxu0 0
    %1832 = vmatpush1.bf16.xpose.msra.mxu0 0
    %1833 = vmatprep.subr.bf16.mxu0 0
    %1834 = vmatpush1.bf16.xpose.msra.mxu0 0
    %1835 = vmatprep.subr.bf16.mxu0 0
    %1836 = vmatpush1.bf16.xpose.msra.mxu0 0
    %1837 = vmatprep.subr.bf16.mxu0 0
    %1838 = vmatpush1.bf16.xpose.msra.mxu0 0
    %1839 = vmatprep.subr.bf16.mxu0 0
    %1840 = vmatpush1.bf16.xpose.msra.mxu0 0
    %1841 = vmatprep.subr.bf16.mxu0 0
    %1842 = vmatpush1.bf16.xpose.msra.mxu0 0
    %1843 = vmatprep.subr.bf16.mxu0 0
    %1844 = vmatpush1.bf16.xpose.msra.mxu0 0
    %1845 = vmatprep.subr.bf16.mxu0 0
    %1846 = vmatpush1.bf16.xpose.msra.mxu0 0
    %1847 = vmatprep.subr.bf16.mxu0 0
    %1848 = vmatpush1.bf16.xpose.msra.mxu0 0
    %1849 = vmatprep.mubr.bf16.mxu0 0
    %1850 = vmatmul.mubr.bf16.gmra.mrb[0].mxu0 %v1812
    %v1851 = vpop.f32.mrb[0].mxu0
    %v1852 = vadd.f32 %v214, %v1851
    %v1853 = vpop.f32.mrb[0].mxu0
    %v1854 = vpop.f32.mrb[0].mxu0
    %v1855 = vpop.f32.mrb[0].mxu0
    %1856 = vdwg.mxu0
    %1858 = vrot.lane.b32.xlu0 %v1609, 96
    %v1859 = vpop.permute.xlu0 %1858
    %v1861 = vsel %vm320, %v1609, 0
    %v1864 = vsel %vm320, %v1859, 0
    %1866 = vmatprep.subr.bf16.mxu0 0
    %1867 = vmatpush1.bf16.xpose.msra.mxu0 %v1864
    %1868 = vmatprep.subr.bf16.mxu0 0
    %1869 = vmatpush1.bf16.xpose.msra.mxu0 0
    %1870 = vmatprep.subr.bf16.mxu0 0
    %1871 = vmatpush1.bf16.xpose.msra.mxu0 0
    %1872 = vmatprep.subr.bf16.mxu0 0
    %1873 = vmatpush1.bf16.xpose.msra.mxu0 0
    %1874 = vmatprep.subr.bf16.mxu0 0
    %1875 = vmatpush1.bf16.xpose.msra.mxu0 0
    %1876 = vmatprep.subr.bf16.mxu0 0
    %1877 = vmatpush1.bf16.xpose.msra.mxu0 0
    %1878 = vmatprep.subr.bf16.mxu0 0
    %1879 = vmatpush1.bf16.xpose.msra.mxu0 0
    %1880 = vmatprep.subr.bf16.mxu0 0
    %1881 = vmatpush1.bf16.xpose.msra.mxu0 0
    %1882 = vmatprep.subr.bf16.mxu0 0
    %1883 = vmatpush1.bf16.xpose.msra.mxu0 0
    %1884 = vmatprep.subr.bf16.mxu0 0
    %1885 = vmatpush1.bf16.xpose.msra.mxu0 0
    %1886 = vmatprep.subr.bf16.mxu0 0
    %1887 = vmatpush1.bf16.xpose.msra.mxu0 0
    %1888 = vmatprep.subr.bf16.mxu0 0
    %1889 = vmatpush1.bf16.xpose.msra.mxu0 0
    %1890 = vmatprep.subr.bf16.mxu0 0
    %1891 = vmatpush1.bf16.xpose.msra.mxu0 0
    %1892 = vmatprep.subr.bf16.mxu0 0
    %1893 = vmatpush1.bf16.xpose.msra.mxu0 0
    %1894 = vmatprep.subr.bf16.mxu0 0
    %1895 = vmatpush1.bf16.xpose.msra.mxu0 0
    %1896 = vmatprep.subr.bf16.mxu0 0
    %1897 = vmatpush1.bf16.xpose.msra.mxu0 0
    %1898 = vmatprep.mubr.bf16.mxu0 0
    %1899 = vmatmul.mubr.bf16.gmra.mrb[0].mxu0 %v1861
    %v1900 = vpop.f32.mrb[0].mxu0
    %v1901 = vadd.f32 %v214, %v1900
    %v1902 = vpop.f32.mrb[0].mxu0
    %v1903 = vpop.f32.mrb[0].mxu0
    %v1904 = vpop.f32.mrb[0].mxu0
    %1905 = vdwg.mxu0
    %1907 = vrot.lane.b32.xlu0 %v1610, 96
    %v1908 = vpop.permute.xlu0 %1907
    %v1910 = vsel %vm320, %v1610, 0
    %v1913 = vsel %vm320, %v1908, 0
    %1915 = vmatprep.subr.bf16.mxu0 0
    %1916 = vmatpush1.bf16.xpose.msra.mxu0 %v1913
    %1917 = vmatprep.subr.bf16.mxu0 0
    %1918 = vmatpush1.bf16.xpose.msra.mxu0 0
    %1919 = vmatprep.subr.bf16.mxu0 0
    %1920 = vmatpush1.bf16.xpose.msra.mxu0 0
    %1921 = vmatprep.subr.bf16.mxu0 0
    %1922 = vmatpush1.bf16.xpose.msra.mxu0 0
    %1923 = vmatprep.subr.bf16.mxu0 0
    %1924 = vmatpush1.bf16.xpose.msra.mxu0 0
    %1925 = vmatprep.subr.bf16.mxu0 0
    %1926 = vmatpush1.bf16.xpose.msra.mxu0 0
    %1927 = vmatprep.subr.bf16.mxu0 0
    %1928 = vmatpush1.bf16.xpose.msra.mxu0 0
    %1929 = vmatprep.subr.bf16.mxu0 0
    %1930 = vmatpush1.bf16.xpose.msra.mxu0 0
    %1931 = vmatprep.subr.bf16.mxu0 0
    %1932 = vmatpush1.bf16.xpose.msra.mxu0 0
    %1933 = vmatprep.subr.bf16.mxu0 0
    %1934 = vmatpush1.bf16.xpose.msra.mxu0 0
    %1935 = vmatprep.subr.bf16.mxu0 0
    %1936 = vmatpush1.bf16.xpose.msra.mxu0 0
    %1937 = vmatprep.subr.bf16.mxu0 0
    %1938 = vmatpush1.bf16.xpose.msra.mxu0 0
    %1939 = vmatprep.subr.bf16.mxu0 0
    %1940 = vmatpush1.bf16.xpose.msra.mxu0 0
    %1941 = vmatprep.subr.bf16.mxu0 0
    %1942 = vmatpush1.bf16.xpose.msra.mxu0 0
    %1943 = vmatprep.subr.bf16.mxu0 0
    %1944 = vmatpush1.bf16.xpose.msra.mxu0 0
    %1945 = vmatprep.subr.bf16.mxu0 0
    %1946 = vmatpush1.bf16.xpose.msra.mxu0 0
    %1947 = vmatprep.mubr.bf16.mxu0 0
    %1948 = vmatmul.mubr.bf16.gmra.mrb[0].mxu0 %v1910
    %v1949 = vpop.f32.mrb[0].mxu0
    %v1950 = vadd.f32 %v214, %v1949
    %v1951 = vpop.f32.mrb[0].mxu0
    %v1952 = vpop.f32.mrb[0].mxu0
    %v1953 = vpop.f32.mrb[0].mxu0
    %1954 = vdwg.mxu0
    %1956 = vrot.lane.b32.xlu0 %v1611, 96
    %v1957 = vpop.permute.xlu0 %1956
    %v1959 = vsel %vm320, %v1611, 0
    %v1962 = vsel %vm320, %v1957, 0
    %1964 = vmatprep.subr.bf16.mxu0 0
    %1965 = vmatpush1.bf16.xpose.msra.mxu0 %v1962
    %1966 = vmatprep.subr.bf16.mxu0 0
    %1967 = vmatpush1.bf16.xpose.msra.mxu0 0
    %1968 = vmatprep.subr.bf16.mxu0 0
    %1969 = vmatpush1.bf16.xpose.msra.mxu0 0
    %1970 = vmatprep.subr.bf16.mxu0 0
    %1971 = vmatpush1.bf16.xpose.msra.mxu0 0
    %1972 = vmatprep.subr.bf16.mxu0 0
    %1973 = vmatpush1.bf16.xpose.msra.mxu0 0
    %1974 = vmatprep.subr.bf16.mxu0 0
    %1975 = vmatpush1.bf16.xpose.msra.mxu0 0
    %1976 = vmatprep.subr.bf16.mxu0 0
    %1977 = vmatpush1.bf16.xpose.msra.mxu0 0
    %1978 = vmatprep.subr.bf16.mxu0 0
    %1979 = vmatpush1.bf16.xpose.msra.mxu0 0
    %1980 = vmatprep.subr.bf16.mxu0 0
    %1981 = vmatpush1.bf16.xpose.msra.mxu0 0
    %1982 = vmatprep.subr.bf16.mxu0 0
    %1983 = vmatpush1.bf16.xpose.msra.mxu0 0
    %1984 = vmatprep.subr.bf16.mxu0 0
    %1985 = vmatpush1.bf16.xpose.msra.mxu0 0
    %1986 = vmatprep.subr.bf16.mxu0 0
    %1987 = vmatpush1.bf16.xpose.msra.mxu0 0
    %1988 = vmatprep.subr.bf16.mxu0 0
    %1989 = vmatpush1.bf16.xpose.msra.mxu0 0
    %1990 = vmatprep.subr.bf16.mxu0 0
    %1991 = vmatpush1.bf16.xpose.msra.mxu0 0
    %1992 = vmatprep.subr.bf16.mxu0 0
    %1993 = vmatpush1.bf16.xpose.msra.mxu0 0
    %1994 = vmatprep.subr.bf16.mxu0 0
    %1995 = vmatpush1.bf16.xpose.msra.mxu0 0
    %1996 = vmatprep.mubr.bf16.mxu0 0
    %1997 = vmatmul.mubr.bf16.gmra.mrb[0].mxu0 %v1959
    %v1998 = vpop.f32.mrb[0].mxu0
    %v1999 = vadd.f32 %v214, %v1998
    %v2000 = vpop.f32.mrb[0].mxu0
    %v2001 = vpop.f32.mrb[0].mxu0
    %v2002 = vpop.f32.mrb[0].mxu0
    %2003 = vdwg.mxu0
    %v2004 = vsel %vm320, %v1656, -inf
    %2005 = vmax.xlane.f32.xlu0 %v2004
    %v2006 = vpop.xlane.xlu0 %2005
    %v2007 = vsel %vm320, %v1705, -inf
    %2008 = vmax.xlane.f32.xlu0 %v2007
    %v2009 = vpop.xlane.xlu0 %2008
    %v2010 = vsel %vm320, %v1754, -inf
    %2011 = vmax.xlane.f32.xlu0 %v2010
    %v2012 = vpop.xlane.xlu0 %2011
    %v2013 = vsel %vm320, %v1803, -inf
    %2014 = vmax.xlane.f32.xlu0 %v2013
    %v2015 = vpop.xlane.xlu0 %2014
    %v2016 = vsel %vm320, %v1852, -inf
    %2017 = vmax.xlane.f32.xlu0 %v2016
    %v2018 = vpop.xlane.xlu0 %2017
    %v2019 = vsel %vm320, %v1901, -inf
    %2020 = vmax.xlane.f32.xlu0 %v2019
    %v2021 = vpop.xlane.xlu0 %2020
    %v2022 = vsel %vm320, %v1950, -inf
    %2023 = vmax.xlane.f32.xlu0 %v2022
    %v2024 = vpop.xlane.xlu0 %2023
    %v2025 = vsel %vm320, %v1999, -inf
    %2026 = vmax.xlane.f32.xlu0 %v2025
    %v2027 = vpop.xlane.xlu0 %2026
    %v2028 = vsub.f32 %v1656, %v2006
    %v2029 = vsub.f32 %v1705, %v2009
    %v2030 = vsub.f32 %v1754, %v2012
    %v2031 = vsub.f32 %v1803, %v2015
    %v2032 = vsub.f32 %v1852, %v2018
    %v2033 = vsub.f32 %v1901, %v2021
    %v2034 = vsub.f32 %v1950, %v2024
    %v2035 = vsub.f32 %v1999, %v2027
    %v2036 = vmul.f32 %v2028, 1.442695
    %v2037 = vpow.pop %v2036
    %v2038 = vmul.f32 %v2029, 1.442695
    %v2039 = vpow.pop %v2038
    %v2040 = vmul.f32 %v2030, 1.442695
    %v2041 = vpow.pop %v2040
    %v2042 = vmul.f32 %v2031, 1.442695
    %v2043 = vpow.pop %v2042
    %v2044 = vmul.f32 %v2032, 1.442695
    %v2045 = vpow.pop %v2044
    %v2046 = vmul.f32 %v2033, 1.442695
    %v2047 = vpow.pop %v2046
    %v2048 = vmul.f32 %v2034, 1.442695
    %v2049 = vpow.pop %v2048
    %v2050 = vmul.f32 %v2035, 1.442695
    %v2051 = vpow.pop %v2050
    %v2052 = vsel %vm320, %v2037, 0.0
    %2053 = vadd.xlane.f32.xlu0 %v2052
    %v2054 = vpop.xlane.xlu0 %2053
    %v2055 = vsel %vm320, %v2039, 0.0
    %2056 = vadd.xlane.f32.xlu0 %v2055
    %v2057 = vpop.xlane.xlu0 %2056
    %v2058 = vsel %vm320, %v2041, 0.0
    %2059 = vadd.xlane.f32.xlu0 %v2058
    %v2060 = vpop.xlane.xlu0 %2059
    %v2061 = vsel %vm320, %v2043, 0.0
    %2062 = vadd.xlane.f32.xlu0 %v2061
    %v2063 = vpop.xlane.xlu0 %2062
    %v2064 = vsel %vm320, %v2045, 0.0
    %2065 = vadd.xlane.f32.xlu0 %v2064
    %v2066 = vpop.xlane.xlu0 %2065
    %v2067 = vsel %vm320, %v2047, 0.0
    %2068 = vadd.xlane.f32.xlu0 %v2067
    %v2069 = vpop.xlane.xlu0 %2068
    %v2070 = vsel %vm320, %v2049, 0.0
    %2071 = vadd.xlane.f32.xlu0 %v2070
    %v2072 = vpop.xlane.xlu0 %2071
    %v2073 = vsel %vm320, %v2051, 0.0
    %2074 = vadd.xlane.f32.xlu0 %v2073
    %v2075 = vpop.xlane.xlu0 %2074
    %v2076 = vrcp.pop %v2054
    %v2077 = vrcp.pop %v2057
    %v2078 = vrcp.pop %v2060
    %v2079 = vrcp.pop %v2063
    %v2080 = vrcp.pop %v2066
    %v2081 = vrcp.pop %v2069
    %v2082 = vrcp.pop %v2072
    %v2083 = vrcp.pop %v2075
    %v2084 = vmul.f32 %v2037, %v2076
    %v2085 = vmul.f32 %v2039, %v2077
    %v2086 = vmul.f32 %v2041, %v2078
    %v2087 = vmul.f32 %v2043, %v2079
    %v2088 = vmul.f32 %v2045, %v2080
    %v2089 = vmul.f32 %v2047, %v2081
    %v2090 = vmul.f32 %v2049, %v2082
    %v2091 = vmul.f32 %v2051, %v2083
    %v2092 = vpack.c.bf16 %v2084, %v2084
    %v2093 = vpack.c.bf16 %v2085, %v2085
    %v2094 = vpack.c.bf16 %v2086, %v2086
    %v2095 = vpack.c.bf16 %v2087, %v2087
    %v2096 = vpack.c.bf16 %v2088, %v2088
    %v2097 = vpack.c.bf16 %v2089, %v2089
    %v2098 = vpack.c.bf16 %v2090, %v2090
    %v2099 = vpack.c.bf16 %v2091, %v2091
    %2100 = vrot.lane.b32.xlu0 %v1604, 64
    %v2101 = vpop.permute.xlu0 %2100
    %v2103 = vsel %vm320, %v2092, 0
    %v2106 = vsel %vm811, %v2101, 0
    %2108 = vmatprep.subr.bf16.mxu0 0
    %2109 = vmatpush1.bf16.msra.mxu0 %v2106
    %2110 = vmatprep.subr.bf16.mxu0 0
    %2111 = vmatpush1.bf16.msra.mxu0 0
    %2112 = vmatprep.subr.bf16.mxu0 0
    %2113 = vmatpush1.bf16.msra.mxu0 0
    %2114 = vmatprep.subr.bf16.mxu0 0
    %2115 = vmatpush1.bf16.msra.mxu0 0
    %2116 = vmatprep.subr.bf16.mxu0 0
    %2117 = vmatpush1.bf16.msra.mxu0 0
    %2118 = vmatprep.subr.bf16.mxu0 0
    %2119 = vmatpush1.bf16.msra.mxu0 0
    %2120 = vmatprep.subr.bf16.mxu0 0
    %2121 = vmatpush1.bf16.msra.mxu0 0
    %2122 = vmatprep.subr.bf16.mxu0 0
    %2123 = vmatpush1.bf16.msra.mxu0 0
    %2124 = vmatprep.subr.bf16.mxu0 0
    %2125 = vmatpush1.bf16.msra.mxu0 0
    %2126 = vmatprep.subr.bf16.mxu0 0
    %2127 = vmatpush1.bf16.msra.mxu0 0
    %2128 = vmatprep.subr.bf16.mxu0 0
    %2129 = vmatpush1.bf16.msra.mxu0 0
    %2130 = vmatprep.subr.bf16.mxu0 0
    %2131 = vmatpush1.bf16.msra.mxu0 0
    %2132 = vmatprep.subr.bf16.mxu0 0
    %2133 = vmatpush1.bf16.msra.mxu0 0
    %2134 = vmatprep.subr.bf16.mxu0 0
    %2135 = vmatpush1.bf16.msra.mxu0 0
    %2136 = vmatprep.subr.bf16.mxu0 0
    %2137 = vmatpush1.bf16.msra.mxu0 0
    %2138 = vmatprep.subr.bf16.mxu0 0
    %2139 = vmatpush1.bf16.msra.mxu0 0
    %2140 = vmatprep.mubr.bf16.mxu0 0
    %2141 = vmatmul.mubr.bf16.gmra.mrb[0].mxu0 %v2103
    %v2142 = vpop.f32.mrb[0].mxu0
    %v2143 = vadd.f32 0.0, %v2142
    %v2144 = vpop.f32.mrb[0].mxu0
    %v2145 = vpop.f32.mrb[0].mxu0
    %v2146 = vpop.f32.mrb[0].mxu0
    %2147 = vdwg.mxu0
    %2148 = vrot.lane.b32.xlu0 %v1605, 64
    %v2149 = vpop.permute.xlu0 %2148
    %v2151 = vsel %vm320, %v2093, 0
    %v2154 = vsel %vm811, %v2149, 0
    %2156 = vmatprep.subr.bf16.mxu0 0
    %2157 = vmatpush1.bf16.msra.mxu0 %v2154
    %2158 = vmatprep.subr.bf16.mxu0 0
    %2159 = vmatpush1.bf16.msra.mxu0 0
    %2160 = vmatprep.subr.bf16.mxu0 0
    %2161 = vmatpush1.bf16.msra.mxu0 0
    %2162 = vmatprep.subr.bf16.mxu0 0
    %2163 = vmatpush1.bf16.msra.mxu0 0
    %2164 = vmatprep.subr.bf16.mxu0 0
    %2165 = vmatpush1.bf16.msra.mxu0 0
    %2166 = vmatprep.subr.bf16.mxu0 0
    %2167 = vmatpush1.bf16.msra.mxu0 0
    %2168 = vmatprep.subr.bf16.mxu0 0
    %2169 = vmatpush1.bf16.msra.mxu0 0
    %2170 = vmatprep.subr.bf16.mxu0 0
    %2171 = vmatpush1.bf16.msra.mxu0 0
    %2172 = vmatprep.subr.bf16.mxu0 0
    %2173 = vmatpush1.bf16.msra.mxu0 0
    %2174 = vmatprep.subr.bf16.mxu0 0
    %2175 = vmatpush1.bf16.msra.mxu0 0
    %2176 = vmatprep.subr.bf16.mxu0 0
    %2177 = vmatpush1.bf16.msra.mxu0 0
    %2178 = vmatprep.subr.bf16.mxu0 0
    %2179 = vmatpush1.bf16.msra.mxu0 0
    %2180 = vmatprep.subr.bf16.mxu0 0
    %2181 = vmatpush1.bf16.msra.mxu0 0
    %2182 = vmatprep.subr.bf16.mxu0 0
    %2183 = vmatpush1.bf16.msra.mxu0 0
    %2184 = vmatprep.subr.bf16.mxu0 0
    %2185 = vmatpush1.bf16.msra.mxu0 0
    %2186 = vmatprep.subr.bf16.mxu0 0
    %2187 = vmatpush1.bf16.msra.mxu0 0
    %2188 = vmatprep.mubr.bf16.mxu0 0
    %2189 = vmatmul.mubr.bf16.gmra.mrb[0].mxu0 %v2151
    %v2190 = vpop.f32.mrb[0].mxu0
    %v2191 = vadd.f32 0.0, %v2190
    %v2192 = vpop.f32.mrb[0].mxu0
    %v2193 = vpop.f32.mrb[0].mxu0
    %v2194 = vpop.f32.mrb[0].mxu0
    %2195 = vdwg.mxu0
    %2196 = vrot.lane.b32.xlu0 %v1606, 64
    %v2197 = vpop.permute.xlu0 %2196
    %v2199 = vsel %vm320, %v2094, 0
    %v2202 = vsel %vm811, %v2197, 0
    %2204 = vmatprep.subr.bf16.mxu0 0
    %2205 = vmatpush1.bf16.msra.mxu0 %v2202
    %2206 = vmatprep.subr.bf16.mxu0 0
    %2207 = vmatpush1.bf16.msra.mxu0 0
    %2208 = vmatprep.subr.bf16.mxu0 0
    %2209 = vmatpush1.bf16.msra.mxu0 0
    %2210 = vmatprep.subr.bf16.mxu0 0
    %2211 = vmatpush1.bf16.msra.mxu0 0
    %2212 = vmatprep.subr.bf16.mxu0 0
    %2213 = vmatpush1.bf16.msra.mxu0 0
    %2214 = vmatprep.subr.bf16.mxu0 0
    %2215 = vmatpush1.bf16.msra.mxu0 0
    %2216 = vmatprep.subr.bf16.mxu0 0
    %2217 = vmatpush1.bf16.msra.mxu0 0
    %2218 = vmatprep.subr.bf16.mxu0 0
    %2219 = vmatpush1.bf16.msra.mxu0 0
    %2220 = vmatprep.subr.bf16.mxu0 0
    %2221 = vmatpush1.bf16.msra.mxu0 0
    %2222 = vmatprep.subr.bf16.mxu0 0
    %2223 = vmatpush1.bf16.msra.mxu0 0
    %2224 = vmatprep.subr.bf16.mxu0 0
    %2225 = vmatpush1.bf16.msra.mxu0 0
    %2226 = vmatprep.subr.bf16.mxu0 0
    %2227 = vmatpush1.bf16.msra.mxu0 0
    %2228 = vmatprep.subr.bf16.mxu0 0
    %2229 = vmatpush1.bf16.msra.mxu0 0
    %2230 = vmatprep.subr.bf16.mxu0 0
    %2231 = vmatpush1.bf16.msra.mxu0 0
    %2232 = vmatprep.subr.bf16.mxu0 0
    %2233 = vmatpush1.bf16.msra.mxu0 0
    %2234 = vmatprep.subr.bf16.mxu0 0
    %2235 = vmatpush1.bf16.msra.mxu0 0
    %2236 = vmatprep.mubr.bf16.mxu0 0
    %2237 = vmatmul.mubr.bf16.gmra.mrb[0].mxu0 %v2199
    %v2238 = vpop.f32.mrb[0].mxu0
    %v2239 = vadd.f32 0.0, %v2238
    %v2240 = vpop.f32.mrb[0].mxu0
    %v2241 = vpop.f32.mrb[0].mxu0
    %v2242 = vpop.f32.mrb[0].mxu0
    %2243 = vdwg.mxu0
    %2244 = vrot.lane.b32.xlu0 %v1607, 64
    %v2245 = vpop.permute.xlu0 %2244
    %v2247 = vsel %vm320, %v2095, 0
    %v2250 = vsel %vm811, %v2245, 0
    %2252 = vmatprep.subr.bf16.mxu0 0
    %2253 = vmatpush1.bf16.msra.mxu0 %v2250
    %2254 = vmatprep.subr.bf16.mxu0 0
    %2255 = vmatpush1.bf16.msra.mxu0 0
    %2256 = vmatprep.subr.bf16.mxu0 0
    %2257 = vmatpush1.bf16.msra.mxu0 0
    %2258 = vmatprep.subr.bf16.mxu0 0
    %2259 = vmatpush1.bf16.msra.mxu0 0
    %2260 = vmatprep.subr.bf16.mxu0 0
    %2261 = vmatpush1.bf16.msra.mxu0 0
    %2262 = vmatprep.subr.bf16.mxu0 0
    %2263 = vmatpush1.bf16.msra.mxu0 0
    %2264 = vmatprep.subr.bf16.mxu0 0
    %2265 = vmatpush1.bf16.msra.mxu0 0
    %2266 = vmatprep.subr.bf16.mxu0 0
    %2267 = vmatpush1.bf16.msra.mxu0 0
    %2268 = vmatprep.subr.bf16.mxu0 0
    %2269 = vmatpush1.bf16.msra.mxu0 0
    %2270 = vmatprep.subr.bf16.mxu0 0
    %2271 = vmatpush1.bf16.msra.mxu0 0
    %2272 = vmatprep.subr.bf16.mxu0 0
    %2273 = vmatpush1.bf16.msra.mxu0 0
    %2274 = vmatprep.subr.bf16.mxu0 0
    %2275 = vmatpush1.bf16.msra.mxu0 0
    %2276 = vmatprep.subr.bf16.mxu0 0
    %2277 = vmatpush1.bf16.msra.mxu0 0
    %2278 = vmatprep.subr.bf16.mxu0 0
    %2279 = vmatpush1.bf16.msra.mxu0 0
    %2280 = vmatprep.subr.bf16.mxu0 0
    %2281 = vmatpush1.bf16.msra.mxu0 0
    %2282 = vmatprep.subr.bf16.mxu0 0
    %2283 = vmatpush1.bf16.msra.mxu0 0
    %2284 = vmatprep.mubr.bf16.mxu0 0
    %2285 = vmatmul.mubr.bf16.gmra.mrb[0].mxu0 %v2247
    %v2286 = vpop.f32.mrb[0].mxu0
    %v2287 = vadd.f32 0.0, %v2286
    %v2288 = vpop.f32.mrb[0].mxu0
    %v2289 = vpop.f32.mrb[0].mxu0
    %v2290 = vpop.f32.mrb[0].mxu0
    %2291 = vdwg.mxu0
    %2292 = vrot.lane.b32.xlu0 %v1608, 64
    %v2293 = vpop.permute.xlu0 %2292
    %v2295 = vsel %vm320, %v2096, 0
    %v2298 = vsel %vm811, %v2293, 0
    %2300 = vmatprep.subr.bf16.mxu0 0
    %2301 = vmatpush1.bf16.msra.mxu0 %v2298
    %2302 = vmatprep.subr.bf16.mxu0 0
    %2303 = vmatpush1.bf16.msra.mxu0 0
    %2304 = vmatprep.subr.bf16.mxu0 0
    %2305 = vmatpush1.bf16.msra.mxu0 0
    %2306 = vmatprep.subr.bf16.mxu0 0
    %2307 = vmatpush1.bf16.msra.mxu0 0
    %2308 = vmatprep.subr.bf16.mxu0 0
    %2309 = vmatpush1.bf16.msra.mxu0 0
    %2310 = vmatprep.subr.bf16.mxu0 0
    %2311 = vmatpush1.bf16.msra.mxu0 0
    %2312 = vmatprep.subr.bf16.mxu0 0
    %2313 = vmatpush1.bf16.msra.mxu0 0
    %2314 = vmatprep.subr.bf16.mxu0 0
    %2315 = vmatpush1.bf16.msra.mxu0 0
    %2316 = vmatprep.subr.bf16.mxu0 0
    %2317 = vmatpush1.bf16.msra.mxu0 0
    %2318 = vmatprep.subr.bf16.mxu0 0
    %2319 = vmatpush1.bf16.msra.mxu0 0
    %2320 = vmatprep.subr.bf16.mxu0 0
    %2321 = vmatpush1.bf16.msra.mxu0 0
    %2322 = vmatprep.subr.bf16.mxu0 0
    %2323 = vmatpush1.bf16.msra.mxu0 0
    %2324 = vmatprep.subr.bf16.mxu0 0
    %2325 = vmatpush1.bf16.msra.mxu0 0
    %2326 = vmatprep.subr.bf16.mxu0 0
    %2327 = vmatpush1.bf16.msra.mxu0 0
    %2328 = vmatprep.subr.bf16.mxu0 0
    %2329 = vmatpush1.bf16.msra.mxu0 0
    %2330 = vmatprep.subr.bf16.mxu0 0
    %2331 = vmatpush1.bf16.msra.mxu0 0
    %2332 = vmatprep.mubr.bf16.mxu0 0
    %2333 = vmatmul.mubr.bf16.gmra.mrb[0].mxu0 %v2295
    %v2334 = vpop.f32.mrb[0].mxu0
    %v2335 = vadd.f32 0.0, %v2334
    %v2336 = vpop.f32.mrb[0].mxu0
    %v2337 = vpop.f32.mrb[0].mxu0
    %v2338 = vpop.f32.mrb[0].mxu0
    %2339 = vdwg.mxu0
    %2340 = vrot.lane.b32.xlu0 %v1609, 64
    %v2341 = vpop.permute.xlu0 %2340
    %v2343 = vsel %vm320, %v2097, 0
    %v2346 = vsel %vm811, %v2341, 0
    %2348 = vmatprep.subr.bf16.mxu0 0
    %2349 = vmatpush1.bf16.msra.mxu0 %v2346
    %2350 = vmatprep.subr.bf16.mxu0 0
    %2351 = vmatpush1.bf16.msra.mxu0 0
    %2352 = vmatprep.subr.bf16.mxu0 0
    %2353 = vmatpush1.bf16.msra.mxu0 0
    %2354 = vmatprep.subr.bf16.mxu0 0
    %2355 = vmatpush1.bf16.msra.mxu0 0
    %2356 = vmatprep.subr.bf16.mxu0 0
    %2357 = vmatpush1.bf16.msra.mxu0 0
    %2358 = vmatprep.subr.bf16.mxu0 0
    %2359 = vmatpush1.bf16.msra.mxu0 0
    %2360 = vmatprep.subr.bf16.mxu0 0
    %2361 = vmatpush1.bf16.msra.mxu0 0
    %2362 = vmatprep.subr.bf16.mxu0 0
    %2363 = vmatpush1.bf16.msra.mxu0 0
    %2364 = vmatprep.subr.bf16.mxu0 0
    %2365 = vmatpush1.bf16.msra.mxu0 0
    %2366 = vmatprep.subr.bf16.mxu0 0
    %2367 = vmatpush1.bf16.msra.mxu0 0
    %2368 = vmatprep.subr.bf16.mxu0 0
    %2369 = vmatpush1.bf16.msra.mxu0 0
    %2370 = vmatprep.subr.bf16.mxu0 0
    %2371 = vmatpush1.bf16.msra.mxu0 0
    %2372 = vmatprep.subr.bf16.mxu0 0
    %2373 = vmatpush1.bf16.msra.mxu0 0
    %2374 = vmatprep.subr.bf16.mxu0 0
    %2375 = vmatpush1.bf16.msra.mxu0 0
    %2376 = vmatprep.subr.bf16.mxu0 0
    %2377 = vmatpush1.bf16.msra.mxu0 0
    %2378 = vmatprep.subr.bf16.mxu0 0
    %2379 = vmatpush1.bf16.msra.mxu0 0
    %2380 = vmatprep.mubr.bf16.mxu0 0
    %2381 = vmatmul.mubr.bf16.gmra.mrb[0].mxu0 %v2343
    %v2382 = vpop.f32.mrb[0].mxu0
    %v2383 = vadd.f32 0.0, %v2382
    %v2384 = vpop.f32.mrb[0].mxu0
    %v2385 = vpop.f32.mrb[0].mxu0
    %v2386 = vpop.f32.mrb[0].mxu0
    %2387 = vdwg.mxu0
    %2388 = vrot.lane.b32.xlu0 %v1610, 64
    %v2389 = vpop.permute.xlu0 %2388
    %v2391 = vsel %vm320, %v2098, 0
    %v2394 = vsel %vm811, %v2389, 0
    %2396 = vmatprep.subr.bf16.mxu0 0
    %2397 = vmatpush1.bf16.msra.mxu0 %v2394
    %2398 = vmatprep.subr.bf16.mxu0 0
    %2399 = vmatpush1.bf16.msra.mxu0 0
    %2400 = vmatprep.subr.bf16.mxu0 0
    %2401 = vmatpush1.bf16.msra.mxu0 0
    %2402 = vmatprep.subr.bf16.mxu0 0
    %2403 = vmatpush1.bf16.msra.mxu0 0
    %2404 = vmatprep.subr.bf16.mxu0 0
    %2405 = vmatpush1.bf16.msra.mxu0 0
    %2406 = vmatprep.subr.bf16.mxu0 0
    %2407 = vmatpush1.bf16.msra.mxu0 0
    %2408 = vmatprep.subr.bf16.mxu0 0
    %2409 = vmatpush1.bf16.msra.mxu0 0
    %2410 = vmatprep.subr.bf16.mxu0 0
    %2411 = vmatpush1.bf16.msra.mxu0 0
    %2412 = vmatprep.subr.bf16.mxu0 0
    %2413 = vmatpush1.bf16.msra.mxu0 0
    %2414 = vmatprep.subr.bf16.mxu0 0
    %2415 = vmatpush1.bf16.msra.mxu0 0
    %2416 = vmatprep.subr.bf16.mxu0 0
    %2417 = vmatpush1.bf16.msra.mxu0 0
    %2418 = vmatprep.subr.bf16.mxu0 0
    %2419 = vmatpush1.bf16.msra.mxu0 0
    %2420 = vmatprep.subr.bf16.mxu0 0
    %2421 = vmatpush1.bf16.msra.mxu0 0
    %2422 = vmatprep.subr.bf16.mxu0 0
    %2423 = vmatpush1.bf16.msra.mxu0 0
    %2424 = vmatprep.subr.bf16.mxu0 0
    %2425 = vmatpush1.bf16.msra.mxu0 0
    %2426 = vmatprep.subr.bf16.mxu0 0
    %2427 = vmatpush1.bf16.msra.mxu0 0
    %2428 = vmatprep.mubr.bf16.mxu0 0
    %2429 = vmatmul.mubr.bf16.gmra.mrb[0].mxu0 %v2391
    %v2430 = vpop.f32.mrb[0].mxu0
    %v2431 = vadd.f32 0.0, %v2430
    %v2432 = vpop.f32.mrb[0].mxu0
    %v2433 = vpop.f32.mrb[0].mxu0
    %v2434 = vpop.f32.mrb[0].mxu0
    %2435 = vdwg.mxu0
    %2436 = vrot.lane.b32.xlu0 %v1611, 64
    %v2437 = vpop.permute.xlu0 %2436
    %v2439 = vsel %vm320, %v2099, 0
    %v2442 = vsel %vm811, %v2437, 0
    %2444 = vmatprep.subr.bf16.mxu0 0
    %2445 = vmatpush1.bf16.msra.mxu0 %v2442
    %2446 = vmatprep.subr.bf16.mxu0 0
    %2447 = vmatpush1.bf16.msra.mxu0 0
    %2448 = vmatprep.subr.bf16.mxu0 0
    %2449 = vmatpush1.bf16.msra.mxu0 0
    %2450 = vmatprep.subr.bf16.mxu0 0
    %2451 = vmatpush1.bf16.msra.mxu0 0
    %2452 = vmatprep.subr.bf16.mxu0 0
    %2453 = vmatpush1.bf16.msra.mxu0 0
    %2454 = vmatprep.subr.bf16.mxu0 0
    %2455 = vmatpush1.bf16.msra.mxu0 0
    %2456 = vmatprep.subr.bf16.mxu0 0
    %2457 = vmatpush1.bf16.msra.mxu0 0
    %2458 = vmatprep.subr.bf16.mxu0 0
    %2459 = vmatpush1.bf16.msra.mxu0 0
    %2460 = vmatprep.subr.bf16.mxu0 0
    %2461 = vmatpush1.bf16.msra.mxu0 0
    %2462 = vmatprep.subr.bf16.mxu0 0
    %2463 = vmatpush1.bf16.msra.mxu0 0
    %2464 = vmatprep.subr.bf16.mxu0 0
    %2465 = vmatpush1.bf16.msra.mxu0 0
    %2466 = vmatprep.subr.bf16.mxu0 0
    %2467 = vmatpush1.bf16.msra.mxu0 0
    %2468 = vmatprep.subr.bf16.mxu0 0
    %2469 = vmatpush1.bf16.msra.mxu0 0
    %2470 = vmatprep.subr.bf16.mxu0 0
    %2471 = vmatpush1.bf16.msra.mxu0 0
    %2472 = vmatprep.subr.bf16.mxu0 0
    %2473 = vmatpush1.bf16.msra.mxu0 0
    %2474 = vmatprep.subr.bf16.mxu0 0
    %2475 = vmatpush1.bf16.msra.mxu0 0
    %2476 = vmatprep.mubr.bf16.mxu0 0
    %2477 = vmatmul.mubr.bf16.gmra.mrb[0].mxu0 %v2439
    %v2478 = vpop.f32.mrb[0].mxu0
    %v2479 = vadd.f32 0.0, %v2478
    %v2480 = vpop.f32.mrb[0].mxu0
    %v2481 = vpop.f32.mrb[0].mxu0
    %v2482 = vpop.f32.mrb[0].mxu0
    %2483 = vdwg.mxu0
    %2486 = vrot.lane.b32.xlu0 %v2191, 8
    %v2487 = vpop.permute.xlu0 %2486
    %2488 = vrot.lane.b32.xlu0 %v2383, 8
    %v2489 = vpop.permute.xlu0 %2488
    %2494 = vrot.lane.b32.xlu0 %v2239, 16
    %v2495 = vpop.permute.xlu0 %2494
    %2496 = vrot.lane.b32.xlu0 %v2431, 16
    %v2497 = vpop.permute.xlu0 %2496
    %2502 = vrot.lane.b32.xlu0 %v2287, 24
    %v2503 = vpop.permute.xlu0 %2502
    %2504 = vrot.lane.b32.xlu0 %v2479, 24
    %v2505 = vpop.permute.xlu0 %2504
    %v2508 = vsel %vm320, %v2143, %v2487
    %v2509 = vsel %vm320, %v2335, %v2489
    %v2510 = vsel %vm1217, %v2508, %v2495
    %v2511 = vsel %vm1217, %v2509, %v2497
    %v2512 = vsel %vm1220, %v2510, %v2503
    %v2513 = vsel %vm1220, %v2511, %v2505
    %v2514 = vpack.c.bf16 %v2513, %v2512
    %v2515 = vlaneseq
    %v2516 = vshrl.u32 %v2515, 7
    %v2517 = vsub.s32 1, %v2516
    %v2518 = vrot.slane %v1513, %v2517
    %2519 = vrot.lane.b32.xlu0 %v1536, 32
    %v2520 = vpop.permute.xlu0 %2519
    %2521 = vrot.lane.b32.xlu0 %v1537, 32
    %v2522 = vpop.permute.xlu0 %2521
    %v2526 = vsel %vm134, %v2514, 0
    %2528 = vmatprep.subr.bf16.mxu0 0
    %2529 = vmatpush1.bf16.msra.mxu0 %v2520
    %2530 = vmatprep.subr.bf16.mxu0 0
    %2531 = vmatpush1.bf16.msra.mxu0 %v2522
    %2532 = vmatprep.subr.bf16.mxu0 0
    %2533 = vmatpush1.bf16.msra.mxu0 0
    %2534 = vmatprep.subr.bf16.mxu0 0
    %2535 = vmatpush1.bf16.msra.mxu0 0
    %2536 = vmatprep.subr.bf16.mxu0 0
    %2537 = vmatpush1.bf16.msra.mxu0 0
    %2538 = vmatprep.subr.bf16.mxu0 0
    %2539 = vmatpush1.bf16.msra.mxu0 0
    %2540 = vmatprep.subr.bf16.mxu0 0
    %2541 = vmatpush1.bf16.msra.mxu0 0
    %2542 = vmatprep.subr.bf16.mxu0 0
    %2543 = vmatpush1.bf16.msra.mxu0 0
    %2544 = vmatprep.subr.bf16.mxu0 0
    %2545 = vmatpush1.bf16.msra.mxu0 0
    %2546 = vmatprep.subr.bf16.mxu0 0
    %2547 = vmatpush1.bf16.msra.mxu0 0
    %2548 = vmatprep.subr.bf16.mxu0 0
    %2549 = vmatpush1.bf16.msra.mxu0 0
    %2550 = vmatprep.subr.bf16.mxu0 0
    %2551 = vmatpush1.bf16.msra.mxu0 0
    %2552 = vmatprep.subr.bf16.mxu0 0
    %2553 = vmatpush1.bf16.msra.mxu0 0
    %2554 = vmatprep.subr.bf16.mxu0 0
    %2555 = vmatpush1.bf16.msra.mxu0 0
    %2556 = vmatprep.subr.bf16.mxu0 0
    %2557 = vmatpush1.bf16.msra.mxu0 0
    %2558 = vmatprep.subr.bf16.mxu0 0
    %2559 = vmatpush1.bf16.msra.mxu0 0
    %2560 = vmatprep.mubr.bf16.mxu0 0
    %2561 = vmatmul.mubr.bf16.gmra.mrb[0].mxu0 %v2526
    %v2562 = vpop.f32.mrb[0].mxu0
    %v2563 = vadd.f32 %v2518, %v2562
    %v2564 = vpop.f32.mrb[0].mxu0
    %v2565 = vpop.f32.mrb[0].mxu0
    %v2566 = vadd.f32 %v2518, %v2565
    %v2567 = vpop.f32.mrb[0].mxu0
    %2568 = vdwg.mxu0
    %v2569 = vadd.f32 %v1505, %v2563
    %v2570 = vadd.f32 %v1506, %v2566
    %v2571 = vsel %vm134, %v2569, 0.0
    %2572 = vadd.xlane.f32.xlu0 %v2571
    %v2573 = vpop.xlane.xlu0 %2572
    %v2574 = vsel %vm134, %v2570, 0.0
    %2575 = vadd.xlane.f32.xlu0 %v2574
    %v2576 = vpop.xlane.xlu0 %2575
    %v2577 = vmul.f32 %v2573, %v141
    %v2578 = vmul.f32 %v2576, %v141
    %v2579 = vsub.f32 %v2569, %v2577
    %v2580 = vsub.f32 %v2570, %v2578
    %v2581 = vmul.f32 %v2579, %v2579
    %v2582 = vmul.f32 %v2580, %v2580
    %v2583 = vsel %vm134, %v2581, 0.0
    %2584 = vadd.xlane.f32.xlu0 %v2583
    %v2585 = vpop.xlane.xlu0 %2584
    %v2586 = vsel %vm134, %v2582, 0.0
    %2587 = vadd.xlane.f32.xlu0 %v2586
    %v2588 = vpop.xlane.xlu0 %2587
    %v2589 = vmul.f32 %v2585, %v141
    %v2590 = vmul.f32 %v2588, %v141
    %v2591 = vadd.f32 %v2589, 1e-12
    %v2592 = vadd.f32 %v2590, 1e-12
    %v2593 = vrsqrt.pop %v2591
    %v2594 = vrsqrt.pop %v2592
    %v2595 = vmul.f32 %v2579, %v2593
    %v2596 = vmul.f32 %v2580, %v2594
    %v2597 = vlaneseq
    %v2598 = vshrl.u32 %v2597, 7
    %v2599 = vsub.s32 4, %v2598
    %v2600 = vrot.slane %v1513, %v2599
    %v2601 = vmul.f32 %v2595, %v2600
    %v2602 = vmul.f32 %v2596, %v2600
    %v2603 = vlaneseq
    %v2604 = vshrl.u32 %v2603, 7
    %v2605 = vsub.s32 5, %v2604
    %v2606 = vrot.slane %v1513, %v2605
    %v2607 = vadd.f32 %v2601, %v2606
    %v2608 = vadd.f32 %v2602, %v2606
    %v2609 = vpack.c.bf16 %v2608, %v2607
    %v2610 = vlaneseq
    %v2611 = vshrl.u32 %v2610, 7
    %v2612 = vsub.s32 2, %v2611
    %v2613 = vrot.slane %v1513, %v2612
    %v2614 = vunpack.c.h.b16 %v1508
    %v2615 = vunpack.c.h.b16 %v1509
    %v2616 = vunpack.c.h.b16 %v1510
    %v2617 = vunpack.c.h.b16 %v1511
    %v2618 = vpack.c.b16 %v2615, %v2614
    %v2619 = vpack.c.b16 %v2617, %v2616
    %v2623 = vsel %vm134, %v2609, 0
    %2625 = vmatprep.subr.bf16.mxu0 0
    %2626 = vmatpush1.bf16.msra.mxu0 %v2618
    %2627 = vmatprep.subr.bf16.mxu0 0
    %2628 = vmatpush1.bf16.msra.mxu0 %v2619
    %2629 = vmatprep.subr.bf16.mxu0 0
    %2630 = vmatpush1.bf16.msra.mxu0 0
    %2631 = vmatprep.subr.bf16.mxu0 0
    %2632 = vmatpush1.bf16.msra.mxu0 0
    %2633 = vmatprep.subr.bf16.mxu0 0
    %2634 = vmatpush1.bf16.msra.mxu0 0
    %2635 = vmatprep.subr.bf16.mxu0 0
    %2636 = vmatpush1.bf16.msra.mxu0 0
    %2637 = vmatprep.subr.bf16.mxu0 0
    %2638 = vmatpush1.bf16.msra.mxu0 0
    %2639 = vmatprep.subr.bf16.mxu0 0
    %2640 = vmatpush1.bf16.msra.mxu0 0
    %2641 = vmatprep.subr.bf16.mxu0 0
    %2642 = vmatpush1.bf16.msra.mxu0 0
    %2643 = vmatprep.subr.bf16.mxu0 0
    %2644 = vmatpush1.bf16.msra.mxu0 0
    %2645 = vmatprep.subr.bf16.mxu0 0
    %2646 = vmatpush1.bf16.msra.mxu0 0
    %2647 = vmatprep.subr.bf16.mxu0 0
    %2648 = vmatpush1.bf16.msra.mxu0 0
    %2649 = vmatprep.subr.bf16.mxu0 0
    %2650 = vmatpush1.bf16.msra.mxu0 0
    %2651 = vmatprep.subr.bf16.mxu0 0
    %2652 = vmatpush1.bf16.msra.mxu0 0
    %2653 = vmatprep.subr.bf16.mxu0 0
    %2654 = vmatpush1.bf16.msra.mxu0 0
    %2655 = vmatprep.subr.bf16.mxu0 0
    %2656 = vmatpush1.bf16.msra.mxu0 0
    %2657 = vmatprep.mubr.bf16.mxu0 0
    %2658 = vmatmul.mubr.bf16.gmra.mrb[0].mxu0 %v2623
    %v2659 = vpop.f32.mrb[0].mxu0
    %v2660 = vadd.f32 %v2613, %v2659
    %v2661 = vpop.f32.mrb[0].mxu0
    %v2662 = vpop.f32.mrb[0].mxu0
    %v2663 = vadd.f32 %v2613, %v2662
    %v2664 = vpop.f32.mrb[0].mxu0
    %2665 = vdwg.mxu0
    %v2666 = vmul.f32 %v2660, 0.5
    %v2667 = vmul.f32 %v2663, 0.5
    %v2668 = vmul.f32 %v2660, 0.044715
    %v2669 = vmul.f32 %v2663, 0.044715
    %v2670 = vmul.f32 %v2668, %v2660
    %v2671 = vmul.f32 %v2669, %v2663
    %v2672 = vmul.f32 %v2670, %v2660
    %v2673 = vmul.f32 %v2671, %v2663
    %v2674 = vadd.f32 %v2660, %v2672
    %v2675 = vadd.f32 %v2663, %v2673
    %v2676 = vmul.f32 %v2674, 0.7978846
    %v2677 = vmul.f32 %v2675, 0.7978846
    %v2678 = vtanh.pop %v2676
    %v2679 = vtanh.pop %v2677
    %v2680 = vadd.f32 %v2678, 1.0
    %v2681 = vadd.f32 %v2679, 1.0
    %v2682 = vmul.f32 %v2666, %v2680
    %v2683 = vmul.f32 %v2667, %v2681
    %v2684 = vpack.c.bf16 %v2683, %v2682
    %v2685 = vlaneseq
    %v2686 = vshrl.u32 %v2685, 7
    %v2687 = vsub.s32 3, %v2686
    %v2688 = vrot.slane %v1513, %v2687
    %v2697 = vunpack.c.l.b16 %v1515
    %v2698 = vunpack.c.l.b16 %v1516
    %v2699 = vunpack.c.l.b16 %v1517
    %v2700 = vunpack.c.l.b16 %v1518
    %v2701 = vunpack.c.l.b16 %v1519
    %v2702 = vunpack.c.l.b16 %v1520
    %v2703 = vunpack.c.l.b16 %v1521
    %v2704 = vunpack.c.l.b16 %v1522
    %v2705 = vpack.c.b16 %v2698, %v2697
    %v2706 = vpack.c.b16 %v2700, %v2699
    %v2707 = vpack.c.b16 %v2702, %v2701
    %v2708 = vpack.c.b16 %v2704, %v2703
    %v2714 = vsel %vm1422, %v2684, 0
    %2716 = vmatprep.subr.bf16.mxu0 0
    %2717 = vmatpush1.bf16.msra.mxu0 %v2705
    %2718 = vmatprep.subr.bf16.mxu0 0
    %2719 = vmatpush1.bf16.msra.mxu0 %v2706
    %2720 = vmatprep.subr.bf16.mxu0 0
    %2721 = vmatpush1.bf16.msra.mxu0 %v2707
    %2722 = vmatprep.subr.bf16.mxu0 0
    %2723 = vmatpush1.bf16.msra.mxu0 %v2708
    %2724 = vmatprep.subr.bf16.mxu0 0
    %2725 = vmatpush1.bf16.msra.mxu0 0
    %2726 = vmatprep.subr.bf16.mxu0 0
    %2727 = vmatpush1.bf16.msra.mxu0 0
    %2728 = vmatprep.subr.bf16.mxu0 0
    %2729 = vmatpush1.bf16.msra.mxu0 0
    %2730 = vmatprep.subr.bf16.mxu0 0
    %2731 = vmatpush1.bf16.msra.mxu0 0
    %2732 = vmatprep.subr.bf16.mxu0 0
    %2733 = vmatpush1.bf16.msra.mxu0 0
    %2734 = vmatprep.subr.bf16.mxu0 0
    %2735 = vmatpush1.bf16.msra.mxu0 0
    %2736 = vmatprep.subr.bf16.mxu0 0
    %2737 = vmatpush1.bf16.msra.mxu0 0
    %2738 = vmatprep.subr.bf16.mxu0 0
    %2739 = vmatpush1.bf16.msra.mxu0 0
    %2740 = vmatprep.subr.bf16.mxu0 0
    %2741 = vmatpush1.bf16.msra.mxu0 0
    %2742 = vmatprep.subr.bf16.mxu0 0
    %2743 = vmatpush1.bf16.msra.mxu0 0
    %2744 = vmatprep.subr.bf16.mxu0 0
    %2745 = vmatpush1.bf16.msra.mxu0 0
    %2746 = vmatprep.subr.bf16.mxu0 0
    %2747 = vmatpush1.bf16.msra.mxu0 0
    %2748 = vmatprep.mubr.bf16.mxu0 0
    %2749 = vmatmul.mubr.bf16.gmra.mrb[0].mxu0 %v2714
    %v2750 = vpop.f32.mrb[0].mxu0
    %v2751 = vadd.f32 %v2688, %v2750
    %v2752 = vpop.f32.mrb[0].mxu0
    %v2753 = vpop.f32.mrb[0].mxu0
    %v2754 = vadd.f32 %v2688, %v2753
    %v2755 = vpop.f32.mrb[0].mxu0
    %2756 = vdwg.mxu0
    %v2757 = vadd.f32 %v2607, %v2751
    %v2758 = vadd.f32 %v2608, %v2754
    %v2759 = vsel %vm134, %v2757, 0.0
    %2760 = vadd.xlane.f32.xlu0 %v2759
    %v2761 = vpop.xlane.xlu0 %2760
    %v2762 = vsel %vm134, %v2758, 0.0
    %2763 = vadd.xlane.f32.xlu0 %v2762
    %v2764 = vpop.xlane.xlu0 %2763
    %v2765 = vmul.f32 %v2761, %v141
    %v2766 = vmul.f32 %v2764, %v141
    %v2767 = vsub.f32 %v2757, %v2765
    %v2768 = vsub.f32 %v2758, %v2766
    %v2769 = vmul.f32 %v2767, %v2767
    %v2770 = vmul.f32 %v2768, %v2768
    %v2771 = vsel %vm134, %v2769, 0.0
    %2772 = vadd.xlane.f32.xlu0 %v2771
    %v2773 = vpop.xlane.xlu0 %2772
    %v2774 = vsel %vm134, %v2770, 0.0
    %2775 = vadd.xlane.f32.xlu0 %v2774
    %v2776 = vpop.xlane.xlu0 %2775
    %v2777 = vmul.f32 %v2773, %v141
    %v2778 = vmul.f32 %v2776, %v141
    %v2779 = vadd.f32 %v2777, 1e-12
    %v2780 = vadd.f32 %v2778, 1e-12
    %v2781 = vrsqrt.pop %v2779
    %v2782 = vrsqrt.pop %v2780
    %v2783 = vmul.f32 %v2767, %v2781
    %v2784 = vmul.f32 %v2768, %v2782
    %v2785 = vlaneseq
    %v2786 = vshrl.u32 %v2785, 7
    %v2787 = vsub.s32 6, %v2786
    %v2788 = vrot.slane %v1513, %v2787
    %v2789 = vmul.f32 %v2783, %v2788
    %v2790 = vmul.f32 %v2784, %v2788
    %v2791 = vlaneseq
    %v2792 = vshrl.u32 %v2791, 7
    %v2793 = vsub.s32 7, %v2792
    %v2794 = vrot.slane %v1513, %v2793
    %v2795 = vadd.f32 %v2789, %v2794
    %v2796 = vadd.f32 %v2790, %v2794
    %2797 = vst.msk [vmem:[#allocation2] sm:$0xff] %vm134, %v2795
    %2798 = vst.msk [vmem:[#allocation2 + $0x8] sm:$0xff] %vm134, %v2796
    // Predicated region
    $region22: #{tpu_custom_call.1} parent=1 // pred_check
      _
    $region23: #{tpu_custom_call.1} parent=1 // pred_check_branch
      %2800 = sbr.rel (0) target = $region25
    $region24: #{tpu_custom_call.1} parent=1 // pred_region
      %s2802 = ssub.s32 256, 256
      %2803 = vsyncadd [#allocation3], %s2802
      %s2804 = sshll.u32 [#allocation2], 4
      %s2805 = int_to_ptr.vmem [resolvable:$true] %s2804
      %2810 = dma.vmem_to_hbm [thread:$0]  %s2805, 256, %s5, [#allocation3], 128, 128, 8
    $region25: #{tpu_custom_call.1} parent=1 // pred_fallthru
      _
    // Predicated region
    $region26: #{tpu_custom_call.1} parent=1 // pred_check
      _
    $region27: #{tpu_custom_call.1} parent=1 // pred_check_branch
      %2812 = sbr.rel (0) target = $region29
    $region28: #{tpu_custom_call.1} parent=1 // pred_region
      %2813 = dma.done [#allocation3], 256
    $region29: #{tpu_custom_call.1} parent=1 // pred_fallthru
      _
    %2814 = vsyncpa [#allocation3], 1

</llo_original>
